<compile_context>
chip_gen: v7x
topology: tpu7x:2x2x1
jax: 0.10.0
libtpu: 0.0.40
codegen_flags: <defaults>
</compile_context>

<pallas_src>
import functools

import jax
import jax.numpy as jnp
from jax import lax
from jax.experimental import pallas as pl
from jax.experimental.pallas import tpu as pltpu


def get_padding(kernel_size, dilation):
    return (kernel_size * dilation - dilation) // 2


# ---------------------------------------------------------------------------
# Fused MRF residual-block kernel (all layers of one block in one kernel).
# Grid = (B, num_T_tiles); each step computes one (C, T_tile) output tile.
# ---------------------------------------------------------------------------
def _mrf_block_kernel(*refs, dilations, k1, k2, t_tile, halo, add_acc, nt,
                      compute_dtype):
    idx = 0
    if nt > 1:
        x_prev_ref, x_curr_ref, x_next_ref = refs[0], refs[1], refs[2]
        idx = 3
    else:
        x_prev_ref = x_next_ref = None
        x_curr_ref = refs[0]
        idx = 1
    w1_ref, b1_ref, w2_ref, b2_ref = refs[idx:idx + 4]
    idx += 4
    if add_acc:
        acc_ref = refs[idx]
        idx += 1
    out_ref, xbuf, abuf, hbuf = refs[idx:idx + 4]

    C = x_curr_ref.shape[0]
    H = halo
    t_idx = pl.program_id(1)
    last_t = nt - 1
    neg = jnp.float32(0.1)

    def lrelu(v):
        return jnp.where(v > 0, v, neg * v)

    # ---- assemble the halo'd input tile (f32 running residual buffer) ------
    xbuf[:, H:H + t_tile] = x_curr_ref[...].astype(jnp.float32)
    if H > 0:
        @pl.when(t_idx == 0)
        def _():
            xbuf[:, 0:H] = jnp.zeros((C, H), jnp.float32)

        @pl.when(t_idx == last_t)
        def _():
            xbuf[:, H + t_tile:H + t_tile + H] = jnp.zeros((C, H), jnp.float32)

        if nt > 1:
            @pl.when(t_idx > 0)
            def _():
                xbuf[:, 0:H] = x_prev_ref[:, t_tile - H:t_tile].astype(jnp.float32)

            @pl.when(t_idx < last_t)
            def _():
                xbuf[:, H + t_tile:H + t_tile + H] = \
                    x_next_ref[:, 0:H].astype(jnp.float32)

    # ---- residual layers (statically unrolled; all offsets are Python ints)
    ext = H
    for l, d1 in enumerate(dilations):
        pad1 = get_padding(k1, d1)
        pad2 = get_padding(k2, 1)
        e_in = ext                      # remaining halo at this layer's input
        e_mid = e_in - pad1             # after conv1
        e_out = e_mid - pad2            # after conv2 (== halo left for next layer)
        w_in = t_tile + 2 * e_in
        w_mid = t_tile + 2 * e_mid
        w_out = t_tile + 2 * e_out
        base_in = H - e_in
        base_mid = H - e_mid
        base_out = H - e_out

        # LeakyReLU on the layer input window; cast once for the MXU.
        abuf[:, base_in:base_in + w_in] = lrelu(
            xbuf[:, base_in:base_in + w_in]).astype(compute_dtype)

        # Re-apply sequence-boundary zero padding for this conv's input.
        if e_in > 0:
            @pl.when(t_idx == 0)
            def _():
                abuf[:, base_in:base_in + e_in] = jnp.zeros((C, e_in), compute_dtype)

            @pl.when(t_idx == last_t)
            def _():
                abuf[:, H + t_tile:H + t_tile + e_in] = \
                    jnp.zeros((C, e_in), compute_dtype)

        # conv1 (dilation d1): k1 accumulated MXU matmuls over shifted views.
        acc1 = jnp.dot(w1_ref[l, 0], abuf[:, base_in:base_in + w_mid],
                       preferred_element_type=jnp.float32)
        for k in range(1, k1):
            off = base_in + k * d1
            acc1 = acc1 + jnp.dot(w1_ref[l, k], abuf[:, off:off + w_mid],
                                  preferred_element_type=jnp.float32)
        h1 = acc1 + b1_ref[l]                                 # (C, w_mid) f32

        hbuf[:, base_mid:base_mid + w_mid] = lrelu(h1).astype(compute_dtype)
        if e_mid > 0:
            @pl.when(t_idx == 0)
            def _():
                hbuf[:, base_mid:base_mid + e_mid] = \
                    jnp.zeros((C, e_mid), compute_dtype)

            @pl.when(t_idx == last_t)
            def _():
                hbuf[:, H + t_tile:H + t_tile + e_mid] = \
                    jnp.zeros((C, e_mid), compute_dtype)

        # conv2 (dilation 1): k2 accumulated MXU matmuls.
        acc2 = jnp.dot(w2_ref[l, 0], hbuf[:, base_mid:base_mid + w_out],
                       preferred_element_type=jnp.float32)
        for k in range(1, k2):
            off = base_mid + k
            acc2 = acc2 + jnp.dot(w2_ref[l, k], hbuf[:, off:off + w_out],
                                  preferred_element_type=jnp.float32)
        y = acc2 + b2_ref[l]                                  # f32

        # Residual add in f32, written back into the running buffer.
        xbuf[:, base_out:base_out + w_out] = y + xbuf[:, base_out:base_out + w_out]
        ext = e_out

    # After the last layer ext == 0 by construction of `halo`.
    res = xbuf[:, H:H + t_tile]
    if add_acc:
        res = res + acc_ref[...].astype(jnp.float32)          # cross-block sum (f32)
    out_ref[...] = res.astype(out_ref.dtype)


# ---------------------------------------------------------------------------
# Wrapper: one fused pallas_call per MRF residual block.
# ---------------------------------------------------------------------------
def _pick_t_tile(T, halo):
    for cand in (512, 384, 256, 128):          # lane-aligned, largest first
        if T % cand == 0 and cand >= halo:
            return cand
    return T


def mrf_block_forward(x, block, acc=None, t_tile=None):
    """Apply one fused MRF residual block to x (B,C,T); optionally add acc."""
    B, C, T = x.shape
    w1_all, b1_all = block["w1"], block["b1"]
    w2_all, b2_all = block["w2"], block["b2"]
    dilations, k1, k2, halo = (block["dilations"], block["k1"],
                               block["k2"], block["halo"])

    if (t_tile is None or T % t_tile != 0 or t_tile < halo
            or (t_tile % 128 != 0 and t_tile != T)):
        t_tile = _pick_t_tile(T, halo)
    nt = T // t_tile
    if nt > 1:
        assert halo <= t_tile, "halo must fit inside one neighbor tile"
    w_max = t_tile + 2 * halo
    compute_dtype = w1_all.dtype
    add_acc = acc is not None

    kernel = functools.partial(
        _mrf_block_kernel, dilations=dilations, k1=k1, k2=k2, t_tile=t_tile,
        halo=halo, add_acc=add_acc, nt=nt, compute_dtype=compute_dtype)

    def tile_spec():
        return pl.BlockSpec((None, C, t_tile), lambda b, t: (b, 0, t))

    def w_spec(a):
        return pl.BlockSpec(a.shape, lambda b, t, _nd=a.ndim: (0,) * _nd)

    in_specs, args = [], []
    if nt > 1:
        in_specs += [
            pl.BlockSpec((None, C, t_tile),
                         lambda b, t: (b, 0, jnp.maximum(t - 1, 0))),
            tile_spec(),
            pl.BlockSpec((None, C, t_tile),
                         lambda b, t: (b, 0, jnp.minimum(t + 1, nt - 1))),
        ]
        args += [x, x, x]
    else:
        in_specs += [tile_spec()]
        args += [x]

    in_specs += [w_spec(w1_all), w_spec(b1_all), w_spec(w2_all), w_spec(b2_all)]
    args += [w1_all, b1_all, w2_all, b2_all]

    io_alias = {}
    if add_acc:
        acc_idx = len(args)
        in_specs.append(tile_spec())           # identical index map to out_specs
        args.append(acc)
        io_alias = {acc_idx: 0}                # reuse the accumulator's HBM buffer

    n_layers = len(dilations)
    itemsize = int(jnp.dtype(x.dtype).itemsize)
    flops = int(2 * B * T * C * C * (k1 + k2) * n_layers)
    bytes_accessed = int(
        (3 if nt > 1 else 1) * B * C * T * itemsize
        + (int(w1_all.size) + int(w2_all.size)) * int(jnp.dtype(compute_dtype).itemsize)
        + (int(b1_all.size) + int(b2_all.size)) * 4
        + (2 if add_acc else 1) * B * C * T * 4)

    return pl.pallas_call(
        kernel,
        out_shape=jax.ShapeDtypeStruct((B, C, T), x.dtype),
        grid_spec=pltpu.PrefetchScalarGridSpec(
            num_scalar_prefetch=0,
            grid=(B, nt),
            in_specs=in_specs,
            out_specs=pl.BlockSpec((None, C, t_tile), lambda b, t: (b, 0, t)),
            scratch_shapes=[
                pltpu.VMEM((C, w_max), jnp.float32),    # running residual (f32)
                pltpu.VMEM((C, w_max), compute_dtype),  # LReLU'd conv1 input
                pltpu.VMEM((C, w_max), compute_dtype),  # LReLU'd conv2 input
            ]),
        input_output_aliases=io_alias,
        compiler_params=pltpu.CompilerParams(
            dimension_semantics=("parallel", "parallel")),
        cost_estimate=pl.CostEstimate(flops=flops, transcendentals=0,
                                      bytes_accessed=bytes_accessed),
    )(*args)


def mrf_forward(x, packed_blocks, t_tile=None):
    """MRF: output = sum over blocks of block(x); sum folded into the kernels."""
    output = None
    for block in packed_blocks:
        output = mrf_block_forward(x, block, acc=output, t_tile=t_tile)
    return output


# ---------------------------------------------------------------------------
# Parameter packing (host-side, once): per-tap (K, C_out, C_in) weight stacks.
# ---------------------------------------------------------------------------
def pack_mrf_params(params, compute_dtype=jnp.bfloat16):
    packed = []
    for block in params:
        w1s, b1s, w2s, b2s, dils = [], [], [], [], []
        for (w1, b1, d1, w2, b2) in block:
            assert w1.shape[2] % 2 == 1 and w2.shape[2] % 2 == 1, \
                "MRF assumes odd kernel_size for symmetric 'same' padding"
            w1s.append(jnp.transpose(w1, (2, 0, 1)))   # (K, C_out, C_in)
            w2s.append(jnp.transpose(w2, (2, 0, 1)))
            b1s.append(b1.reshape(-1, 1))
            b2s.append(b2.reshape(-1, 1))
            dils.append(int(d1))
        w1_all = jnp.stack(w1s).astype(compute_dtype)   # (L, K, C, C)
        w2_all = jnp.stack(w2s).astype(compute_dtype)
        b1_all = jnp.stack(b1s).astype(jnp.float32)     # (L, C, 1)
        b2_all = jnp.stack(b2s).astype(jnp.float32)
        k1, k2 = int(w1_all.shape[1]), int(w2_all.shape[1])
        halo = int(sum(get_padding(k1, d) + get_padding(k2, 1) for d in dils))
        packed.append(dict(w1=w1_all, b1=b1_all, w2=w2_all, b2=b2_all,
                           dilations=tuple(dils), k1=k1, k2=k2, halo=halo))
    return packed


# ---------------------------------------------------------------------------
# Deterministic parameter init (shapes mirror nn.Conv1d(channels, channels, K))
# ---------------------------------------------------------------------------
def init_mrf_params(key, channels, kernels, dilations):
    params = []
    for kernel_size, block_dils in zip(kernels, dilations):
        block = []
        for d in block_dils:
            key, k1, k2, k3, k4 = jax.random.split(key, 5)
            scale = 0.1
            w1 = scale * jax.random.normal(k1, (channels, channels, kernel_size), jnp.float32)
            b1 = scale * jax.random.normal(k2, (channels,), jnp.float32)
            w2 = scale * jax.random.normal(k3, (channels, channels, kernel_size), jnp.float32)
            b2 = scale * jax.random.normal(k4, (channels,), jnp.float32)
            block.append((w1, b1, int(d), w2, b2))
        params.append(block)
    return params


# ---------------------------------------------------------------------------
# Pure-JAX reference (lax.conv) used to validate the Pallas path
# ---------------------------------------------------------------------------
def _ref_conv(x, w, b, dilation):
    x = jnp.where(x > 0, x, 0.1 * x)
    pad = get_padding(w.shape[2], dilation)
    y = lax.conv_general_dilated(
        x, w, window_strides=(1,), padding=[(pad, pad)],
        rhs_dilation=(dilation,),
        dimension_numbers=("NCH", "OIH", "NCH"))
    return y + b[None, :, None]


def mrf_reference(x, params):
    output = jnp.zeros_like(x)
    for block in params:
        out = x
        for (w1, b1, d1, w2, b2) in block:
            h = _ref_conv(out, w1, b1, d1)
            h = _ref_conv(h, w2, b2, 1)
            out = h + out
        output = output + out
    return output


if __name__ == "__main__":
    key = jax.random.PRNGKey(0)
    B, C, T = 2, 8, 256
    kernels = (3, 5)
    dilations = ((1, 3), (1, 3))

    key, kx = jax.random.split(key)
    x = jax.random.normal(kx, (B, C, T), jnp.float32)
    params = init_mrf_params(key, C, kernels, dilations)

    ref = jax.block_until_ready(mrf_reference(x, params))

    # 1) f32 compute path: exact parity check of the fused / tiled kernel logic
    #    (t_tile=128 -> 2 T-tiles, exercises halo + boundary handling).
    packed_f32 = pack_mrf_params(params, compute_dtype=jnp.float32)
    out_f32 = jax.block_until_ready(
        jax.jit(lambda xin: mrf_forward(xin, packed_f32, t_tile=128))(x))
    assert out_f32.shape == (B, C, T)
    assert jnp.allclose(out_f32, ref, rtol=1e-4, atol=1e-4), \
        "Pallas MRF (f32) mismatch vs reference"

    # 2) bf16 MXU path (the performance configuration): looser tolerance.
    packed_bf16 = pack_mrf_params(params, compute_dtype=jnp.bfloat16)
    out_bf16 = jax.block_until_ready(
        jax.jit(lambda xin: mrf_forward(xin, packed_bf16, t_tile=128))(x))
    assert jnp.allclose(out_bf16, ref, rtol=5e-2, atol=5e-2), \
        "Pallas MRF (bf16) mismatch vs reference"

    print("KERNEL_OK")
</pallas_src>

<mosaic_0001>
module attributes {stable_mosaic.version = 11 : i64} {
  func.func @_mrf_block_kernel(%arg0: i32, %arg1: i32, %arg2: memref<1x8x128xf32, #tpu.memory_space<vmem>>, %arg3: memref<1x8x128xf32, #tpu.memory_space<vmem>>, %arg4: memref<1x8x128xf32, #tpu.memory_space<vmem>>, %arg5: memref<2x3x8x8xf32, #tpu.memory_space<vmem>>, %arg6: memref<2x8x1xf32, #tpu.memory_space<vmem>>, %arg7: memref<2x3x8x8xf32, #tpu.memory_space<vmem>>, %arg8: memref<2x8x1xf32, #tpu.memory_space<vmem>>, %arg9: memref<1x8x128xf32, #tpu.memory_space<vmem>>, %arg10: memref<8x140xf32, #tpu.memory_space<vmem>>, %arg11: memref<8x140xf32, #tpu.memory_space<vmem>>, %arg12: memref<8x140xf32, #tpu.memory_space<vmem>>) attributes {dimension_semantics = [#tpu.dimension_semantics<parallel>, #tpu.dimension_semantics<parallel>], iteration_bounds = array<i64: 2, 2>, scalar_prefetch = 0 : i64, scratch_operands = 3 : i64, tpu.core_type = #tpu.core_type<tc>, window_params = [{transform_indices = @transform_0, window_bounds = array<i64: 1, 8, 128>}, {transform_indices = @transform_1, window_bounds = array<i64: 1, 8, 128>}, {transform_indices = @transform_2, window_bounds = array<i64: 1, 8, 128>}, {pipeline_mode = #tpu.pipeline_mode<synchronous>, transform_indices = @transform_3, window_bounds = array<i64: 2, 3, 8, 8>}, {pipeline_mode = #tpu.pipeline_mode<synchronous>, transform_indices = @transform_4, window_bounds = array<i64: 2, 8, 1>}, {pipeline_mode = #tpu.pipeline_mode<synchronous>, transform_indices = @transform_5, window_bounds = array<i64: 2, 3, 8, 8>}, {pipeline_mode = #tpu.pipeline_mode<synchronous>, transform_indices = @transform_6, window_bounds = array<i64: 2, 8, 1>}, {transform_indices = @transform_7, window_bounds = array<i64: 1, 8, 128>}]} {
    %c0 = arith.constant 0 : index
    %c0_0 = arith.constant 0 : index
    %c0_1 = arith.constant 0 : index
    %0 = vector.load %arg3[%c0, %c0_0, %c0_1] : memref<1x8x128xf32, #tpu.memory_space<vmem>>, vector<1x8x128xf32>
    %1 = vector.shape_cast %0 : vector<1x8x128xf32> to vector<8x128xf32>
    %c0_2 = arith.constant 0 : index
    %c6 = arith.constant 6 : index
    %2 = vector.load %arg10[%c0_2, %c6] : memref<8x140xf32, #tpu.memory_space<vmem>>, vector<8x128xf32>
    tpu.vector_store %arg10[%c0_2, %c6], %1 {strides = array<i32>} : memref<8x140xf32, #tpu.memory_space<vmem>>, vector<8x128xf32>,
    %c0_i32 = arith.constant 0 : i32
    %3 = arith.cmpi eq, %arg1, %c0_i32 : i32
    %4 = arith.extui %3 : i1 to i32
    %c0_i32_3 = arith.constant 0 : i32
    %5 = arith.cmpi ne, %4, %c0_i32_3 : i32
    scf.if %5 {
      %cst_147 = arith.constant 0.000000e+00 : f32
      %147 = vector.broadcast %cst_147 : f32 to vector<8x6xf32>
      %c0_148 = arith.constant 0 : index
      %c0_149 = arith.constant 0 : index
      %148 = vector.load %arg10[%c0_148, %c0_149] : memref<8x140xf32, #tpu.memory_space<vmem>>, vector<8x6xf32>
      tpu.vector_store %arg10[%c0_148, %c0_149], %147 {strides = array<i32>} : memref<8x140xf32, #tpu.memory_space<vmem>>, vector<8x6xf32>,
    } else {
    }
    %c1_i32 = arith.constant 1 : i32
    %6 = arith.cmpi eq, %arg1, %c1_i32 : i32
    %7 = arith.extui %6 : i1 to i32
    %c0_i32_4 = arith.constant 0 : i32
    %8 = arith.cmpi ne, %7, %c0_i32_4 : i32
    scf.if %8 {
      %cst_147 = arith.constant 0.000000e+00 : f32
      %147 = vector.broadcast %cst_147 : f32 to vector<8x6xf32>
      %c0_148 = arith.constant 0 : index
      %c134 = arith.constant 134 : index
      %148 = vector.load %arg10[%c0_148, %c134] : memref<8x140xf32, #tpu.memory_space<vmem>>, vector<8x6xf32>
      tpu.vector_store %arg10[%c0_148, %c134], %147 {strides = array<i32>} : memref<8x140xf32, #tpu.memory_space<vmem>>, vector<8x6xf32>,
    } else {
    }
    %c0_i32_5 = arith.constant 0 : i32
    %9 = arith.cmpi sgt, %arg1, %c0_i32_5 : i32
    %10 = arith.extui %9 : i1 to i32
    %c0_i32_6 = arith.constant 0 : i32
    %11 = arith.cmpi ne, %10, %c0_i32_6 : i32
    scf.if %11 {
      %c0_147 = arith.constant 0 : index
      %c0_148 = arith.constant 0 : index
      %c122 = arith.constant 122 : index
      %147 = vector.load %arg2[%c0_147, %c0_148, %c122] : memref<1x8x128xf32, #tpu.memory_space<vmem>>, vector<1x8x6xf32>
      %148 = vector.shape_cast %147 : vector<1x8x6xf32> to vector<8x6xf32>
      %c0_149 = arith.constant 0 : index
      %c0_150 = arith.constant 0 : index
      %149 = vector.load %arg10[%c0_149, %c0_150] : memref<8x140xf32, #tpu.memory_space<vmem>>, vector<8x6xf32>
      tpu.vector_store %arg10[%c0_149, %c0_150], %148 {strides = array<i32>} : memref<8x140xf32, #tpu.memory_space<vmem>>, vector<8x6xf32>,
    } else {
    }
    %c1_i32_7 = arith.constant 1 : i32
    %12 = arith.cmpi slt, %arg1, %c1_i32_7 : i32
    %13 = arith.extui %12 : i1 to i32
    %c0_i32_8 = arith.constant 0 : i32
    %14 = arith.cmpi ne, %13, %c0_i32_8 : i32
    scf.if %14 {
      %c0_147 = arith.constant 0 : index
      %c0_148 = arith.constant 0 : index
      %c0_149 = arith.constant 0 : index
      %147 = vector.load %arg4[%c0_147, %c0_148, %c0_149] : memref<1x8x128xf32, #tpu.memory_space<vmem>>, vector<1x8x6xf32>
      %148 = vector.shape_cast %147 : vector<1x8x6xf32> to vector<8x6xf32>
      %c0_150 = arith.constant 0 : index
      %c134 = arith.constant 134 : index
      %149 = vector.load %arg10[%c0_150, %c134] : memref<8x140xf32, #tpu.memory_space<vmem>>, vector<8x6xf32>
      tpu.vector_store %arg10[%c0_150, %c134], %148 {strides = array<i32>} : memref<8x140xf32, #tpu.memory_space<vmem>>, vector<8x6xf32>,
    } else {
    }
    %c0_9 = arith.constant 0 : index
    %c0_10 = arith.constant 0 : index
    %15 = vector.load %arg10[%c0_9, %c0_10] : memref<8x140xf32, #tpu.memory_space<vmem>>, vector<8x140xf32>
    %cst = arith.constant 0.000000e+00 : f32
    %16 = vector.broadcast %cst : f32 to vector<8x140xf32>
    %17 = arith.cmpf ogt, %15, %16 : vector<8x140xf32>
    %cst_11 = arith.constant 1.000000e-01 : f32
    %18 = vector.broadcast %cst_11 : f32 to vector<8x140xf32>
    %19 = arith.mulf %18, %15 : vector<8x140xf32>
    %20 = arith.select %17, %15, %19 : vector<8x140xi1>, vector<8x140xf32>
    %c0_12 = arith.constant 0 : index
    %c0_13 = arith.constant 0 : index
    %21 = vector.load %arg11[%c0_12, %c0_13] : memref<8x140xf32, #tpu.memory_space<vmem>>, vector<8x140xf32>
    tpu.vector_store %arg11[%c0_12, %c0_13], %20 {strides = array<i32>} : memref<8x140xf32, #tpu.memory_space<vmem>>, vector<8x140xf32>,
    %c0_i32_14 = arith.constant 0 : i32
    %22 = arith.cmpi eq, %arg1, %c0_i32_14 : i32
    %23 = arith.extui %22 : i1 to i32
    %c0_i32_15 = arith.constant 0 : i32
    %24 = arith.cmpi ne, %23, %c0_i32_15 : i32
    scf.if %24 {
      %cst_147 = arith.constant 0.000000e+00 : f32
      %147 = vector.broadcast %cst_147 : f32 to vector<8x6xf32>
      %c0_148 = arith.constant 0 : index
      %c0_149 = arith.constant 0 : index
      %148 = vector.load %arg11[%c0_148, %c0_149] : memref<8x140xf32, #tpu.memory_space<vmem>>, vector<8x6xf32>
      tpu.vector_store %arg11[%c0_148, %c0_149], %147 {strides = array<i32>} : memref<8x140xf32, #tpu.memory_space<vmem>>, vector<8x6xf32>,
    } else {
    }
    %c1_i32_16 = arith.constant 1 : i32
    %25 = arith.cmpi eq, %arg1, %c1_i32_16 : i32
    %26 = arith.extui %25 : i1 to i32
    %c0_i32_17 = arith.constant 0 : i32
    %27 = arith.cmpi ne, %26, %c0_i32_17 : i32
    scf.if %27 {
      %cst_147 = arith.constant 0.000000e+00 : f32
      %147 = vector.broadcast %cst_147 : f32 to vector<8x6xf32>
      %c0_148 = arith.constant 0 : index
      %c134 = arith.constant 134 : index
      %148 = vector.load %arg11[%c0_148, %c134] : memref<8x140xf32, #tpu.memory_space<vmem>>, vector<8x6xf32>
      tpu.vector_store %arg11[%c0_148, %c134], %147 {strides = array<i32>} : memref<8x140xf32, #tpu.memory_space<vmem>>, vector<8x6xf32>,
    } else {
    }
    %c0_18 = arith.constant 0 : index
    %c0_19 = arith.constant 0 : index
    %c0_20 = arith.constant 0 : index
    %c0_21 = arith.constant 0 : index
    %28 = vector.load %arg5[%c0_18, %c0_19, %c0_20, %c0_21] : memref<2x3x8x8xf32, #tpu.memory_space<vmem>>, vector<1x1x8x8xf32>
    %29 = vector.shape_cast %28 : vector<1x1x8x8xf32> to vector<8x8xf32>
    %c0_22 = arith.constant 0 : index
    %c0_23 = arith.constant 0 : index
    %30 = vector.load %arg11[%c0_22, %c0_23] : memref<8x140xf32, #tpu.memory_space<vmem>>, vector<8x138xf32>
    %cst_24 = arith.constant dense<0.000000e+00> : vector<8x138xf32>
    %31 = tpu.matmul %29, %30, %cst_24 {dimension_numbers = #tpu.dot_dimension_numbers<[1], [0], [0], [1], [0, 0, 1, 1], [], []>} : vector<8x8xf32>, vector<8x138xf32>, vector<8x138xf32> -> vector<8x138xf32>
    %c0_25 = arith.constant 0 : index
    %c1 = arith.constant 1 : index
    %c0_26 = arith.constant 0 : index
    %c0_27 = arith.constant 0 : index
    %32 = vector.load %arg5[%c0_25, %c1, %c0_26, %c0_27] : memref<2x3x8x8xf32, #tpu.memory_space<vmem>>, vector<1x1x8x8xf32>
    %33 = vector.shape_cast %32 : vector<1x1x8x8xf32> to vector<8x8xf32>
    %c0_28 = arith.constant 0 : index
    %c1_29 = arith.constant 1 : index
    %34 = vector.load %arg11[%c0_28, %c1_29] : memref<8x140xf32, #tpu.memory_space<vmem>>, vector<8x138xf32>
    %cst_30 = arith.constant dense<0.000000e+00> : vector<8x138xf32>
    %35 = tpu.matmul %33, %34, %cst_30 {dimension_numbers = #tpu.dot_dimension_numbers<[1], [0], [0], [1], [0, 0, 1, 1], [], []>} : vector<8x8xf32>, vector<8x138xf32>, vector<8x138xf32> -> vector<8x138xf32>
    %36 = arith.addf %31, %35 : vector<8x138xf32>
    %c0_31 = arith.constant 0 : index
    %c2 = arith.constant 2 : index
    %c0_32 = arith.constant 0 : index
    %c0_33 = arith.constant 0 : index
    %37 = vector.load %arg5[%c0_31, %c2, %c0_32, %c0_33] : memref<2x3x8x8xf32, #tpu.memory_space<vmem>>, vector<1x1x8x8xf32>
    %38 = vector.shape_cast %37 : vector<1x1x8x8xf32> to vector<8x8xf32>
    %c0_34 = arith.constant 0 : index
    %c2_35 = arith.constant 2 : index
    %39 = vector.load %arg11[%c0_34, %c2_35] : memref<8x140xf32, #tpu.memory_space<vmem>>, vector<8x138xf32>
    %cst_36 = arith.constant dense<0.000000e+00> : vector<8x138xf32>
    %40 = tpu.matmul %38, %39, %cst_36 {dimension_numbers = #tpu.dot_dimension_numbers<[1], [0], [0], [1], [0, 0, 1, 1], [], []>} : vector<8x8xf32>, vector<8x138xf32>, vector<8x138xf32> -> vector<8x138xf32>
    %41 = arith.addf %36, %40 : vector<8x138xf32>
    %c0_37 = arith.constant 0 : index
    %c0_38 = arith.constant 0 : index
    %c0_39 = arith.constant 0 : index
    %42 = vector.load %arg6[%c0_37, %c0_38, %c0_39] : memref<2x8x1xf32, #tpu.memory_space<vmem>>, vector<1x8x1xf32>
    %43 = vector.shape_cast %42 : vector<1x8x1xf32> to vector<8x1xf32>
    %44 = vector.broadcast %43 : vector<8x1xf32> to vector<8x138xf32>
    %45 = arith.addf %41, %44 : vector<8x138xf32>
    %cst_40 = arith.constant 0.000000e+00 : f32
    %46 = vector.broadcast %cst_40 : f32 to vector<8x138xf32>
    %47 = arith.cmpf ogt, %45, %46 : vector<8x138xf32>
    %cst_41 = arith.constant 1.000000e-01 : f32
    %48 = vector.broadcast %cst_41 : f32 to vector<8x138xf32>
    %49 = arith.mulf %48, %45 : vector<8x138xf32>
    %50 = arith.select %47, %45, %49 : vector<8x138xi1>, vector<8x138xf32>
    %c0_42 = arith.constant 0 : index
    %c1_43 = arith.constant 1 : index
    %51 = vector.load %arg12[%c0_42, %c1_43] : memref<8x140xf32, #tpu.memory_space<vmem>>, vector<8x138xf32>
    tpu.vector_store %arg12[%c0_42, %c1_43], %50 {strides = array<i32>} : memref<8x140xf32, #tpu.memory_space<vmem>>, vector<8x138xf32>,
    %c0_i32_44 = arith.constant 0 : i32
    %52 = arith.cmpi eq, %arg1, %c0_i32_44 : i32
    %53 = arith.extui %52 : i1 to i32
    %c0_i32_45 = arith.constant 0 : i32
    %54 = arith.cmpi ne, %53, %c0_i32_45 : i32
    scf.if %54 {
      %cst_147 = arith.constant 0.000000e+00 : f32
      %147 = vector.broadcast %cst_147 : f32 to vector<8x5xf32>
      %c0_148 = arith.constant 0 : index
      %c1_149 = arith.constant 1 : index
      %148 = vector.load %arg12[%c0_148, %c1_149] : memref<8x140xf32, #tpu.memory_space<vmem>>, vector<8x5xf32>
      tpu.vector_store %arg12[%c0_148, %c1_149], %147 {strides = array<i32>} : memref<8x140xf32, #tpu.memory_space<vmem>>, vector<8x5xf32>,
    } else {
    }
    %c1_i32_46 = arith.constant 1 : i32
    %55 = arith.cmpi eq, %arg1, %c1_i32_46 : i32
    %56 = arith.extui %55 : i1 to i32
    %c0_i32_47 = arith.constant 0 : i32
    %57 = arith.cmpi ne, %56, %c0_i32_47 : i32
    scf.if %57 {
      %cst_147 = arith.constant 0.000000e+00 : f32
      %147 = vector.broadcast %cst_147 : f32 to vector<8x5xf32>
      %c0_148 = arith.constant 0 : index
      %c134 = arith.constant 134 : index
      %148 = vector.load %arg12[%c0_148, %c134] : memref<8x140xf32, #tpu.memory_space<vmem>>, vector<8x5xf32>
      tpu.vector_store %arg12[%c0_148, %c134], %147 {strides = array<i32>} : memref<8x140xf32, #tpu.memory_space<vmem>>, vector<8x5xf32>,
    } else {
    }
    %c0_48 = arith.constant 0 : index
    %c0_49 = arith.constant 0 : index
    %c0_50 = arith.constant 0 : index
    %c0_51 = arith.constant 0 : index
    %58 = vector.load %arg7[%c0_48, %c0_49, %c0_50, %c0_51] : memref<2x3x8x8xf32, #tpu.memory_space<vmem>>, vector<1x1x8x8xf32>
    %59 = vector.shape_cast %58 : vector<1x1x8x8xf32> to vector<8x8xf32>
    %c0_52 = arith.constant 0 : index
    %c1_53 = arith.constant 1 : index
    %60 = vector.load %arg12[%c0_52, %c1_53] : memref<8x140xf32, #tpu.memory_space<vmem>>, vector<8x136xf32>
    %cst_54 = arith.constant dense<0.000000e+00> : vector<8x136xf32>
    %61 = tpu.matmul %59, %60, %cst_54 {dimension_numbers = #tpu.dot_dimension_numbers<[1], [0], [0], [1], [0, 0, 1, 1], [], []>} : vector<8x8xf32>, vector<8x136xf32>, vector<8x136xf32> -> vector<8x136xf32>
    %c0_55 = arith.constant 0 : index
    %c1_56 = arith.constant 1 : index
    %c0_57 = arith.constant 0 : index
    %c0_58 = arith.constant 0 : index
    %62 = vector.load %arg7[%c0_55, %c1_56, %c0_57, %c0_58] : memref<2x3x8x8xf32, #tpu.memory_space<vmem>>, vector<1x1x8x8xf32>
    %63 = vector.shape_cast %62 : vector<1x1x8x8xf32> to vector<8x8xf32>
    %c0_59 = arith.constant 0 : index
    %c2_60 = arith.constant 2 : index
    %64 = vector.load %arg12[%c0_59, %c2_60] : memref<8x140xf32, #tpu.memory_space<vmem>>, vector<8x136xf32>
    %cst_61 = arith.constant dense<0.000000e+00> : vector<8x136xf32>
    %65 = tpu.matmul %63, %64, %cst_61 {dimension_numbers = #tpu.dot_dimension_numbers<[1], [0], [0], [1], [0, 0, 1, 1], [], []>} : vector<8x8xf32>, vector<8x136xf32>, vector<8x136xf32> -> vector<8x136xf32>
    %66 = arith.addf %61, %65 : vector<8x136xf32>
    %c0_62 = arith.constant 0 : index
    %c2_63 = arith.constant 2 : index
    %c0_64 = arith.constant 0 : index
    %c0_65 = arith.constant 0 : index
    %67 = vector.load %arg7[%c0_62, %c2_63, %c0_64, %c0_65] : memref<2x3x8x8xf32, #tpu.memory_space<vmem>>, vector<1x1x8x8xf32>
    %68 = vector.shape_cast %67 : vector<1x1x8x8xf32> to vector<8x8xf32>
    %c0_66 = arith.constant 0 : index
    %c3 = arith.constant 3 : index
    %69 = vector.load %arg12[%c0_66, %c3] : memref<8x140xf32, #tpu.memory_space<vmem>>, vector<8x136xf32>
    %cst_67 = arith.constant dense<0.000000e+00> : vector<8x136xf32>
    %70 = tpu.matmul %68, %69, %cst_67 {dimension_numbers = #tpu.dot_dimension_numbers<[1], [0], [0], [1], [0, 0, 1, 1], [], []>} : vector<8x8xf32>, vector<8x136xf32>, vector<8x136xf32> -> vector<8x136xf32>
    %71 = arith.addf %66, %70 : vector<8x136xf32>
    %c0_68 = arith.constant 0 : index
    %c0_69 = arith.constant 0 : index
    %c0_70 = arith.constant 0 : index
    %72 = vector.load %arg8[%c0_68, %c0_69, %c0_70] : memref<2x8x1xf32, #tpu.memory_space<vmem>>, vector<1x8x1xf32>
    %73 = vector.shape_cast %72 : vector<1x8x1xf32> to vector<8x1xf32>
    %74 = vector.broadcast %73 : vector<8x1xf32> to vector<8x136xf32>
    %75 = arith.addf %71, %74 : vector<8x136xf32>
    %c0_71 = arith.constant 0 : index
    %c2_72 = arith.constant 2 : index
    %76 = vector.load %arg10[%c0_71, %c2_72] : memref<8x140xf32, #tpu.memory_space<vmem>>, vector<8x136xf32>
    %77 = arith.addf %75, %76 : vector<8x136xf32>
    %c0_73 = arith.constant 0 : index
    %c2_74 = arith.constant 2 : index
    %78 = vector.load %arg10[%c0_73, %c2_74] : memref<8x140xf32, #tpu.memory_space<vmem>>, vector<8x136xf32>
    tpu.vector_store %arg10[%c0_73, %c2_74], %77 {strides = array<i32>} : memref<8x140xf32, #tpu.memory_space<vmem>>, vector<8x136xf32>,
    %c0_75 = arith.constant 0 : index
    %c2_76 = arith.constant 2 : index
    %79 = vector.load %arg10[%c0_75, %c2_76] : memref<8x140xf32, #tpu.memory_space<vmem>>, vector<8x136xf32>
    %cst_77 = arith.constant 0.000000e+00 : f32
    %80 = vector.broadcast %cst_77 : f32 to vector<8x136xf32>
    %81 = arith.cmpf ogt, %79, %80 : vector<8x136xf32>
    %cst_78 = arith.constant 1.000000e-01 : f32
    %82 = vector.broadcast %cst_78 : f32 to vector<8x136xf32>
    %83 = arith.mulf %82, %79 : vector<8x136xf32>
    %84 = arith.select %81, %79, %83 : vector<8x136xi1>, vector<8x136xf32>
    %c0_79 = arith.constant 0 : index
    %c2_80 = arith.constant 2 : index
    %85 = vector.load %arg11[%c0_79, %c2_80] : memref<8x140xf32, #tpu.memory_space<vmem>>, vector<8x136xf32>
    tpu.vector_store %arg11[%c0_79, %c2_80], %84 {strides = array<i32>} : memref<8x140xf32, #tpu.memory_space<vmem>>, vector<8x136xf32>,
    %c0_i32_81 = arith.constant 0 : i32
    %86 = arith.cmpi eq, %arg1, %c0_i32_81 : i32
    %87 = arith.extui %86 : i1 to i32
    %c0_i32_82 = arith.constant 0 : i32
    %88 = arith.cmpi ne, %87, %c0_i32_82 : i32
    scf.if %88 {
      %cst_147 = arith.constant 0.000000e+00 : f32
      %147 = vector.broadcast %cst_147 : f32 to vector<8x4xf32>
      %c0_148 = arith.constant 0 : index
      %c2_149 = arith.constant 2 : index
      %148 = vector.load %arg11[%c0_148, %c2_149] : memref<8x140xf32, #tpu.memory_space<vmem>>, vector<8x4xf32>
      tpu.vector_store %arg11[%c0_148, %c2_149], %147 {strides = array<i32>} : memref<8x140xf32, #tpu.memory_space<vmem>>, vector<8x4xf32>,
    } else {
    }
    %c1_i32_83 = arith.constant 1 : i32
    %89 = arith.cmpi eq, %arg1, %c1_i32_83 : i32
    %90 = arith.extui %89 : i1 to i32
    %c0_i32_84 = arith.constant 0 : i32
    %91 = arith.cmpi ne, %90, %c0_i32_84 : i32
    scf.if %91 {
      %cst_147 = arith.constant 0.000000e+00 : f32
      %147 = vector.broadcast %cst_147 : f32 to vector<8x4xf32>
      %c0_148 = arith.constant 0 : index
      %c134 = arith.constant 134 : index
      %148 = vector.load %arg11[%c0_148, %c134] : memref<8x140xf32, #tpu.memory_space<vmem>>, vector<8x4xf32>
      tpu.vector_store %arg11[%c0_148, %c134], %147 {strides = array<i32>} : memref<8x140xf32, #tpu.memory_space<vmem>>, vector<8x4xf32>,
    } else {
    }
    %c1_85 = arith.constant 1 : index
    %c0_86 = arith.constant 0 : index
    %c0_87 = arith.constant 0 : index
    %c0_88 = arith.constant 0 : index
    %92 = vector.load %arg5[%c1_85, %c0_86, %c0_87, %c0_88] : memref<2x3x8x8xf32, #tpu.memory_space<vmem>>, vector<1x1x8x8xf32>
    %93 = vector.shape_cast %92 : vector<1x1x8x8xf32> to vector<8x8xf32>
    %c0_89 = arith.constant 0 : index
    %c2_90 = arith.constant 2 : index
    %94 = vector.load %arg11[%c0_89, %c2_90] : memref<8x140xf32, #tpu.memory_space<vmem>>, vector<8x130xf32>
    %cst_91 = arith.constant dense<0.000000e+00> : vector<8x130xf32>
    %95 = tpu.matmul %93, %94, %cst_91 {dimension_numbers = #tpu.dot_dimension_numbers<[1], [0], [0], [1], [0, 0, 1, 1], [], []>} : vector<8x8xf32>, vector<8x130xf32>, vector<8x130xf32> -> vector<8x130xf32>
    %c1_92 = arith.constant 1 : index
    %c1_93 = arith.constant 1 : index
    %c0_94 = arith.constant 0 : index
    %c0_95 = arith.constant 0 : index
    %96 = vector.load %arg5[%c1_92, %c1_93, %c0_94, %c0_95] : memref<2x3x8x8xf32, #tpu.memory_space<vmem>>, vector<1x1x8x8xf32>
    %97 = vector.shape_cast %96 : vector<1x1x8x8xf32> to vector<8x8xf32>
    %c0_96 = arith.constant 0 : index
    %c5 = arith.constant 5 : index
    %98 = vector.load %arg11[%c0_96, %c5] : memref<8x140xf32, #tpu.memory_space<vmem>>, vector<8x130xf32>
    %cst_97 = arith.constant dense<0.000000e+00> : vector<8x130xf32>
    %99 = tpu.matmul %97, %98, %cst_97 {dimension_numbers = #tpu.dot_dimension_numbers<[1], [0], [0], [1], [0, 0, 1, 1], [], []>} : vector<8x8xf32>, vector<8x130xf32>, vector<8x130xf32> -> vector<8x130xf32>
    %100 = arith.addf %95, %99 : vector<8x130xf32>
    %c1_98 = arith.constant 1 : index
    %c2_99 = arith.constant 2 : index
    %c0_100 = arith.constant 0 : index
    %c0_101 = arith.constant 0 : index
    %101 = vector.load %arg5[%c1_98, %c2_99, %c0_100, %c0_101] : memref<2x3x8x8xf32, #tpu.memory_space<vmem>>, vector<1x1x8x8xf32>
    %102 = vector.shape_cast %101 : vector<1x1x8x8xf32> to vector<8x8xf32>
    %c0_102 = arith.constant 0 : index
    %c8 = arith.constant 8 : index
    %103 = vector.load %arg11[%c0_102, %c8] : memref<8x140xf32, #tpu.memory_space<vmem>>, vector<8x130xf32>
    %cst_103 = arith.constant dense<0.000000e+00> : vector<8x130xf32>
    %104 = tpu.matmul %102, %103, %cst_103 {dimension_numbers = #tpu.dot_dimension_numbers<[1], [0], [0], [1], [0, 0, 1, 1], [], []>} : vector<8x8xf32>, vector<8x130xf32>, vector<8x130xf32> -> vector<8x130xf32>
    %105 = arith.addf %100, %104 : vector<8x130xf32>
    %c1_104 = arith.constant 1 : index
    %c0_105 = arith.constant 0 : index
    %c0_106 = arith.constant 0 : index
    %106 = vector.load %arg6[%c1_104, %c0_105, %c0_106] : memref<2x8x1xf32, #tpu.memory_space<vmem>>, vector<1x8x1xf32>
    %107 = vector.shape_cast %106 : vector<1x8x1xf32> to vector<8x1xf32>
    %108 = vector.broadcast %107 : vector<8x1xf32> to vector<8x130xf32>
    %109 = arith.addf %105, %108 : vector<8x130xf32>
    %cst_107 = arith.constant 0.000000e+00 : f32
    %110 = vector.broadcast %cst_107 : f32 to vector<8x130xf32>
    %111 = arith.cmpf ogt, %109, %110 : vector<8x130xf32>
    %cst_108 = arith.constant 1.000000e-01 : f32
    %112 = vector.broadcast %cst_108 : f32 to vector<8x130xf32>
    %113 = arith.mulf %112, %109 : vector<8x130xf32>
    %114 = arith.select %111, %109, %113 : vector<8x130xi1>, vector<8x130xf32>
    %c0_109 = arith.constant 0 : index
    %c5_110 = arith.constant 5 : index
    %115 = vector.load %arg12[%c0_109, %c5_110] : memref<8x140xf32, #tpu.memory_space<vmem>>, vector<8x130xf32>
    tpu.vector_store %arg12[%c0_109, %c5_110], %114 {strides = array<i32>} : memref<8x140xf32, #tpu.memory_space<vmem>>, vector<8x130xf32>,
    %c0_i32_111 = arith.constant 0 : i32
    %116 = arith.cmpi eq, %arg1, %c0_i32_111 : i32
    %117 = arith.extui %116 : i1 to i32
    %c0_i32_112 = arith.constant 0 : i32
    %118 = arith.cmpi ne, %117, %c0_i32_112 : i32
    scf.if %118 {
      %cst_147 = arith.constant 0.000000e+00 : f32
      %147 = vector.broadcast %cst_147 : f32 to vector<8x1xf32>
      %c0_148 = arith.constant 0 : index
      %c5_149 = arith.constant 5 : index
      %148 = vector.load %arg12[%c0_148, %c5_149] : memref<8x140xf32, #tpu.memory_space<vmem>>, vector<8x1xf32>
      tpu.vector_store %arg12[%c0_148, %c5_149], %147 {strides = array<i32>} : memref<8x140xf32, #tpu.memory_space<vmem>>, vector<8x1xf32>,
    } else {
    }
    %c1_i32_113 = arith.constant 1 : i32
    %119 = arith.cmpi eq, %arg1, %c1_i32_113 : i32
    %120 = arith.extui %119 : i1 to i32
    %c0_i32_114 = arith.constant 0 : i32
    %121 = arith.cmpi ne, %120, %c0_i32_114 : i32
    scf.if %121 {
      %cst_147 = arith.constant 0.000000e+00 : f32
      %147 = vector.broadcast %cst_147 : f32 to vector<8x1xf32>
      %c0_148 = arith.constant 0 : index
      %c134 = arith.constant 134 : index
      %148 = vector.load %arg12[%c0_148, %c134] : memref<8x140xf32, #tpu.memory_space<vmem>>, vector<8x1xf32>
      tpu.vector_store %arg12[%c0_148, %c134], %147 {strides = array<i32>} : memref<8x140xf32, #tpu.memory_space<vmem>>, vector<8x1xf32>,
    } else {
    }
    %c1_115 = arith.constant 1 : index
    %c0_116 = arith.constant 0 : index
    %c0_117 = arith.constant 0 : index
    %c0_118 = arith.constant 0 : index
    %122 = vector.load %arg7[%c1_115, %c0_116, %c0_117, %c0_118] : memref<2x3x8x8xf32, #tpu.memory_space<vmem>>, vector<1x1x8x8xf32>
    %123 = vector.shape_cast %122 : vector<1x1x8x8xf32> to vector<8x8xf32>
    %c0_119 = arith.constant 0 : index
    %c5_120 = arith.constant 5 : index
    %124 = vector.load %arg12[%c0_119, %c5_120] : memref<8x140xf32, #tpu.memory_space<vmem>>, vector<8x128xf32>
    %cst_121 = arith.constant dense<0.000000e+00> : vector<8x128xf32>
    %125 = tpu.matmul %123, %124, %cst_121 {dimension_numbers = #tpu.dot_dimension_numbers<[1], [0], [0], [1], [0, 0, 1, 1], [], []>} : vector<8x8xf32>, vector<8x128xf32>, vector<8x128xf32> -> vector<8x128xf32>
    %c1_122 = arith.constant 1 : index
    %c1_123 = arith.constant 1 : index
    %c0_124 = arith.constant 0 : index
    %c0_125 = arith.constant 0 : index
    %126 = vector.load %arg7[%c1_122, %c1_123, %c0_124, %c0_125] : memref<2x3x8x8xf32, #tpu.memory_space<vmem>>, vector<1x1x8x8xf32>
    %127 = vector.shape_cast %126 : vector<1x1x8x8xf32> to vector<8x8xf32>
    %c0_126 = arith.constant 0 : index
    %c6_127 = arith.constant 6 : index
    %128 = vector.load %arg12[%c0_126, %c6_127] : memref<8x140xf32, #tpu.memory_space<vmem>>, vector<8x128xf32>
    %cst_128 = arith.constant dense<0.000000e+00> : vector<8x128xf32>
    %129 = tpu.matmul %127, %128, %cst_128 {dimension_numbers = #tpu.dot_dimension_numbers<[1], [0], [0], [1], [0, 0, 1, 1], [], []>} : vector<8x8xf32>, vector<8x128xf32>, vector<8x128xf32> -> vector<8x128xf32>
    %130 = arith.addf %125, %129 : vector<8x128xf32>
    %c1_129 = arith.constant 1 : index
    %c2_130 = arith.constant 2 : index
    %c0_131 = arith.constant 0 : index
    %c0_132 = arith.constant 0 : index
    %131 = vector.load %arg7[%c1_129, %c2_130, %c0_131, %c0_132] : memref<2x3x8x8xf32, #tpu.memory_space<vmem>>, vector<1x1x8x8xf32>
    %132 = vector.shape_cast %131 : vector<1x1x8x8xf32> to vector<8x8xf32>
    %c0_133 = arith.constant 0 : index
    %c7 = arith.constant 7 : index
    %133 = vector.load %arg12[%c0_133, %c7] : memref<8x140xf32, #tpu.memory_space<vmem>>, vector<8x128xf32>
    %cst_134 = arith.constant dense<0.000000e+00> : vector<8x128xf32>
    %134 = tpu.matmul %132, %133, %cst_134 {dimension_numbers = #tpu.dot_dimension_numbers<[1], [0], [0], [1], [0, 0, 1, 1], [], []>} : vector<8x8xf32>, vector<8x128xf32>, vector<8x128xf32> -> vector<8x128xf32>
    %135 = arith.addf %130, %134 : vector<8x128xf32>
    %c1_135 = arith.constant 1 : index
    %c0_136 = arith.constant 0 : index
    %c0_137 = arith.constant 0 : index
    %136 = vector.load %arg8[%c1_135, %c0_136, %c0_137] : memref<2x8x1xf32, #tpu.memory_space<vmem>>, vector<1x8x1xf32>
    %137 = vector.shape_cast %136 : vector<1x8x1xf32> to vector<8x1xf32>
    %138 = vector.broadcast %137 : vector<8x1xf32> to vector<8x128xf32>
    %139 = arith.addf %135, %138 : vector<8x128xf32>
    %c0_138 = arith.constant 0 : index
    %c6_139 = arith.constant 6 : index
    %140 = vector.load %arg10[%c0_138, %c6_139] : memref<8x140xf32, #tpu.memory_space<vmem>>, vector<8x128xf32>
    %141 = arith.addf %139, %140 : vector<8x128xf32>
    %c0_140 = arith.constant 0 : index
    %c6_141 = arith.constant 6 : index
    %142 = vector.load %arg10[%c0_140, %c6_141] : memref<8x140xf32, #tpu.memory_space<vmem>>, vector<8x128xf32>
    tpu.vector_store %arg10[%c0_140, %c6_141], %141 {strides = array<i32>} : memref<8x140xf32, #tpu.memory_space<vmem>>, vector<8x128xf32>,
    %c0_142 = arith.constant 0 : index
    %c6_143 = arith.constant 6 : index
    %143 = vector.load %arg10[%c0_142, %c6_143] : memref<8x140xf32, #tpu.memory_space<vmem>>, vector<8x128xf32>
    %c0_144 = arith.constant 0 : index
    %c0_145 = arith.constant 0 : index
    %c0_146 = arith.constant 0 : index
    %144 = vector.load %arg9[%c0_144, %c0_145, %c0_146] : memref<1x8x128xf32, #tpu.memory_space<vmem>>, vector<1x8x128xf32>
    %145 = vector.shape_cast %144 : vector<1x8x128xf32> to vector<8x128xf32>
    %146 = vector.shape_cast %143 : vector<8x128xf32> to vector<1x8x128xf32>
    tpu.vector_store %arg9[%c0_144, %c0_145, %c0_146], %146 {strides = array<i32>} : memref<1x8x128xf32, #tpu.memory_space<vmem>>, vector<1x8x128xf32>,
    return
  }
  func.func @transform_0(%arg0: i32, %arg1: i32) -> (i32, i32, i32) {
    %c1_i32 = arith.constant 1 : i32
    %0 = arith.subi %arg1, %c1_i32 : i32
    %c0_i32 = arith.constant 0 : i32
    %1 = arith.maxsi %0, %c0_i32 : i32
    %c0_i32_0 = arith.constant 0 : i32
    %c0_i32_1 = arith.constant 0 : i32
    return %arg0, %c0_i32_0, %1 : i32, i32, i32
  }
  func.func @transform_1(%arg0: i32, %arg1: i32) -> (i32, i32, i32) {
    %c0_i32 = arith.constant 0 : i32
    %c0_i32_0 = arith.constant 0 : i32
    return %arg0, %c0_i32, %arg1 : i32, i32, i32
  }
  func.func @transform_2(%arg0: i32, %arg1: i32) -> (i32, i32, i32) {
    %c1_i32 = arith.constant 1 : i32
    %0 = arith.addi %arg1, %c1_i32 : i32
    %c1_i32_0 = arith.constant 1 : i32
    %1 = arith.minsi %0, %c1_i32_0 : i32
    %c0_i32 = arith.constant 0 : i32
    %c0_i32_1 = arith.constant 0 : i32
    return %arg0, %c0_i32, %1 : i32, i32, i32
  }
  func.func @transform_3(%arg0: i32, %arg1: i32) -> (i32, i32, i32, i32) {
    %c0_i32 = arith.constant 0 : i32
    %c0_i32_0 = arith.constant 0 : i32
    %c0_i32_1 = arith.constant 0 : i32
    %c0_i32_2 = arith.constant 0 : i32
    %c0_i32_3 = arith.constant 0 : i32
    return %c0_i32, %c0_i32_0, %c0_i32_1, %c0_i32_2 : i32, i32, i32, i32
  }
  func.func @transform_4(%arg0: i32, %arg1: i32) -> (i32, i32, i32) {
    %c0_i32 = arith.constant 0 : i32
    %c0_i32_0 = arith.constant 0 : i32
    %c0_i32_1 = arith.constant 0 : i32
    %c0_i32_2 = arith.constant 0 : i32
    return %c0_i32, %c0_i32_0, %c0_i32_1 : i32, i32, i32
  }
  func.func @transform_5(%arg0: i32, %arg1: i32) -> (i32, i32, i32, i32) {
    %c0_i32 = arith.constant 0 : i32
    %c0_i32_0 = arith.constant 0 : i32
    %c0_i32_1 = arith.constant 0 : i32
    %c0_i32_2 = arith.constant 0 : i32
    %c0_i32_3 = arith.constant 0 : i32
    return %c0_i32, %c0_i32_0, %c0_i32_1, %c0_i32_2 : i32, i32, i32, i32
  }
  func.func @transform_6(%arg0: i32, %arg1: i32) -> (i32, i32, i32) {
    %c0_i32 = arith.constant 0 : i32
    %c0_i32_0 = arith.constant 0 : i32
    %c0_i32_1 = arith.constant 0 : i32
    %c0_i32_2 = arith.constant 0 : i32
    return %c0_i32, %c0_i32_0, %c0_i32_1 : i32, i32, i32
  }
  func.func @transform_7(%arg0: i32, %arg1: i32) -> (i32, i32, i32) {
    %c0_i32 = arith.constant 0 : i32
    %c0_i32_0 = arith.constant 0 : i32
    return %arg0, %c0_i32, %arg1 : i32, i32, i32
  }
}

module attributes {stable_mosaic.version = 11 : i64} {
  func.func @_mrf_block_kernel(%arg0: i32, %arg1: i32, %arg2: memref<1x8x128xf32, #tpu.memory_space<vmem>>, %arg3: memref<1x8x128xf32, #tpu.memory_space<vmem>>, %arg4: memref<1x8x128xf32, #tpu.memory_space<vmem>>, %arg5: memref<2x5x8x8xf32, #tpu.memory_space<vmem>>, %arg6: memref<2x8x1xf32, #tpu.memory_space<vmem>>, %arg7: memref<2x5x8x8xf32, #tpu.memory_space<vmem>>, %arg8: memref<2x8x1xf32, #tpu.memory_space<vmem>>, %arg9: memref<1x8x128xf32, #tpu.memory_space<vmem>>, %arg10: memref<1x8x128xf32, #tpu.memory_space<vmem>>, %arg11: memref<8x152xf32, #tpu.memory_space<vmem>>, %arg12: memref<8x152xf32, #tpu.memory_space<vmem>>, %arg13: memref<8x152xf32, #tpu.memory_space<vmem>>) attributes {dimension_semantics = [#tpu.dimension_semantics<parallel>, #tpu.dimension_semantics<parallel>], iteration_bounds = array<i64: 2, 2>, scalar_prefetch = 0 : i64, scratch_operands = 3 : i64, tpu.core_type = #tpu.core_type<tc>, window_params = [{transform_indices = @transform_0, window_bounds = array<i64: 1, 8, 128>}, {transform_indices = @transform_1, window_bounds = array<i64: 1, 8, 128>}, {transform_indices = @transform_2, window_bounds = array<i64: 1, 8, 128>}, {pipeline_mode = #tpu.pipeline_mode<synchronous>, transform_indices = @transform_3, window_bounds = array<i64: 2, 5, 8, 8>}, {pipeline_mode = #tpu.pipeline_mode<synchronous>, transform_indices = @transform_4, window_bounds = array<i64: 2, 8, 1>}, {pipeline_mode = #tpu.pipeline_mode<synchronous>, transform_indices = @transform_5, window_bounds = array<i64: 2, 5, 8, 8>}, {pipeline_mode = #tpu.pipeline_mode<synchronous>, transform_indices = @transform_6, window_bounds = array<i64: 2, 8, 1>}, {transform_indices = @transform_7, window_bounds = array<i64: 1, 8, 128>}, {transform_indices = @transform_8, window_bounds = array<i64: 1, 8, 128>}]} {
    %c0 = arith.constant 0 : index
    %c0_0 = arith.constant 0 : index
    %c0_1 = arith.constant 0 : index
    %0 = vector.load %arg3[%c0, %c0_0, %c0_1] : memref<1x8x128xf32, #tpu.memory_space<vmem>>, vector<1x8x128xf32>
    %1 = vector.shape_cast %0 : vector<1x8x128xf32> to vector<8x128xf32>
    %c0_2 = arith.constant 0 : index
    %c12 = arith.constant 12 : index
    %2 = vector.load %arg11[%c0_2, %c12] : memref<8x152xf32, #tpu.memory_space<vmem>>, vector<8x128xf32>
    tpu.vector_store %arg11[%c0_2, %c12], %1 {strides = array<i32>} : memref<8x152xf32, #tpu.memory_space<vmem>>, vector<8x128xf32>,
    %c0_i32 = arith.constant 0 : i32
    %3 = arith.cmpi eq, %arg1, %c0_i32 : i32
    %4 = arith.extui %3 : i1 to i32
    %c0_i32_3 = arith.constant 0 : i32
    %5 = arith.cmpi ne, %4, %c0_i32_3 : i32
    scf.if %5 {
      %cst_200 = arith.constant 0.000000e+00 : f32
      %190 = vector.broadcast %cst_200 : f32 to vector<8x12xf32>
      %c0_201 = arith.constant 0 : index
      %c0_202 = arith.constant 0 : index
      %191 = vector.load %arg11[%c0_201, %c0_202] : memref<8x152xf32, #tpu.memory_space<vmem>>, vector<8x12xf32>
      tpu.vector_store %arg11[%c0_201, %c0_202], %190 {strides = array<i32>} : memref<8x152xf32, #tpu.memory_space<vmem>>, vector<8x12xf32>,
    } else {
    }
    %c1_i32 = arith.constant 1 : i32
    %6 = arith.cmpi eq, %arg1, %c1_i32 : i32
    %7 = arith.extui %6 : i1 to i32
    %c0_i32_4 = arith.constant 0 : i32
    %8 = arith.cmpi ne, %7, %c0_i32_4 : i32
    scf.if %8 {
      %cst_200 = arith.constant 0.000000e+00 : f32
      %190 = vector.broadcast %cst_200 : f32 to vector<8x12xf32>
      %c0_201 = arith.constant 0 : index
      %c140 = arith.constant 140 : index
      %191 = vector.load %arg11[%c0_201, %c140] : memref<8x152xf32, #tpu.memory_space<vmem>>, vector<8x12xf32>
      tpu.vector_store %arg11[%c0_201, %c140], %190 {strides = array<i32>} : memref<8x152xf32, #tpu.memory_space<vmem>>, vector<8x12xf32>,
    } else {
    }
    %c0_i32_5 = arith.constant 0 : i32
    %9 = arith.cmpi sgt, %arg1, %c0_i32_5 : i32
    %10 = arith.extui %9 : i1 to i32
    %c0_i32_6 = arith.constant 0 : i32
    %11 = arith.cmpi ne, %10, %c0_i32_6 : i32
    scf.if %11 {
      %c0_200 = arith.constant 0 : index
      %c0_201 = arith.constant 0 : index
      %c116 = arith.constant 116 : index
      %190 = vector.load %arg2[%c0_200, %c0_201, %c116] : memref<1x8x128xf32, #tpu.memory_space<vmem>>, vector<1x8x12xf32>
      %191 = vector.shape_cast %190 : vector<1x8x12xf32> to vector<8x12xf32>
      %c0_202 = arith.constant 0 : index
      %c0_203 = arith.constant 0 : index
      %192 = vector.load %arg11[%c0_202, %c0_203] : memref<8x152xf32, #tpu.memory_space<vmem>>, vector<8x12xf32>
      tpu.vector_store %arg11[%c0_202, %c0_203], %191 {strides = array<i32>} : memref<8x152xf32, #tpu.memory_space<vmem>>, vector<8x12xf32>,
    } else {
    }
    %c1_i32_7 = arith.constant 1 : i32
    %12 = arith.cmpi slt, %arg1, %c1_i32_7 : i32
    %13 = arith.extui %12 : i1 to i32
    %c0_i32_8 = arith.constant 0 : i32
    %14 = arith.cmpi ne, %13, %c0_i32_8 : i32
    scf.if %14 {
      %c0_200 = arith.constant 0 : index
      %c0_201 = arith.constant 0 : index
      %c0_202 = arith.constant 0 : index
      %190 = vector.load %arg4[%c0_200, %c0_201, %c0_202] : memref<1x8x128xf32, #tpu.memory_space<vmem>>, vector<1x8x12xf32>
      %191 = vector.shape_cast %190 : vector<1x8x12xf32> to vector<8x12xf32>
      %c0_203 = arith.constant 0 : index
      %c140 = arith.constant 140 : index
      %192 = vector.load %arg11[%c0_203, %c140] : memref<8x152xf32, #tpu.memory_space<vmem>>, vector<8x12xf32>
      tpu.vector_store %arg11[%c0_203, %c140], %191 {strides = array<i32>} : memref<8x152xf32, #tpu.memory_space<vmem>>, vector<8x12xf32>,
    } else {
    }
    %c0_9 = arith.constant 0 : index
    %c0_10 = arith.constant 0 : index
    %15 = vector.load %arg11[%c0_9, %c0_10] : memref<8x152xf32, #tpu.memory_space<vmem>>, vector<8x152xf32>
    %cst = arith.constant 0.000000e+00 : f32
    %16 = vector.broadcast %cst : f32 to vector<8x152xf32>
    %17 = arith.cmpf ogt, %15, %16 : vector<8x152xf32>
    %cst_11 = arith.constant 1.000000e-01 : f32
    %18 = vector.broadcast %cst_11 : f32 to vector<8x152xf32>
    %19 = arith.mulf %18, %15 : vector<8x152xf32>
    %20 = arith.select %17, %15, %19 : vector<8x152xi1>, vector<8x152xf32>
    %c0_12 = arith.constant 0 : index
    %c0_13 = arith.constant 0 : index
    %21 = vector.load %arg12[%c0_12, %c0_13] : memref<8x152xf32, #tpu.memory_space<vmem>>, vector<8x152xf32>
    tpu.vector_store %arg12[%c0_12, %c0_13], %20 {strides = array<i32>} : memref<8x152xf32, #tpu.memory_space<vmem>>, vector<8x152xf32>,
    %c0_i32_14 = arith.constant 0 : i32
    %22 = arith.cmpi eq, %arg1, %c0_i32_14 : i32
    %23 = arith.extui %22 : i1 to i32
    %c0_i32_15 = arith.constant 0 : i32
    %24 = arith.cmpi ne, %23, %c0_i32_15 : i32
    scf.if %24 {
      %cst_200 = arith.constant 0.000000e+00 : f32
      %190 = vector.broadcast %cst_200 : f32 to vector<8x12xf32>
      %c0_201 = arith.constant 0 : index
      %c0_202 = arith.constant 0 : index
      %191 = vector.load %arg12[%c0_201, %c0_202] : memref<8x152xf32, #tpu.memory_space<vmem>>, vector<8x12xf32>
      tpu.vector_store %arg12[%c0_201, %c0_202], %190 {strides = array<i32>} : memref<8x152xf32, #tpu.memory_space<vmem>>, vector<8x12xf32>,
    } else {
    }
    %c1_i32_16 = arith.constant 1 : i32
    %25 = arith.cmpi eq, %arg1, %c1_i32_16 : i32
    %26 = arith.extui %25 : i1 to i32
    %c0_i32_17 = arith.constant 0 : i32
    %27 = arith.cmpi ne, %26, %c0_i32_17 : i32
    scf.if %27 {
      %cst_200 = arith.constant 0.000000e+00 : f32
      %190 = vector.broadcast %cst_200 : f32 to vector<8x12xf32>
      %c0_201 = arith.constant 0 : index
      %c140 = arith.constant 140 : index
      %191 = vector.load %arg12[%c0_201, %c140] : memref<8x152xf32, #tpu.memory_space<vmem>>, vector<8x12xf32>
      tpu.vector_store %arg12[%c0_201, %c140], %190 {strides = array<i32>} : memref<8x152xf32, #tpu.memory_space<vmem>>, vector<8x12xf32>,
    } else {
    }
    %c0_18 = arith.constant 0 : index
    %c0_19 = arith.constant 0 : index
    %c0_20 = arith.constant 0 : index
    %c0_21 = arith.constant 0 : index
    %28 = vector.load %arg5[%c0_18, %c0_19, %c0_20, %c0_21] : memref<2x5x8x8xf32, #tpu.memory_space<vmem>>, vector<1x1x8x8xf32>
    %29 = vector.shape_cast %28 : vector<1x1x8x8xf32> to vector<8x8xf32>
    %c0_22 = arith.constant 0 : index
    %c0_23 = arith.constant 0 : index
    %30 = vector.load %arg12[%c0_22, %c0_23] : memref<8x152xf32, #tpu.memory_space<vmem>>, vector<8x148xf32>
    %cst_24 = arith.constant dense<0.000000e+00> : vector<8x148xf32>
    %31 = tpu.matmul %29, %30, %cst_24 {dimension_numbers = #tpu.dot_dimension_numbers<[1], [0], [0], [1], [0, 0, 1, 1], [], []>} : vector<8x8xf32>, vector<8x148xf32>, vector<8x148xf32> -> vector<8x148xf32>
    %c0_25 = arith.constant 0 : index
    %c1 = arith.constant 1 : index
    %c0_26 = arith.constant 0 : index
    %c0_27 = arith.constant 0 : index
    %32 = vector.load %arg5[%c0_25, %c1, %c0_26, %c0_27] : memref<2x5x8x8xf32, #tpu.memory_space<vmem>>, vector<1x1x8x8xf32>
    %33 = vector.shape_cast %32 : vector<1x1x8x8xf32> to vector<8x8xf32>
    %c0_28 = arith.constant 0 : index
    %c1_29 = arith.constant 1 : index
    %34 = vector.load %arg12[%c0_28, %c1_29] : memref<8x152xf32, #tpu.memory_space<vmem>>, vector<8x148xf32>
    %cst_30 = arith.constant dense<0.000000e+00> : vector<8x148xf32>
    %35 = tpu.matmul %33, %34, %cst_30 {dimension_numbers = #tpu.dot_dimension_numbers<[1], [0], [0], [1], [0, 0, 1, 1], [], []>} : vector<8x8xf32>, vector<8x148xf32>, vector<8x148xf32> -> vector<8x148xf32>
    %36 = arith.addf %31, %35 : vector<8x148xf32>
    %c0_31 = arith.constant 0 : index
    %c2 = arith.constant 2 : index
    %c0_32 = arith.constant 0 : index
    %c0_33 = arith.constant 0 : index
    %37 = vector.load %arg5[%c0_31, %c2, %c0_32, %c0_33] : memref<2x5x8x8xf32, #tpu.memory_space<vmem>>, vector<1x1x8x8xf32>
    %38 = vector.shape_cast %37 : vector<1x1x8x8xf32> to vector<8x8xf32>
    %c0_34 = arith.constant 0 : index
    %c2_35 = arith.constant 2 : index
    %39 = vector.load %arg12[%c0_34, %c2_35] : memref<8x152xf32, #tpu.memory_space<vmem>>, vector<8x148xf32>
    %cst_36 = arith.constant dense<0.000000e+00> : vector<8x148xf32>
    %40 = tpu.matmul %38, %39, %cst_36 {dimension_numbers = #tpu.dot_dimension_numbers<[1], [0], [0], [1], [0, 0, 1, 1], [], []>} : vector<8x8xf32>, vector<8x148xf32>, vector<8x148xf32> -> vector<8x148xf32>
    %41 = arith.addf %36, %40 : vector<8x148xf32>
    %c0_37 = arith.constant 0 : index
    %c3 = arith.constant 3 : index
    %c0_38 = arith.constant 0 : index
    %c0_39 = arith.constant 0 : index
    %42 = vector.load %arg5[%c0_37, %c3, %c0_38, %c0_39] : memref<2x5x8x8xf32, #tpu.memory_space<vmem>>, vector<1x1x8x8xf32>
    %43 = vector.shape_cast %42 : vector<1x1x8x8xf32> to vector<8x8xf32>
    %c0_40 = arith.constant 0 : index
    %c3_41 = arith.constant 3 : index
    %44 = vector.load %arg12[%c0_40, %c3_41] : memref<8x152xf32, #tpu.memory_space<vmem>>, vector<8x148xf32>
    %cst_42 = arith.constant dense<0.000000e+00> : vector<8x148xf32>
    %45 = tpu.matmul %43, %44, %cst_42 {dimension_numbers = #tpu.dot_dimension_numbers<[1], [0], [0], [1], [0, 0, 1, 1], [], []>} : vector<8x8xf32>, vector<8x148xf32>, vector<8x148xf32> -> vector<8x148xf32>
    %46 = arith.addf %41, %45 : vector<8x148xf32>
    %c0_43 = arith.constant 0 : index
    %c4 = arith.constant 4 : index
    %c0_44 = arith.constant 0 : index
    %c0_45 = arith.constant 0 : index
    %47 = vector.load %arg5[%c0_43, %c4, %c0_44, %c0_45] : memref<2x5x8x8xf32, #tpu.memory_space<vmem>>, vector<1x1x8x8xf32>
    %48 = vector.shape_cast %47 : vector<1x1x8x8xf32> to vector<8x8xf32>
    %c0_46 = arith.constant 0 : index
    %c4_47 = arith.constant 4 : index
    %49 = vector.load %arg12[%c0_46, %c4_47] : memref<8x152xf32, #tpu.memory_space<vmem>>, vector<8x148xf32>
    %cst_48 = arith.constant dense<0.000000e+00> : vector<8x148xf32>
    %50 = tpu.matmul %48, %49, %cst_48 {dimension_numbers = #tpu.dot_dimension_numbers<[1], [0], [0], [1], [0, 0, 1, 1], [], []>} : vector<8x8xf32>, vector<8x148xf32>, vector<8x148xf32> -> vector<8x148xf32>
    %51 = arith.addf %46, %50 : vector<8x148xf32>
    %c0_49 = arith.constant 0 : index
    %c0_50 = arith.constant 0 : index
    %c0_51 = arith.constant 0 : index
    %52 = vector.load %arg6[%c0_49, %c0_50, %c0_51] : memref<2x8x1xf32, #tpu.memory_space<vmem>>, vector<1x8x1xf32>
    %53 = vector.shape_cast %52 : vector<1x8x1xf32> to vector<8x1xf32>
    %54 = vector.broadcast %53 : vector<8x1xf32> to vector<8x148xf32>
    %55 = arith.addf %51, %54 : vector<8x148xf32>
    %cst_52 = arith.constant 0.000000e+00 : f32
    %56 = vector.broadcast %cst_52 : f32 to vector<8x148xf32>
    %57 = arith.cmpf ogt, %55, %56 : vector<8x148xf32>
    %cst_53 = arith.constant 1.000000e-01 : f32
    %58 = vector.broadcast %cst_53 : f32 to vector<8x148xf32>
    %59 = arith.mulf %58, %55 : vector<8x148xf32>
    %60 = arith.select %57, %55, %59 : vector<8x148xi1>, vector<8x148xf32>
    %c0_54 = arith.constant 0 : index
    %c2_55 = arith.constant 2 : index
    %61 = vector.load %arg13[%c0_54, %c2_55] : memref<8x152xf32, #tpu.memory_space<vmem>>, vector<8x148xf32>
    tpu.vector_store %arg13[%c0_54, %c2_55], %60 {strides = array<i32>} : memref<8x152xf32, #tpu.memory_space<vmem>>, vector<8x148xf32>,
    %c0_i32_56 = arith.constant 0 : i32
    %62 = arith.cmpi eq, %arg1, %c0_i32_56 : i32
    %63 = arith.extui %62 : i1 to i32
    %c0_i32_57 = arith.constant 0 : i32
    %64 = arith.cmpi ne, %63, %c0_i32_57 : i32
    scf.if %64 {
      %cst_200 = arith.constant 0.000000e+00 : f32
      %190 = vector.broadcast %cst_200 : f32 to vector<8x10xf32>
      %c0_201 = arith.constant 0 : index
      %c2_202 = arith.constant 2 : index
      %191 = vector.load %arg13[%c0_201, %c2_202] : memref<8x152xf32, #tpu.memory_space<vmem>>, vector<8x10xf32>
      tpu.vector_store %arg13[%c0_201, %c2_202], %190 {strides = array<i32>} : memref<8x152xf32, #tpu.memory_space<vmem>>, vector<8x10xf32>,
    } else {
    }
    %c1_i32_58 = arith.constant 1 : i32
    %65 = arith.cmpi eq, %arg1, %c1_i32_58 : i32
    %66 = arith.extui %65 : i1 to i32
    %c0_i32_59 = arith.constant 0 : i32
    %67 = arith.cmpi ne, %66, %c0_i32_59 : i32
    scf.if %67 {
      %cst_200 = arith.constant 0.000000e+00 : f32
      %190 = vector.broadcast %cst_200 : f32 to vector<8x10xf32>
      %c0_201 = arith.constant 0 : index
      %c140 = arith.constant 140 : index
      %191 = vector.load %arg13[%c0_201, %c140] : memref<8x152xf32, #tpu.memory_space<vmem>>, vector<8x10xf32>
      tpu.vector_store %arg13[%c0_201, %c140], %190 {strides = array<i32>} : memref<8x152xf32, #tpu.memory_space<vmem>>, vector<8x10xf32>,
    } else {
    }
    %c0_60 = arith.constant 0 : index
    %c0_61 = arith.constant 0 : index
    %c0_62 = arith.constant 0 : index
    %c0_63 = arith.constant 0 : index
    %68 = vector.load %arg7[%c0_60, %c0_61, %c0_62, %c0_63] : memref<2x5x8x8xf32, #tpu.memory_space<vmem>>, vector<1x1x8x8xf32>
    %69 = vector.shape_cast %68 : vector<1x1x8x8xf32> to vector<8x8xf32>
    %c0_64 = arith.constant 0 : index
    %c2_65 = arith.constant 2 : index
    %70 = vector.load %arg13[%c0_64, %c2_65] : memref<8x152xf32, #tpu.memory_space<vmem>>, vector<8x144xf32>
    %cst_66 = arith.constant dense<0.000000e+00> : vector<8x144xf32>
    %71 = tpu.matmul %69, %70, %cst_66 {dimension_numbers = #tpu.dot_dimension_numbers<[1], [0], [0], [1], [0, 0, 1, 1], [], []>} : vector<8x8xf32>, vector<8x144xf32>, vector<8x144xf32> -> vector<8x144xf32>
    %c0_67 = arith.constant 0 : index
    %c1_68 = arith.constant 1 : index
    %c0_69 = arith.constant 0 : index
    %c0_70 = arith.constant 0 : index
    %72 = vector.load %arg7[%c0_67, %c1_68, %c0_69, %c0_70] : memref<2x5x8x8xf32, #tpu.memory_space<vmem>>, vector<1x1x8x8xf32>
    %73 = vector.shape_cast %72 : vector<1x1x8x8xf32> to vector<8x8xf32>
    %c0_71 = arith.constant 0 : index
    %c3_72 = arith.constant 3 : index
    %74 = vector.load %arg13[%c0_71, %c3_72] : memref<8x152xf32, #tpu.memory_space<vmem>>, vector<8x144xf32>
    %cst_73 = arith.constant dense<0.000000e+00> : vector<8x144xf32>
    %75 = tpu.matmul %73, %74, %cst_73 {dimension_numbers = #tpu.dot_dimension_numbers<[1], [0], [0], [1], [0, 0, 1, 1], [], []>} : vector<8x8xf32>, vector<8x144xf32>, vector<8x144xf32> -> vector<8x144xf32>
    %76 = arith.addf %71, %75 : vector<8x144xf32>
    %c0_74 = arith.constant 0 : index
    %c2_75 = arith.constant 2 : index
    %c0_76 = arith.constant 0 : index
    %c0_77 = arith.constant 0 : index
    %77 = vector.load %arg7[%c0_74, %c2_75, %c0_76, %c0_77] : memref<2x5x8x8xf32, #tpu.memory_space<vmem>>, vector<1x1x8x8xf32>
    %78 = vector.shape_cast %77 : vector<1x1x8x8xf32> to vector<8x8xf32>
    %c0_78 = arith.constant 0 : index
    %c4_79 = arith.constant 4 : index
    %79 = vector.load %arg13[%c0_78, %c4_79] : memref<8x152xf32, #tpu.memory_space<vmem>>, vector<8x144xf32>
    %cst_80 = arith.constant dense<0.000000e+00> : vector<8x144xf32>
    %80 = tpu.matmul %78, %79, %cst_80 {dimension_numbers = #tpu.dot_dimension_numbers<[1], [0], [0], [1], [0, 0, 1, 1], [], []>} : vector<8x8xf32>, vector<8x144xf32>, vector<8x144xf32> -> vector<8x144xf32>
    %81 = arith.addf %76, %80 : vector<8x144xf32>
    %c0_81 = arith.constant 0 : index
    %c3_82 = arith.constant 3 : index
    %c0_83 = arith.constant 0 : index
    %c0_84 = arith.constant 0 : index
    %82 = vector.load %arg7[%c0_81, %c3_82, %c0_83, %c0_84] : memref<2x5x8x8xf32, #tpu.memory_space<vmem>>, vector<1x1x8x8xf32>
    %83 = vector.shape_cast %82 : vector<1x1x8x8xf32> to vector<8x8xf32>
    %c0_85 = arith.constant 0 : index
    %c5 = arith.constant 5 : index
    %84 = vector.load %arg13[%c0_85, %c5] : memref<8x152xf32, #tpu.memory_space<vmem>>, vector<8x144xf32>
    %cst_86 = arith.constant dense<0.000000e+00> : vector<8x144xf32>
    %85 = tpu.matmul %83, %84, %cst_86 {dimension_numbers = #tpu.dot_dimension_numbers<[1], [0], [0], [1], [0, 0, 1, 1], [], []>} : vector<8x8xf32>, vector<8x144xf32>, vector<8x144xf32> -> vector<8x144xf32>
    %86 = arith.addf %81, %85 : vector<8x144xf32>
    %c0_87 = arith.constant 0 : index
    %c4_88 = arith.constant 4 : index
    %c0_89 = arith.constant 0 : index
    %c0_90 = arith.constant 0 : index
    %87 = vector.load %arg7[%c0_87, %c4_88, %c0_89, %c0_90] : memref<2x5x8x8xf32, #tpu.memory_space<vmem>>, vector<1x1x8x8xf32>
    %88 = vector.shape_cast %87 : vector<1x1x8x8xf32> to vector<8x8xf32>
    %c0_91 = arith.constant 0 : index
    %c6 = arith.constant 6 : index
    %89 = vector.load %arg13[%c0_91, %c6] : memref<8x152xf32, #tpu.memory_space<vmem>>, vector<8x144xf32>
    %cst_92 = arith.constant dense<0.000000e+00> : vector<8x144xf32>
    %90 = tpu.matmul %88, %89, %cst_92 {dimension_numbers = #tpu.dot_dimension_numbers<[1], [0], [0], [1], [0, 0, 1, 1], [], []>} : vector<8x8xf32>, vector<8x144xf32>, vector<8x144xf32> -> vector<8x144xf32>
    %91 = arith.addf %86, %90 : vector<8x144xf32>
    %c0_93 = arith.constant 0 : index
    %c0_94 = arith.constant 0 : index
    %c0_95 = arith.constant 0 : index
    %92 = vector.load %arg8[%c0_93, %c0_94, %c0_95] : memref<2x8x1xf32, #tpu.memory_space<vmem>>, vector<1x8x1xf32>
    %93 = vector.shape_cast %92 : vector<1x8x1xf32> to vector<8x1xf32>
    %94 = vector.broadcast %93 : vector<8x1xf32> to vector<8x144xf32>
    %95 = arith.addf %91, %94 : vector<8x144xf32>
    %c0_96 = arith.constant 0 : index
    %c4_97 = arith.constant 4 : index
    %96 = vector.load %arg11[%c0_96, %c4_97] : memref<8x152xf32, #tpu.memory_space<vmem>>, vector<8x144xf32>
    %97 = arith.addf %95, %96 : vector<8x144xf32>
    %c0_98 = arith.constant 0 : index
    %c4_99 = arith.constant 4 : index
    %98 = vector.load %arg11[%c0_98, %c4_99] : memref<8x152xf32, #tpu.memory_space<vmem>>, vector<8x144xf32>
    tpu.vector_store %arg11[%c0_98, %c4_99], %97 {strides = array<i32>} : memref<8x152xf32, #tpu.memory_space<vmem>>, vector<8x144xf32>,
    %c0_100 = arith.constant 0 : index
    %c4_101 = arith.constant 4 : index
    %99 = vector.load %arg11[%c0_100, %c4_101] : memref<8x152xf32, #tpu.memory_space<vmem>>, vector<8x144xf32>
    %cst_102 = arith.constant 0.000000e+00 : f32
    %100 = vector.broadcast %cst_102 : f32 to vector<8x144xf32>
    %101 = arith.cmpf ogt, %99, %100 : vector<8x144xf32>
    %cst_103 = arith.constant 1.000000e-01 : f32
    %102 = vector.broadcast %cst_103 : f32 to vector<8x144xf32>
    %103 = arith.mulf %102, %99 : vector<8x144xf32>
    %104 = arith.select %101, %99, %103 : vector<8x144xi1>, vector<8x144xf32>
    %c0_104 = arith.constant 0 : index
    %c4_105 = arith.constant 4 : index
    %105 = vector.load %arg12[%c0_104, %c4_105] : memref<8x152xf32, #tpu.memory_space<vmem>>, vector<8x144xf32>
    tpu.vector_store %arg12[%c0_104, %c4_105], %104 {strides = array<i32>} : memref<8x152xf32, #tpu.memory_space<vmem>>, vector<8x144xf32>,
    %c0_i32_106 = arith.constant 0 : i32
    %106 = arith.cmpi eq, %arg1, %c0_i32_106 : i32
    %107 = arith.extui %106 : i1 to i32
    %c0_i32_107 = arith.constant 0 : i32
    %108 = arith.cmpi ne, %107, %c0_i32_107 : i32
    scf.if %108 {
      %cst_200 = arith.constant 0.000000e+00 : f32
      %190 = vector.broadcast %cst_200 : f32 to vector<8x8xf32>
      %c0_201 = arith.constant 0 : index
      %c4_202 = arith.constant 4 : index
      %191 = vector.load %arg12[%c0_201, %c4_202] : memref<8x152xf32, #tpu.memory_space<vmem>>, vector<8x8xf32>
      tpu.vector_store %arg12[%c0_201, %c4_202], %190 {strides = array<i32>} : memref<8x152xf32, #tpu.memory_space<vmem>>, vector<8x8xf32>,
    } else {
    }
    %c1_i32_108 = arith.constant 1 : i32
    %109 = arith.cmpi eq, %arg1, %c1_i32_108 : i32
    %110 = arith.extui %109 : i1 to i32
    %c0_i32_109 = arith.constant 0 : i32
    %111 = arith.cmpi ne, %110, %c0_i32_109 : i32
    scf.if %111 {
      %cst_200 = arith.constant 0.000000e+00 : f32
      %190 = vector.broadcast %cst_200 : f32 to vector<8x8xf32>
      %c0_201 = arith.constant 0 : index
      %c140 = arith.constant 140 : index
      %191 = vector.load %arg12[%c0_201, %c140] : memref<8x152xf32, #tpu.memory_space<vmem>>, vector<8x8xf32>
      tpu.vector_store %arg12[%c0_201, %c140], %190 {strides = array<i32>} : memref<8x152xf32, #tpu.memory_space<vmem>>, vector<8x8xf32>,
    } else {
    }
    %c1_110 = arith.constant 1 : index
    %c0_111 = arith.constant 0 : index
    %c0_112 = arith.constant 0 : index
    %c0_113 = arith.constant 0 : index
    %112 = vector.load %arg5[%c1_110, %c0_111, %c0_112, %c0_113] : memref<2x5x8x8xf32, #tpu.memory_space<vmem>>, vector<1x1x8x8xf32>
    %113 = vector.shape_cast %112 : vector<1x1x8x8xf32> to vector<8x8xf32>
    %c0_114 = arith.constant 0 : index
    %c4_115 = arith.constant 4 : index
    %114 = vector.load %arg12[%c0_114, %c4_115] : memref<8x152xf32, #tpu.memory_space<vmem>>, vector<8x132xf32>
    %cst_116 = arith.constant dense<0.000000e+00> : vector<8x132xf32>
    %115 = tpu.matmul %113, %114, %cst_116 {dimension_numbers = #tpu.dot_dimension_numbers<[1], [0], [0], [1], [0, 0, 1, 1], [], []>} : vector<8x8xf32>, vector<8x132xf32>, vector<8x132xf32> -> vector<8x132xf32>
    %c1_117 = arith.constant 1 : index
    %c1_118 = arith.constant 1 : index
    %c0_119 = arith.constant 0 : index
    %c0_120 = arith.constant 0 : index
    %116 = vector.load %arg5[%c1_117, %c1_118, %c0_119, %c0_120] : memref<2x5x8x8xf32, #tpu.memory_space<vmem>>, vector<1x1x8x8xf32>
    %117 = vector.shape_cast %116 : vector<1x1x8x8xf32> to vector<8x8xf32>
    %c0_121 = arith.constant 0 : index
    %c7 = arith.constant 7 : index
    %118 = vector.load %arg12[%c0_121, %c7] : memref<8x152xf32, #tpu.memory_space<vmem>>, vector<8x132xf32>
    %cst_122 = arith.constant dense<0.000000e+00> : vector<8x132xf32>
    %119 = tpu.matmul %117, %118, %cst_122 {dimension_numbers = #tpu.dot_dimension_numbers<[1], [0], [0], [1], [0, 0, 1, 1], [], []>} : vector<8x8xf32>, vector<8x132xf32>, vector<8x132xf32> -> vector<8x132xf32>
    %120 = arith.addf %115, %119 : vector<8x132xf32>
    %c1_123 = arith.constant 1 : index
    %c2_124 = arith.constant 2 : index
    %c0_125 = arith.constant 0 : index
    %c0_126 = arith.constant 0 : index
    %121 = vector.load %arg5[%c1_123, %c2_124, %c0_125, %c0_126] : memref<2x5x8x8xf32, #tpu.memory_space<vmem>>, vector<1x1x8x8xf32>
    %122 = vector.shape_cast %121 : vector<1x1x8x8xf32> to vector<8x8xf32>
    %c0_127 = arith.constant 0 : index
    %c10 = arith.constant 10 : index
    %123 = vector.load %arg12[%c0_127, %c10] : memref<8x152xf32, #tpu.memory_space<vmem>>, vector<8x132xf32>
    %cst_128 = arith.constant dense<0.000000e+00> : vector<8x132xf32>
    %124 = tpu.matmul %122, %123, %cst_128 {dimension_numbers = #tpu.dot_dimension_numbers<[1], [0], [0], [1], [0, 0, 1, 1], [], []>} : vector<8x8xf32>, vector<8x132xf32>, vector<8x132xf32> -> vector<8x132xf32>
    %125 = arith.addf %120, %124 : vector<8x132xf32>
    %c1_129 = arith.constant 1 : index
    %c3_130 = arith.constant 3 : index
    %c0_131 = arith.constant 0 : index
    %c0_132 = arith.constant 0 : index
    %126 = vector.load %arg5[%c1_129, %c3_130, %c0_131, %c0_132] : memref<2x5x8x8xf32, #tpu.memory_space<vmem>>, vector<1x1x8x8xf32>
    %127 = vector.shape_cast %126 : vector<1x1x8x8xf32> to vector<8x8xf32>
    %c0_133 = arith.constant 0 : index
    %c13 = arith.constant 13 : index
    %128 = vector.load %arg12[%c0_133, %c13] : memref<8x152xf32, #tpu.memory_space<vmem>>, vector<8x132xf32>
    %cst_134 = arith.constant dense<0.000000e+00> : vector<8x132xf32>
    %129 = tpu.matmul %127, %128, %cst_134 {dimension_numbers = #tpu.dot_dimension_numbers<[1], [0], [0], [1], [0, 0, 1, 1], [], []>} : vector<8x8xf32>, vector<8x132xf32>, vector<8x132xf32> -> vector<8x132xf32>
    %130 = arith.addf %125, %129 : vector<8x132xf32>
    %c1_135 = arith.constant 1 : index
    %c4_136 = arith.constant 4 : index
    %c0_137 = arith.constant 0 : index
    %c0_138 = arith.constant 0 : index
    %131 = vector.load %arg5[%c1_135, %c4_136, %c0_137, %c0_138] : memref<2x5x8x8xf32, #tpu.memory_space<vmem>>, vector<1x1x8x8xf32>
    %132 = vector.shape_cast %131 : vector<1x1x8x8xf32> to vector<8x8xf32>
    %c0_139 = arith.constant 0 : index
    %c16 = arith.constant 16 : index
    %133 = vector.load %arg12[%c0_139, %c16] : memref<8x152xf32, #tpu.memory_space<vmem>>, vector<8x132xf32>
    %cst_140 = arith.constant dense<0.000000e+00> : vector<8x132xf32>
    %134 = tpu.matmul %132, %133, %cst_140 {dimension_numbers = #tpu.dot_dimension_numbers<[1], [0], [0], [1], [0, 0, 1, 1], [], []>} : vector<8x8xf32>, vector<8x132xf32>, vector<8x132xf32> -> vector<8x132xf32>
    %135 = arith.addf %130, %134 : vector<8x132xf32>
    %c1_141 = arith.constant 1 : index
    %c0_142 = arith.constant 0 : index
    %c0_143 = arith.constant 0 : index
    %136 = vector.load %arg6[%c1_141, %c0_142, %c0_143] : memref<2x8x1xf32, #tpu.memory_space<vmem>>, vector<1x8x1xf32>
    %137 = vector.shape_cast %136 : vector<1x8x1xf32> to vector<8x1xf32>
    %138 = vector.broadcast %137 : vector<8x1xf32> to vector<8x132xf32>
    %139 = arith.addf %135, %138 : vector<8x132xf32>
    %cst_144 = arith.constant 0.000000e+00 : f32
    %140 = vector.broadcast %cst_144 : f32 to vector<8x132xf32>
    %141 = arith.cmpf ogt, %139, %140 : vector<8x132xf32>
    %cst_145 = arith.constant 1.000000e-01 : f32
    %142 = vector.broadcast %cst_145 : f32 to vector<8x132xf32>
    %143 = arith.mulf %142, %139 : vector<8x132xf32>
    %144 = arith.select %141, %139, %143 : vector<8x132xi1>, vector<8x132xf32>
    %c0_146 = arith.constant 0 : index
    %c10_147 = arith.constant 10 : index
    %145 = vector.load %arg13[%c0_146, %c10_147] : memref<8x152xf32, #tpu.memory_space<vmem>>, vector<8x132xf32>
    tpu.vector_store %arg13[%c0_146, %c10_147], %144 {strides = array<i32>} : memref<8x152xf32, #tpu.memory_space<vmem>>, vector<8x132xf32>,
    %c0_i32_148 = arith.constant 0 : i32
    %146 = arith.cmpi eq, %arg1, %c0_i32_148 : i32
    %147 = arith.extui %146 : i1 to i32
    %c0_i32_149 = arith.constant 0 : i32
    %148 = arith.cmpi ne, %147, %c0_i32_149 : i32
    scf.if %148 {
      %cst_200 = arith.constant 0.000000e+00 : f32
      %190 = vector.broadcast %cst_200 : f32 to vector<8x2xf32>
      %c0_201 = arith.constant 0 : index
      %c10_202 = arith.constant 10 : index
      %191 = vector.load %arg13[%c0_201, %c10_202] : memref<8x152xf32, #tpu.memory_space<vmem>>, vector<8x2xf32>
      tpu.vector_store %arg13[%c0_201, %c10_202], %190 {strides = array<i32>} : memref<8x152xf32, #tpu.memory_space<vmem>>, vector<8x2xf32>,
    } else {
    }
    %c1_i32_150 = arith.constant 1 : i32
    %149 = arith.cmpi eq, %arg1, %c1_i32_150 : i32
    %150 = arith.extui %149 : i1 to i32
    %c0_i32_151 = arith.constant 0 : i32
    %151 = arith.cmpi ne, %150, %c0_i32_151 : i32
    scf.if %151 {
      %cst_200 = arith.constant 0.000000e+00 : f32
      %190 = vector.broadcast %cst_200 : f32 to vector<8x2xf32>
      %c0_201 = arith.constant 0 : index
      %c140 = arith.constant 140 : index
      %191 = vector.load %arg13[%c0_201, %c140] : memref<8x152xf32, #tpu.memory_space<vmem>>, vector<8x2xf32>
      tpu.vector_store %arg13[%c0_201, %c140], %190 {strides = array<i32>} : memref<8x152xf32, #tpu.memory_space<vmem>>, vector<8x2xf32>,
    } else {
    }
    %c1_152 = arith.constant 1 : index
    %c0_153 = arith.constant 0 : index
    %c0_154 = arith.constant 0 : index
    %c0_155 = arith.constant 0 : index
    %152 = vector.load %arg7[%c1_152, %c0_153, %c0_154, %c0_155] : memref<2x5x8x8xf32, #tpu.memory_space<vmem>>, vector<1x1x8x8xf32>
    %153 = vector.shape_cast %152 : vector<1x1x8x8xf32> to vector<8x8xf32>
    %c0_156 = arith.constant 0 : index
    %c10_157 = arith.constant 10 : index
    %154 = vector.load %arg13[%c0_156, %c10_157] : memref<8x152xf32, #tpu.memory_space<vmem>>, vector<8x128xf32>
    %cst_158 = arith.constant dense<0.000000e+00> : vector<8x128xf32>
    %155 = tpu.matmul %153, %154, %cst_158 {dimension_numbers = #tpu.dot_dimension_numbers<[1], [0], [0], [1], [0, 0, 1, 1], [], []>} : vector<8x8xf32>, vector<8x128xf32>, vector<8x128xf32> -> vector<8x128xf32>
    %c1_159 = arith.constant 1 : index
    %c1_160 = arith.constant 1 : index
    %c0_161 = arith.constant 0 : index
    %c0_162 = arith.constant 0 : index
    %156 = vector.load %arg7[%c1_159, %c1_160, %c0_161, %c0_162] : memref<2x5x8x8xf32, #tpu.memory_space<vmem>>, vector<1x1x8x8xf32>
    %157 = vector.shape_cast %156 : vector<1x1x8x8xf32> to vector<8x8xf32>
    %c0_163 = arith.constant 0 : index
    %c11 = arith.constant 11 : index
    %158 = vector.load %arg13[%c0_163, %c11] : memref<8x152xf32, #tpu.memory_space<vmem>>, vector<8x128xf32>
    %cst_164 = arith.constant dense<0.000000e+00> : vector<8x128xf32>
    %159 = tpu.matmul %157, %158, %cst_164 {dimension_numbers = #tpu.dot_dimension_numbers<[1], [0], [0], [1], [0, 0, 1, 1], [], []>} : vector<8x8xf32>, vector<8x128xf32>, vector<8x128xf32> -> vector<8x128xf32>
    %160 = arith.addf %155, %159 : vector<8x128xf32>
    %c1_165 = arith.constant 1 : index
    %c2_166 = arith.constant 2 : index
    %c0_167 = arith.constant 0 : index
    %c0_168 = arith.constant 0 : index
    %161 = vector.load %arg7[%c1_165, %c2_166, %c0_167, %c0_168] : memref<2x5x8x8xf32, #tpu.memory_space<vmem>>, vector<1x1x8x8xf32>
    %162 = vector.shape_cast %161 : vector<1x1x8x8xf32> to vector<8x8xf32>
    %c0_169 = arith.constant 0 : index
    %c12_170 = arith.constant 12 : index
    %163 = vector.load %arg13[%c0_169, %c12_170] : memref<8x152xf32, #tpu.memory_space<vmem>>, vector<8x128xf32>
    %cst_171 = arith.constant dense<0.000000e+00> : vector<8x128xf32>
    %164 = tpu.matmul %162, %163, %cst_171 {dimension_numbers = #tpu.dot_dimension_numbers<[1], [0], [0], [1], [0, 0, 1, 1], [], []>} : vector<8x8xf32>, vector<8x128xf32>, vector<8x128xf32> -> vector<8x128xf32>
    %165 = arith.addf %160, %164 : vector<8x128xf32>
    %c1_172 = arith.constant 1 : index
    %c3_173 = arith.constant 3 : index
    %c0_174 = arith.constant 0 : index
    %c0_175 = arith.constant 0 : index
    %166 = vector.load %arg7[%c1_172, %c3_173, %c0_174, %c0_175] : memref<2x5x8x8xf32, #tpu.memory_space<vmem>>, vector<1x1x8x8xf32>
    %167 = vector.shape_cast %166 : vector<1x1x8x8xf32> to vector<8x8xf32>
    %c0_176 = arith.constant 0 : index
    %c13_177 = arith.constant 13 : index
    %168 = vector.load %arg13[%c0_176, %c13_177] : memref<8x152xf32, #tpu.memory_space<vmem>>, vector<8x128xf32>
    %cst_178 = arith.constant dense<0.000000e+00> : vector<8x128xf32>
    %169 = tpu.matmul %167, %168, %cst_178 {dimension_numbers = #tpu.dot_dimension_numbers<[1], [0], [0], [1], [0, 0, 1, 1], [], []>} : vector<8x8xf32>, vector<8x128xf32>, vector<8x128xf32> -> vector<8x128xf32>
    %170 = arith.addf %165, %169 : vector<8x128xf32>
    %c1_179 = arith.constant 1 : index
    %c4_180 = arith.constant 4 : index
    %c0_181 = arith.constant 0 : index
    %c0_182 = arith.constant 0 : index
    %171 = vector.load %arg7[%c1_179, %c4_180, %c0_181, %c0_182] : memref<2x5x8x8xf32, #tpu.memory_space<vmem>>, vector<1x1x8x8xf32>
    %172 = vector.shape_cast %171 : vector<1x1x8x8xf32> to vector<8x8xf32>
    %c0_183 = arith.constant 0 : index
    %c14 = arith.constant 14 : index
    %173 = vector.load %arg13[%c0_183, %c14] : memref<8x152xf32, #tpu.memory_space<vmem>>, vector<8x128xf32>
    %cst_184 = arith.constant dense<0.000000e+00> : vector<8x128xf32>
    %174 = tpu.matmul %172, %173, %cst_184 {dimension_numbers = #tpu.dot_dimension_numbers<[1], [0], [0], [1], [0, 0, 1, 1], [], []>} : vector<8x8xf32>, vector<8x128xf32>, vector<8x128xf32> -> vector<8x128xf32>
    %175 = arith.addf %170, %174 : vector<8x128xf32>
    %c1_185 = arith.constant 1 : index
    %c0_186 = arith.constant 0 : index
    %c0_187 = arith.constant 0 : index
    %176 = vector.load %arg8[%c1_185, %c0_186, %c0_187] : memref<2x8x1xf32, #tpu.memory_space<vmem>>, vector<1x8x1xf32>
    %177 = vector.shape_cast %176 : vector<1x8x1xf32> to vector<8x1xf32>
    %178 = vector.broadcast %177 : vector<8x1xf32> to vector<8x128xf32>
    %179 = arith.addf %175, %178 : vector<8x128xf32>
    %c0_188 = arith.constant 0 : index
    %c12_189 = arith.constant 12 : index
    %180 = vector.load %arg11[%c0_188, %c12_189] : memref<8x152xf32, #tpu.memory_space<vmem>>, vector<8x128xf32>
    %181 = arith.addf %179, %180 : vector<8x128xf32>
    %c0_190 = arith.constant 0 : index
    %c12_191 = arith.constant 12 : index
    %182 = vector.load %arg11[%c0_190, %c12_191] : memref<8x152xf32, #tpu.memory_space<vmem>>, vector<8x128xf32>
    tpu.vector_store %arg11[%c0_190, %c12_191], %181 {strides = array<i32>} : memref<8x152xf32, #tpu.memory_space<vmem>>, vector<8x128xf32>,
    %c0_192 = arith.constant 0 : index
    %c12_193 = arith.constant 12 : index
    %183 = vector.load %arg11[%c0_192, %c12_193] : memref<8x152xf32, #tpu.memory_space<vmem>>, vector<8x128xf32>
    %c0_194 = arith.constant 0 : index
    %c0_195 = arith.constant 0 : index
    %c0_196 = arith.constant 0 : index
    %184 = vector.load %arg9[%c0_194, %c0_195, %c0_196] : memref<1x8x128xf32, #tpu.memory_space<vmem>>, vector<1x8x128xf32>
    %185 = vector.shape_cast %184 : vector<1x8x128xf32> to vector<8x128xf32>
    %186 = arith.addf %183, %185 : vector<8x128xf32>
    %c0_197 = arith.constant 0 : index
    %c0_198 = arith.constant 0 : index
    %c0_199 = arith.constant 0 : index
    %187 = vector.load %arg10[%c0_197, %c0_198, %c0_199] : memref<1x8x128xf32, #tpu.memory_space<vmem>>, vector<1x8x128xf32>
    %188 = vector.shape_cast %187 : vector<1x8x128xf32> to vector<8x128xf32>
    %189 = vector.shape_cast %186 : vector<8x128xf32> to vector<1x8x128xf32>
    tpu.vector_store %arg10[%c0_197, %c0_198, %c0_199], %189 {strides = array<i32>} : memref<1x8x128xf32, #tpu.memory_space<vmem>>, vector<1x8x128xf32>,
    return
  }
  func.func @transform_0(%arg0: i32, %arg1: i32) -> (i32, i32, i32) {
    %c1_i32 = arith.constant 1 : i32
    %0 = arith.subi %arg1, %c1_i32 : i32
    %c0_i32 = arith.constant 0 : i32
    %1 = arith.maxsi %0, %c0_i32 : i32
    %c0_i32_0 = arith.constant 0 : i32
    %c0_i32_1 = arith.constant 0 : i32
    return %arg0, %c0_i32_0, %1 : i32, i32, i32
  }
  func.func @transform_1(%arg0: i32, %arg1: i32) -> (i32, i32, i32) {
    %c0_i32 = arith.constant 0 : i32
    %c0_i32_0 = arith.constant 0 : i32
    return %arg0, %c0_i32, %arg1 : i32, i32, i32
  }
  func.func @transform_2(%arg0: i32, %arg1: i32) -> (i32, i32, i32) {
    %c1_i32 = arith.constant 1 : i32
    %0 = arith.addi %arg1, %c1_i32 : i32
    %c1_i32_0 = arith.constant 1 : i32
    %1 = arith.minsi %0, %c1_i32_0 : i32
    %c0_i32 = arith.constant 0 : i32
    %c0_i32_1 = arith.constant 0 : i32
    return %arg0, %c0_i32, %1 : i32, i32, i32
  }
  func.func @transform_3(%arg0: i32, %arg1: i32) -> (i32, i32, i32, i32) {
    %c0_i32 = arith.constant 0 : i32
    %c0_i32_0 = arith.constant 0 : i32
    %c0_i32_1 = arith.constant 0 : i32
    %c0_i32_2 = arith.constant 0 : i32
    %c0_i32_3 = arith.constant 0 : i32
    return %c0_i32, %c0_i32_0, %c0_i32_1, %c0_i32_2 : i32, i32, i32, i32
  }
  func.func @transform_4(%arg0: i32, %arg1: i32) -> (i32, i32, i32) {
    %c0_i32 = arith.constant 0 : i32
    %c0_i32_0 = arith.constant 0 : i32
    %c0_i32_1 = arith.constant 0 : i32
    %c0_i32_2 = arith.constant 0 : i32
    return %c0_i32, %c0_i32_0, %c0_i32_1 : i32, i32, i32
  }
  func.func @transform_5(%arg0: i32, %arg1: i32) -> (i32, i32, i32, i32) {
    %c0_i32 = arith.constant 0 : i32
    %c0_i32_0 = arith.constant 0 : i32
    %c0_i32_1 = arith.constant 0 : i32
    %c0_i32_2 = arith.constant 0 : i32
    %c0_i32_3 = arith.constant 0 : i32
    return %c0_i32, %c0_i32_0, %c0_i32_1, %c0_i32_2 : i32, i32, i32, i32
  }
  func.func @transform_6(%arg0: i32, %arg1: i32) -> (i32, i32, i32) {
    %c0_i32 = arith.constant 0 : i32
    %c0_i32_0 = arith.constant 0 : i32
    %c0_i32_1 = arith.constant 0 : i32
    %c0_i32_2 = arith.constant 0 : i32
    return %c0_i32, %c0_i32_0, %c0_i32_1 : i32, i32, i32
  }
  func.func @transform_7(%arg0: i32, %arg1: i32) -> (i32, i32, i32) {
    %c0_i32 = arith.constant 0 : i32
    %c0_i32_0 = arith.constant 0 : i32
    return %arg0, %c0_i32, %arg1 : i32, i32, i32
  }
  func.func @transform_8(%arg0: i32, %arg1: i32) -> (i32, i32, i32) {
    %c0_i32 = arith.constant 0 : i32
    %c0_i32_0 = arith.constant 0 : i32
    return %arg0, %c0_i32, %arg1 : i32, i32, i32
  }
}

</mosaic_0001>

<llo_original>
// kernel: _lambda_.2
$region0: #{_lambda_.2}
  #allocation0 [shape = 'u32[]', space=smem, size = 0x4, offset = 0x4, fixed_abs, tag = 'smem constant byte address 0x4 - core index']
  #allocation1 [shape = 'u32[144,128]{1,0:T(1,128)}', space=vmem, size = 0x12000, scoped, tag = 'internal scratch']
  #allocation2 [shape = 'f32[8,140]{1,0:T(8,128)}', space=vmem, size = 0x2000, scoped, tag = 'scratch operand']
  #allocation3 [shape = 'f32[8,140]{1,0:T(8,128)}', space=vmem, size = 0x2000, scoped, tag = 'scratch operand']
  #allocation4 [shape = 'f32[8,140]{1,0:T(8,128)}', space=vmem, size = 0x2000, scoped, tag = 'scratch operand']
  %s0 = inlined_call_operand.hbm [shape: f32[2,8,256], index: 0, kind: input, shape index: {}, may-alias: {0,1,2}]
  %s1 = inlined_call_operand.hbm [shape: f32[2,8,256], index: 1, kind: input, shape index: {}, may-alias: {0,1,2}]
  %s2 = inlined_call_operand.hbm [shape: f32[2,8,256], index: 2, kind: input, shape index: {}, may-alias: {0,1,2}]
  %s3 = inlined_call_operand.hbm [shape: f32[2,3,8,8], index: 3, kind: input, shape index: {}]
  %s4 = inlined_call_operand.hbm [shape: f32[2,8,1], index: 4, kind: input, shape index: {}]
  %s5 = inlined_call_operand.hbm [shape: f32[2,3,8,8], index: 5, kind: input, shape index: {}]
  %s6 = inlined_call_operand.vmem [shape: f32[2,8,1], index: 6, kind: input, shape index: {}]
  %s7 = inlined_call_operand.hbm [shape: f32[2,8,256], index: 7, kind: output, shape index: {}]
  %s8 = sld [smem:[#allocation0]]
  $region133: #{_lambda_.2} parent=0
    _
  %s10 = ssub.s32 1, %s8
  %s11 = scalar_select 0, %s10, %s8
  $region1: #{_lambda_.2} parent=0
    #allocation5 [shape = 'u8[8192]{0}', space=vmem, size = 0x2000, scoped, tag = 'input window, operand 0']
    #allocation6 [shape = 's32[2]{0}', space=sflag, size = 0x8, scoped, tag = 'scoped memory for _lambda_.2']
    #allocation7 [shape = 's32[2]{0}', space=sflag, size = 0x8, scoped, tag = 'scoped memory for _lambda_.2']
    #allocation8 [shape = 'u8[8192]{0}', space=vmem, size = 0x2000, scoped, tag = 'input window, operand 1']
    #allocation9 [shape = 's32[2]{0}', space=sflag, size = 0x8, scoped, tag = 'scoped memory for _lambda_.2']
    #allocation10 [shape = 'u8[8192]{0}', space=vmem, size = 0x2000, scoped, tag = 'input window, operand 2']
    #allocation11 [shape = 'u8[24576]{0}', space=vmem, size = 0x6000, scoped, tag = 'input window, operand 3, single buffered']
    #allocation12 [shape = 's32[1]{0}', space=sflag, size = 0x4, scoped, tag = 'scoped memory for _lambda_.2']
    #allocation13 [shape = 'u8[8192]{0}', space=vmem, size = 0x2000, scoped, tag = 'input window, operand 4, single buffered']
    #allocation14 [shape = 'u8[24576]{0}', space=vmem, size = 0x6000, scoped, tag = 'input window, operand 5, single buffered']
    #allocation15 [shape = 's32[1]{0}', space=sflag, size = 0x4, scoped, tag = 'scoped memory for _lambda_.2']
    #allocation16 [shape = 'u8[8192]{0}', space=vmem, size = 0x2000, scoped, tag = 'output window, operand 0']
    %12 = vsyncpa [#allocation6], 0
    %s13 = scalar_lea.sflag [#allocation6], 1
    %14 = vsyncpa %s13, 0
    %15 = vsyncpa [#allocation9], 0
    %s16 = scalar_lea.sflag [#allocation9], 1
    %17 = vsyncpa %s16, 0
    %18 = vsyncpa [#allocation12], 0
    %19 = vsyncpa [#allocation15], 0
    %20 = vsyncpa [#allocation7], 0
    %s21 = scalar_lea.sflag [#allocation7], 1
    %22 = vsyncpa %s21, 0
    loop: start=0, step=1, limit=6
    $region2: #{_lambda_.2} parent=1 // loop_pre_header
      _
    $region3: #{_lambda_.2} parent=1 // loop_header
      %s24 = sphi 0, %s28
      %p25 = scmp.ge.s32.totalorder %s24, 6
      %s31 = sphi 0, %s43
      %s32 = sphi 0, %s39
      %s33 = sphi 0, %s31
      %s34 = sphi 0, %s32
      %s35 = sphi 0, %s33
      %s36 = sphi 0, %s34
      %s54 = sphi 0, %s56
      %s57 = sphi 0, %s54
      %s58 = sphi 0, %s57
      %s74 = sphi 0, %s58
      %s82 = sphi 0, %s84
      %s85 = sphi 0, %s82
      %s86 = sphi 0, %s85
      %s102 = sphi 0, %s86
      %s116 = sphi 0, %s118
      %s119 = sphi 0, %s116
      %s120 = sphi 0, %s119
      %s136 = sphi 0, %s120
      %s140 = sphi 0, %s140
      %s142 = sphi 0, %s140
      %s143 = sphi 0, %s142
      %s157 = sphi 0, %s143
      %s161 = sphi 0, %s161
      %s163 = sphi 0, %s161
      %s164 = sphi 0, %s163
      %s178 = sphi 0, %s164
      %s182 = sphi 0, %s182
      %s184 = sphi 0, %s182
      %s185 = sphi 0, %s184
      %s199 = sphi 0, %s185
      %s203 = sphi 0, %s203
      %s205 = sphi 0, %s203
      %s206 = sphi 0, %s205
      %s220 = sphi 0, %s206
      %s228 = sphi 0, %s230
      %s231 = sphi 0, %s228
      %s232 = sphi 0, %s231
      %s248 = sphi 0, %s232
    $region4: #{_lambda_.2} parent=1 // loop_header_branch
      %27 = sbr.rel (%p25) target = $region8
    $region5: #{_lambda_.2} parent=1 // loop_body
      %s29 = ssub.s32 %s24, 1
      %s30 = ssub.s32 %s24, 2
      %s37 = sadd.s32 1, %s32
      %p38 = scmp.ge.s32.totalorder %s37, 2
      %s39 = scalar_select %p38, 0, %s37
      %s40 = sadd.s32 1, %s31
      %s41 = scalar_select %p38, %s40, %s31
      %p42 = scmp.ge.s32.totalorder %s41, 2
      %s43 = scalar_select %p42, 0, %s41
      %s44 = ssub.s32 %s32, 1
      %p45 = scmp.gt.s32.totalorder %s44, 0
      %s46 = scalar_select %p45, %s44, 0
      %s47 = ssub.s32 %s39, 1
      %p48 = scmp.gt.s32.totalorder %s47, 0
      %s49 = scalar_select %p48, %s47, 0
      %s50 = ssub.s32 %s31, %s43
      %s51 = ssub.s32 %s46, %s49
      %s52 = sor.u32 %s50, %s51
      %p53 = scmp.eq.s32.totalorder %s52, 0
      %s55 = sadd.s32 %s54, 1
      %s56 = scalar_select %p53, %s54, %s55
      %p59 = pneg %p53
      %p60 = scmp.eq.s32.totalorder %s24, 3
      %p61 = por %p59, %p60
      %p62 = scmp.ne.s32.totalorder %s54, %s57
      %p63 = scmp.eq.s32.totalorder %s24, 0
      %p64 = por %p62, %p63
      %p65 = scmp.ne.s32.totalorder %s54, %s57
      %p66 = scmp.eq.s32.totalorder %s29, 3
      %p67 = por %p65, %p66
      %p68 = scmp.ne.s32.totalorder %s57, %s58
      %p69 = scmp.eq.s32.totalorder %s29, 0
      %p70 = por %p68, %p69
      %p71 = scmp.ne.s32.totalorder %s57, %s58
      %p72 = scmp.eq.s32.totalorder %s30, 3
      %p73 = por %p71, %p72
      %p75 = scmp.ne.s32.totalorder %s58, %s74
      %p76 = scmp.eq.s32.totalorder %s30, 0
      %p77 = por %p75, %p76
      %s78 = ssub.s32 %s31, %s43
      %s79 = ssub.s32 %s32, %s39
      %s80 = sor.u32 %s78, %s79
      %p81 = scmp.eq.s32.totalorder %s80, 0
      %s83 = sadd.s32 %s82, 1
      %s84 = scalar_select %p81, %s82, %s83
      %p87 = pneg %p81
      %p88 = scmp.eq.s32.totalorder %s24, 3
      %p89 = por %p87, %p88
      %p90 = scmp.ne.s32.totalorder %s82, %s85
      %p91 = scmp.eq.s32.totalorder %s24, 0
      %p92 = por %p90, %p91
      %p93 = scmp.ne.s32.totalorder %s82, %s85
      %p94 = scmp.eq.s32.totalorder %s29, 3
      %p95 = por %p93, %p94
      %p96 = scmp.ne.s32.totalorder %s85, %s86
      %p97 = scmp.eq.s32.totalorder %s29, 0
      %p98 = por %p96, %p97
      %p99 = scmp.ne.s32.totalorder %s85, %s86
      %p100 = scmp.eq.s32.totalorder %s30, 3
      %p101 = por %p99, %p100
      %p103 = scmp.ne.s32.totalorder %s86, %s102
      %p104 = scmp.eq.s32.totalorder %s30, 0
      %p105 = por %p103, %p104
      %s106 = sadd.s32 %s32, 1
      %p107 = scmp.lt.s32.totalorder %s106, 1
      %s108 = scalar_select %p107, %s106, 1
      %s109 = sadd.s32 %s39, 1
      %p110 = scmp.lt.s32.totalorder %s109, 1
      %s111 = scalar_select %p110, %s109, 1
      %s112 = ssub.s32 %s31, %s43
      %s113 = ssub.s32 %s108, %s111
      %s114 = sor.u32 %s112, %s113
      %p115 = scmp.eq.s32.totalorder %s114, 0
      %s117 = sadd.s32 %s116, 1
      %s118 = scalar_select %p115, %s116, %s117
      %p121 = pneg %p115
      %p122 = scmp.eq.s32.totalorder %s24, 3
      %p123 = por %p121, %p122
      %p124 = scmp.ne.s32.totalorder %s116, %s119
      %p125 = scmp.eq.s32.totalorder %s24, 0
      %p126 = por %p124, %p125
      %p127 = scmp.ne.s32.totalorder %s116, %s119
      %p128 = scmp.eq.s32.totalorder %s29, 3
      %p129 = por %p127, %p128
      %p130 = scmp.ne.s32.totalorder %s119, %s120
      %p131 = scmp.eq.s32.totalorder %s29, 0
      %p132 = por %p130, %p131
      %p133 = scmp.ne.s32.totalorder %s119, %s120
      %p134 = scmp.eq.s32.totalorder %s30, 3
      %p135 = por %p133, %p134
      %p137 = scmp.ne.s32.totalorder %s120, %s136
      %p138 = scmp.eq.s32.totalorder %s30, 0
      %p139 = por %p137, %p138
      %s141 = sadd.s32 %s140, 1
      %p144 = scmp.eq.s32.totalorder %s24, 3
      %p145 = scmp.ne.s32.totalorder %s140, %s142
      %p146 = scmp.eq.s32.totalorder %s24, 0
      %p147 = por %p145, %p146
      %p148 = scmp.ne.s32.totalorder %s140, %s142
      %p149 = scmp.eq.s32.totalorder %s29, 3
      %p150 = por %p148, %p149
      %p151 = scmp.ne.s32.totalorder %s142, %s143
      %p152 = scmp.eq.s32.totalorder %s29, 0
      %p153 = por %p151, %p152
      %p154 = scmp.ne.s32.totalorder %s142, %s143
      %p155 = scmp.eq.s32.totalorder %s30, 3
      %p156 = por %p154, %p155
      %p158 = scmp.ne.s32.totalorder %s143, %s157
      %p159 = scmp.eq.s32.totalorder %s30, 0
      %p160 = por %p158, %p159
      %s162 = sadd.s32 %s161, 1
      %p165 = scmp.eq.s32.totalorder %s24, 3
      %p166 = scmp.ne.s32.totalorder %s161, %s163
      %p167 = scmp.eq.s32.totalorder %s24, 0
      %p168 = por %p166, %p167
      %p169 = scmp.ne.s32.totalorder %s161, %s163
      %p170 = scmp.eq.s32.totalorder %s29, 3
      %p171 = por %p169, %p170
      %p172 = scmp.ne.s32.totalorder %s163, %s164
      %p173 = scmp.eq.s32.totalorder %s29, 0
      %p174 = por %p172, %p173
      %p175 = scmp.ne.s32.totalorder %s163, %s164
      %p176 = scmp.eq.s32.totalorder %s30, 3
      %p177 = por %p175, %p176
      %p179 = scmp.ne.s32.totalorder %s164, %s178
      %p180 = scmp.eq.s32.totalorder %s30, 0
      %p181 = por %p179, %p180
      %s183 = sadd.s32 %s182, 1
      %p186 = scmp.eq.s32.totalorder %s24, 3
      %p187 = scmp.ne.s32.totalorder %s182, %s184
      %p188 = scmp.eq.s32.totalorder %s24, 0
      %p189 = por %p187, %p188
      %p190 = scmp.ne.s32.totalorder %s182, %s184
      %p191 = scmp.eq.s32.totalorder %s29, 3
      %p192 = por %p190, %p191
      %p193 = scmp.ne.s32.totalorder %s184, %s185
      %p194 = scmp.eq.s32.totalorder %s29, 0
      %p195 = por %p193, %p194
      %p196 = scmp.ne.s32.totalorder %s184, %s185
      %p197 = scmp.eq.s32.totalorder %s30, 3
      %p198 = por %p196, %p197
      %p200 = scmp.ne.s32.totalorder %s185, %s199
      %p201 = scmp.eq.s32.totalorder %s30, 0
      %p202 = por %p200, %p201
      %s204 = sadd.s32 %s203, 1
      %p207 = scmp.eq.s32.totalorder %s24, 3
      %p208 = scmp.ne.s32.totalorder %s203, %s205
      %p209 = scmp.eq.s32.totalorder %s24, 0
      %p210 = por %p208, %p209
      %p211 = scmp.ne.s32.totalorder %s203, %s205
      %p212 = scmp.eq.s32.totalorder %s29, 3
      %p213 = por %p211, %p212
      %p214 = scmp.ne.s32.totalorder %s205, %s206
      %p215 = scmp.eq.s32.totalorder %s29, 0
      %p216 = por %p214, %p215
      %p217 = scmp.ne.s32.totalorder %s205, %s206
      %p218 = scmp.eq.s32.totalorder %s30, 3
      %p219 = por %p217, %p218
      %p221 = scmp.ne.s32.totalorder %s206, %s220
      %p222 = scmp.eq.s32.totalorder %s30, 0
      %p223 = por %p221, %p222
      %s224 = ssub.s32 %s31, %s43
      %s225 = ssub.s32 %s32, %s39
      %s226 = sor.u32 %s224, %s225
      %p227 = scmp.eq.s32.totalorder %s226, 0
      %s229 = sadd.s32 %s228, 1
      %s230 = scalar_select %p227, %s228, %s229
      %p233 = pneg %p227
      %p234 = scmp.eq.s32.totalorder %s24, 3
      %p235 = por %p233, %p234
      %p236 = scmp.ne.s32.totalorder %s228, %s231
      %p237 = scmp.eq.s32.totalorder %s24, 0
      %p238 = por %p236, %p237
      %p239 = scmp.ne.s32.totalorder %s228, %s231
      %p240 = scmp.eq.s32.totalorder %s29, 3
      %p241 = por %p239, %p240
      %p242 = scmp.ne.s32.totalorder %s231, %s232
      %p243 = scmp.eq.s32.totalorder %s29, 0
      %p244 = por %p242, %p243
      %p245 = scmp.ne.s32.totalorder %s231, %s232
      %p246 = scmp.eq.s32.totalorder %s30, 3
      %p247 = por %p245, %p246
      %p249 = scmp.ne.s32.totalorder %s232, %s248
      %p250 = scmp.eq.s32.totalorder %s30, 0
      %p251 = por %p249, %p250
      %p252 = scmp.le.s32.totalorder 1, %s24
      %p253 = scmp.lt.s32.totalorder %s24, 5
      %p254 = pnand %p252, %p253
      %p255 = pneg %p254
      // Predicated region
      $region9: #{_lambda_.2} parent=5 // pred_check
        _
      $region10: #{_lambda_.2} parent=5 // pred_check_branch
        %257 = sbr.rel (%p254) target = $region12
      $region11: #{_lambda_.2} parent=5 // pred_region
        %s258 = ssub.s32 %s24, 1
        // Predicated region
        $region13: #{_lambda_.2} parent=11 // pred_check
          %p259 = pneg %p153
        $region14: #{_lambda_.2} parent=11 // pred_check_branch
          %261 = sbr.rel (%p259) target = $region16
        $region15: #{_lambda_.2} parent=11 // pred_region
          %s263 = ssub.s32 768, 768
          %264 = vsyncadd [#allocation12], %s263
          %s265 = sshll.u32 [#allocation11], 4
          %s266 = int_to_ptr.vmem [resolvable:$true] %s265
          %271 = dma.hbm_to_vmem [thread:$0]  %s3, 768, %s266, [#allocation12], 128, 128, 8
        $region16: #{_lambda_.2} parent=11 // pred_fallthru
          _
        // Predicated region
        $region17: #{_lambda_.2} parent=11 // pred_check
          %p272 = pneg %p174
        $region18: #{_lambda_.2} parent=11 // pred_check_branch
          %274 = sbr.rel (%p272) target = $region20
        $region19: #{_lambda_.2} parent=11 // pred_region
          %s276 = ssub.s32 256, 256
          %277 = vsyncadd [#allocation12], %s276
          %s278 = sshll.u32 [#allocation13], 4
          %s279 = int_to_ptr.vmem [resolvable:$true] %s278
          %284 = dma.hbm_to_vmem [thread:$0]  %s4, 256, %s279, [#allocation12], 128, 128, 8
        $region20: #{_lambda_.2} parent=11 // pred_fallthru
          _
        // Predicated region
        $region21: #{_lambda_.2} parent=11 // pred_check
          %p285 = pneg %p195
        $region22: #{_lambda_.2} parent=11 // pred_check_branch
          %287 = sbr.rel (%p285) target = $region24
        $region23: #{_lambda_.2} parent=11 // pred_region
          %s289 = ssub.s32 768, 768
          %290 = vsyncadd [#allocation15], %s289
          %s291 = sshll.u32 [#allocation14], 4
          %s292 = int_to_ptr.vmem [resolvable:$true] %s291
          %297 = dma.hbm_to_vmem [thread:$0]  %s5, 768, %s292, [#allocation15], 128, 128, 8
        $region24: #{_lambda_.2} parent=11 // pred_fallthru
          _
        // Predicated region
        $region25: #{_lambda_.2} parent=11 // pred_check
          %p298 = pneg %p216
        $region26: #{_lambda_.2} parent=11 // pred_check_branch
          %300 = sbr.rel (%p298) target = $region28
        $region27: #{_lambda_.2} parent=11 // pred_region
          _
        $region28: #{_lambda_.2} parent=11 // pred_fallthru
          _
      $region12: #{_lambda_.2} parent=5 // pred_fallthru
        _
      %p301 = scmp.lt.s32.totalorder %s24, 4
      // Predicated region
      $region29: #{_lambda_.2} parent=5 // pred_check
        %p302 = pneg %p301
      $region30: #{_lambda_.2} parent=5 // pred_check_branch
        %304 = sbr.rel (%p302) target = $region32
      $region31: #{_lambda_.2} parent=5 // pred_region
        // Predicated region
        $region33: #{_lambda_.2} parent=31 // pred_check
          %p305 = pneg %p64
        $region34: #{_lambda_.2} parent=31 // pred_check_branch
          %307 = sbr.rel (%p305) target = $region36
        $region35: #{_lambda_.2} parent=31 // pred_region
          %s308 = sand.u32 %s54, 1
          %s309 = scalar_lea.sflag [#allocation6], %s308
          %s310 = sand.u32 %s54, 1
          %s311 = smul.addr %s310, 8
          %s312 = scalar_lea.vmem [#allocation5], %s311
          %s313 = ssub.s32 %s32, 1
          %p314 = scmp.gt.s32.totalorder %s313, 0
          %s315 = scalar_select %p314, %s313, 0
          %s317 = ssub.s32 128, 128
          %318 = vsyncadd %s309, %s317
          %s319 = smul.addr %s31, 2
          %s320 = sadd.s32 %s315, %s319
          %s321 = smul.addr %s320, 128
          %s322 = scalar_lea.hbm %s0, %s321
          %s324 = sshll.u32 %s312, 4
          %s325 = int_to_ptr.vmem [resolvable:$true] %s324
          %327 = dma.hbm_to_vmem [thread:$0]  %s322, 128, %s325, %s309
        $region36: #{_lambda_.2} parent=31 // pred_fallthru
          _
        // Predicated region
        $region37: #{_lambda_.2} parent=31 // pred_check
          %p328 = pneg %p92
        $region38: #{_lambda_.2} parent=31 // pred_check_branch
          %330 = sbr.rel (%p328) target = $region40
        $region39: #{_lambda_.2} parent=31 // pred_region
          %s331 = sand.u32 %s24, 1
          %s332 = scalar_lea.sflag [#allocation9], %s331
          %s333 = sand.u32 %s82, 1
          %s334 = smul.addr %s333, 8
          %s335 = scalar_lea.vmem [#allocation8], %s334
          %s337 = ssub.s32 128, 128
          %338 = vsyncadd %s332, %s337
          %s339 = smul.addr %s31, 2
          %s340 = sadd.s32 %s32, %s339
          %s341 = smul.addr %s340, 128
          %s342 = scalar_lea.hbm %s1, %s341
          %s344 = sshll.u32 %s335, 4
          %s345 = int_to_ptr.vmem [resolvable:$true] %s344
          %347 = dma.hbm_to_vmem [thread:$0]  %s342, 128, %s345, %s332
        $region40: #{_lambda_.2} parent=31 // pred_fallthru
          _
        // Predicated region
        $region41: #{_lambda_.2} parent=31 // pred_check
          %p348 = pneg %p126
        $region42: #{_lambda_.2} parent=31 // pred_check_branch
          %350 = sbr.rel (%p348) target = $region44
        $region43: #{_lambda_.2} parent=31 // pred_region
          %s351 = sand.u32 %s24, 1
          %s352 = scalar_lea.sflag [#allocation9], %s351
          %s353 = sand.u32 %s116, 1
          %s354 = smul.addr %s353, 8
          %s355 = scalar_lea.vmem [#allocation10], %s354
          %s356 = sadd.s32 %s32, 1
          %p357 = scmp.lt.s32.totalorder %s356, 1
          %s358 = scalar_select %p357, %s356, 1
          %s360 = ssub.s32 128, 128
          %361 = vsyncadd %s352, %s360
          %s362 = smul.addr %s31, 2
          %s363 = sadd.s32 %s358, %s362
          %s364 = smul.addr %s363, 128
          %s365 = scalar_lea.hbm %s2, %s364
          %s367 = sshll.u32 %s355, 4
          %s368 = int_to_ptr.vmem [resolvable:$true] %s367
          %370 = dma.hbm_to_vmem [thread:$0]  %s365, 128, %s368, %s352
        $region44: #{_lambda_.2} parent=31 // pred_fallthru
          _
      $region32: #{_lambda_.2} parent=5 // pred_fallthru
        _
      %p371 = scmp.le.s32.totalorder 1, %s24
      %p372 = scmp.lt.s32.totalorder %s24, 5
      %p373 = pnand %p371, %p372
      %p374 = pneg %p373
      // Predicated region
      $region45: #{_lambda_.2} parent=5 // pred_check
        _
      $region46: #{_lambda_.2} parent=5 // pred_check_branch
        %376 = sbr.rel (%p373) target = $region48
      $region47: #{_lambda_.2} parent=5 // pred_region
        %s377 = ssub.s32 %s24, 1
        %s378 = sand.u32 %s57, 1
        %s379 = scalar_lea.sflag [#allocation6], %s378
        %s380 = sand.u32 %s57, 1
        %s381 = smul.addr %s380, 8
        %s382 = scalar_lea.vmem [#allocation5], %s381
        // Predicated region
        $region49: #{_lambda_.2} parent=47 // pred_check
          %p383 = pneg %p70
        $region50: #{_lambda_.2} parent=47 // pred_check_branch
          %385 = sbr.rel (%p383) target = $region52
        $region51: #{_lambda_.2} parent=47 // pred_region
          %386 = dma.done %s379, 128
        $region52: #{_lambda_.2} parent=47 // pred_fallthru
          _
        %s387 = sand.u32 %s29, 1
        %s388 = scalar_lea.sflag [#allocation9], %s387
        %s389 = sand.u32 %s85, 1
        %s390 = smul.addr %s389, 8
        %s391 = scalar_lea.vmem [#allocation8], %s390
        // Predicated region
        $region53: #{_lambda_.2} parent=47 // pred_check
          %p392 = pneg %p98
        $region54: #{_lambda_.2} parent=47 // pred_check_branch
          %394 = sbr.rel (%p392) target = $region56
        $region55: #{_lambda_.2} parent=47 // pred_region
          %395 = dma.done %s388, 128
        $region56: #{_lambda_.2} parent=47 // pred_fallthru
          _
        %s396 = sand.u32 %s29, 1
        %s397 = scalar_lea.sflag [#allocation9], %s396
        %s398 = sand.u32 %s119, 1
        %s399 = smul.addr %s398, 8
        %s400 = scalar_lea.vmem [#allocation10], %s399
        // Predicated region
        $region57: #{_lambda_.2} parent=47 // pred_check
          %p401 = pneg %p132
        $region58: #{_lambda_.2} parent=47 // pred_check_branch
          %403 = sbr.rel (%p401) target = $region60
        $region59: #{_lambda_.2} parent=47 // pred_region
          %404 = dma.done %s397, 128
        $region60: #{_lambda_.2} parent=47 // pred_fallthru
          _
        // Predicated region
        $region61: #{_lambda_.2} parent=47 // pred_check
          %p405 = pneg %p153
        $region62: #{_lambda_.2} parent=47 // pred_check_branch
          %407 = sbr.rel (%p405) target = $region64
        $region63: #{_lambda_.2} parent=47 // pred_region
          %408 = dma.done [#allocation12], 768
        $region64: #{_lambda_.2} parent=47 // pred_fallthru
          _
        // Predicated region
        $region65: #{_lambda_.2} parent=47 // pred_check
          %p409 = pneg %p174
        $region66: #{_lambda_.2} parent=47 // pred_check_branch
          %411 = sbr.rel (%p409) target = $region68
        $region67: #{_lambda_.2} parent=47 // pred_region
          %412 = dma.done [#allocation12], 256
        $region68: #{_lambda_.2} parent=47 // pred_fallthru
          _
        // Predicated region
        $region69: #{_lambda_.2} parent=47 // pred_check
          %p413 = pneg %p195
        $region70: #{_lambda_.2} parent=47 // pred_check_branch
          %415 = sbr.rel (%p413) target = $region72
        $region71: #{_lambda_.2} parent=47 // pred_region
          %416 = dma.done [#allocation15], 768
        $region72: #{_lambda_.2} parent=47 // pred_fallthru
          _
        %s417 = sand.u32 %s57, 1
        %s418 = scalar_lea.sflag [#allocation6], %s417
        %s419 = sand.u32 %s57, 1
        %s420 = smul.addr %s419, 8
        %s421 = scalar_lea.vmem [#allocation5], %s420
        %p422 = pneg %p70
        %p423 = pneg %p67
        %s424 = sand.u32 %s29, 1
        %s425 = scalar_lea.sflag [#allocation9], %s424
        %s426 = sand.u32 %s85, 1
        %s427 = smul.addr %s426, 8
        %s428 = scalar_lea.vmem [#allocation8], %s427
        %p429 = pneg %p98
        %p430 = pneg %p95
        %s431 = sand.u32 %s29, 1
        %s432 = scalar_lea.sflag [#allocation9], %s431
        %s433 = sand.u32 %s119, 1
        %s434 = smul.addr %s433, 8
        %s435 = scalar_lea.vmem [#allocation10], %s434
        %p436 = pneg %p132
        %p437 = pneg %p129
        %p438 = pneg %p153
        %p439 = pneg %p150
        %p440 = pneg %p174
        %p441 = pneg %p171
        %p442 = pneg %p195
        %p443 = pneg %p192
        %p444 = pneg %p216
        %p445 = pneg %p213
        %p446 = pneg %p244
        %p447 = pneg %p241
        %s448 = sand.u32 %s231, 1
        %s449 = scalar_lea.sflag [#allocation7], %s448
        %s450 = sand.u32 %s231, 1
        %s451 = smul.addr %s450, 8
        %s452 = scalar_lea.vmem [#allocation16], %s451
        %s453 = ssub.s32 %s34, 1
        %p454 = scmp.gt.s32.totalorder %s453, 0
        %s455 = scalar_select %p454, %s453, 0
        %s456 = sadd.s32 %s34, 1
        %p457 = scmp.lt.s32.totalorder %s456, 1
        %s458 = scalar_select %p457, %s456, 1
        %v459 = vld [vmem:[%s391] sm:$0xff]
        %461 = vrot.lane.b32.xlu0 %v459, 6
        %v462 = vpop.permute.xlu0 %461
        %vm464 = vcmask 1047600
        %465 = vst.msk [vmem:[#allocation2] sm:$0xff] %vm464, %v462
        %vm466 = vcmask 48128
        %467 = vst.msk [vmem:[#allocation2 + $0x8] sm:$0xff] %vm466, %v462
        %p468 = scmp.eq.s32.totalorder %s34, 0
        // Predicated region
        $region73: #{_lambda_.2} parent=47 // pred_check
          %p469 = pneg %p468
        $region74: #{_lambda_.2} parent=47 // pred_check_branch
          %471 = sbr.rel (%p469) target = $region76
        $region75: #{_lambda_.2} parent=47 // pred_region
          %472 = vst.msk [vmem:[#allocation2] sm:$0xff] %vm466, 0.0
        $region76: #{_lambda_.2} parent=47 // pred_fallthru
          _
        %p473 = scmp.eq.s32.totalorder %s34, 1
        // Predicated region
        $region77: #{_lambda_.2} parent=47 // pred_check
          %p474 = pneg %p473
        $region78: #{_lambda_.2} parent=47 // pred_check_branch
          %476 = sbr.rel (%p474) target = $region80
        $region79: #{_lambda_.2} parent=47 // pred_region
          %vm477 = vcmask 97328
          %478 = vst.msk [vmem:[#allocation2 + $0x8] sm:$0xff] %vm477, 0.0
        $region80: #{_lambda_.2} parent=47 // pred_fallthru
          _
        %p479 = scmp.gt.s32.totalorder %s34, 0
        // Predicated region
        $region81: #{_lambda_.2} parent=47 // pred_check
          %p480 = pneg %p479
        $region82: #{_lambda_.2} parent=47 // pred_check_branch
          %482 = sbr.rel (%p480) target = $region84
        $region83: #{_lambda_.2} parent=47 // pred_region
          %v483 = vld [vmem:[%s382] sm:$0xff]
          %485 = vrot.lane.b32.xlu0 %v483, 6
          %v486 = vpop.permute.xlu0 %485
          %488 = vst.msk [vmem:[#allocation2] sm:$0xff] %vm466, %v486
        $region84: #{_lambda_.2} parent=47 // pred_fallthru
          _
        %p489 = scmp.lt.s32.totalorder %s34, 1
        // Predicated region
        $region85: #{_lambda_.2} parent=47 // pred_check
          %p490 = pneg %p489
        $region86: #{_lambda_.2} parent=47 // pred_check_branch
          %492 = sbr.rel (%p490) target = $region88
        $region87: #{_lambda_.2} parent=47 // pred_region
          %v493 = vld [vmem:[%s400] sm:$0xff]
          %495 = vrot.lane.b32.xlu0 %v493, 6
          %v496 = vpop.permute.xlu0 %495
          %vm498 = vcmask 97328
          %499 = vst.msk [vmem:[#allocation2 + $0x8] sm:$0xff] %vm498, %v496
        $region88: #{_lambda_.2} parent=47 // pred_fallthru
          _
        %v500 = vld [vmem:[#allocation2] sm:$0xff]
        %v501 = vld [vmem:[#allocation2 + $0x8] sm:$0xff]
        %vm502 = vcmp.gt.f32.partialorder %v500, 0.0
        %vm503 = vcmp.gt.f32.partialorder %v501, 0.0
        %v504 = vmul.f32 %v500, 0.1
        %v505 = vmul.f32 %v501, 0.1
        %v506 = vsel %vm502, %v500, %v504
        %v507 = vsel %vm503, %v501, %v505
        %508 = vst [vmem:[#allocation3] sm:$0xff] %v506
        %vm509 = vcmask 97280
        %510 = vst.msk [vmem:[#allocation3 + $0x8] sm:$0xff] %vm509, %v507
        // Predicated region
        $region89: #{_lambda_.2} parent=47 // pred_check
          %p511 = pneg %p468
        $region90: #{_lambda_.2} parent=47 // pred_check_branch
          %513 = sbr.rel (%p511) target = $region92
        $region91: #{_lambda_.2} parent=47 // pred_region
          %514 = vst.msk [vmem:[#allocation3] sm:$0xff] %vm466, 0.0
        $region92: #{_lambda_.2} parent=47 // pred_fallthru
          _
        // Predicated region
        $region93: #{_lambda_.2} parent=47 // pred_check
          %p515 = pneg %p473
        $region94: #{_lambda_.2} parent=47 // pred_check_branch
          %517 = sbr.rel (%p515) target = $region96
        $region95: #{_lambda_.2} parent=47 // pred_region
          %vm518 = vcmask 97328
          %519 = vst.msk [vmem:[#allocation3 + $0x8] sm:$0xff] %vm518, 0.0
        $region96: #{_lambda_.2} parent=47 // pred_fallthru
          _
        %v520 = vld [vmem:[#allocation11] sm:$0xff]
        %v521 = vld [vmem:[#allocation3] sm:$0xff]
        %v522 = vld [vmem:[#allocation3 + $0x8] sm:$0xff]
        %s523 = scalar_lea.vmem [#allocation11], 8
        %v524 = vld [vmem:[%s523] sm:$0xff]
        %527 = vrot.lane.b32.xlu0 %v521, 127
        %v528 = vpop.permute.xlu0 %527
        %529 = vrot.lane.b32.xlu0 %v522, 127
        %v530 = vpop.permute.xlu0 %529
        %vm531 = vcmask 1039360
        %v532 = vsel %vm531, %v528, %v530
        %vm535 = vcmask 64512
        %v537 = vsel %vm535, %v524, 0
        %539 = vmatprep.subr.mxu0 %v530
        %540 = vmatpush1.msra.mxu0 %v532
        %541 = vmatprep.subr.mxu0 0.0
        %542 = vmatpush1.msra.mxu0 0.0
        %543 = vmatprep.subr.mxu0 0.0
        %544 = vmatpush1.msra.mxu0 0.0
        %545 = vmatprep.subr.mxu0 0.0
        %546 = vmatpush1.msra.mxu0 0.0
        %547 = vmatprep.subr.mxu0 0.0
        %548 = vmatpush1.msra.mxu0 0.0
        %549 = vmatprep.subr.mxu0 0.0
        %550 = vmatpush1.msra.mxu0 0.0
        %551 = vmatprep.subr.mxu0 0.0
        %552 = vmatpush1.msra.mxu0 0.0
        %553 = vmatprep.subr.mxu0 0.0
        %554 = vmatpush1.msra.mxu0 0.0
        %555 = vmatprep.subr.mxu0 0.0
        %556 = vmatpush1.msra.mxu0 0.0
        %557 = vmatprep.subr.mxu0 0.0
        %558 = vmatpush1.msra.mxu0 0.0
        %559 = vmatprep.subr.mxu0 0.0
        %560 = vmatpush1.msra.mxu0 0.0
        %561 = vmatprep.subr.mxu0 0.0
        %562 = vmatpush1.msra.mxu0 0.0
        %563 = vmatprep.subr.mxu0 0.0
        %564 = vmatpush1.msra.mxu0 0.0
        %565 = vmatprep.subr.mxu0 0.0
        %566 = vmatpush1.msra.mxu0 0.0
        %567 = vmatprep.subr.mxu0 0.0
        %568 = vmatpush1.msra.mxu0 0.0
        %569 = vmatprep.subr.mxu0 0.0
        %570 = vmatpush1.msra.mxu0 0.0
        %571 = vmatprep.subr.mxu0 0.0
        %572 = vmatpush1.msra.mxu0 0.0
        %573 = vmatprep.subr.mxu0 0.0
        %574 = vmatpush1.msra.mxu0 0.0
        %575 = vmatprep.subr.mxu0 0.0
        %576 = vmatpush1.msra.mxu0 0.0
        %577 = vmatprep.subr.mxu0 0.0
        %578 = vmatpush1.msra.mxu0 0.0
        %579 = vmatprep.subr.mxu0 0.0
        %580 = vmatpush1.msra.mxu0 0.0
        %581 = vmatprep.subr.mxu0 0.0
        %582 = vmatpush1.msra.mxu0 0.0
        %583 = vmatprep.subr.mxu0 0.0
        %584 = vmatpush1.msra.mxu0 0.0
        %585 = vmatprep.subr.mxu0 0.0
        %586 = vmatpush1.msra.mxu0 0.0
        %587 = vmatprep.subr.mxu0 0.0
        %588 = vmatpush1.msra.mxu0 0.0
        %589 = vmatprep.subr.mxu0 0.0
        %590 = vmatpush1.msra.mxu0 0.0
        %591 = vmatprep.subr.mxu0 0.0
        %592 = vmatpush1.msra.mxu0 0.0
        %593 = vmatprep.subr.mxu0 0.0
        %594 = vmatpush1.msra.mxu0 0.0
        %595 = vmatprep.subr.mxu0 0.0
        %596 = vmatpush1.msra.mxu0 0.0
        %597 = vmatprep.subr.mxu0 0.0
        %598 = vmatpush1.msra.mxu0 0.0
        %599 = vmatprep.subr.mxu0 0.0
        %600 = vmatpush1.msra.mxu0 0.0
        %601 = vmatprep.subr.mxu0 0.0
        %602 = vmatpush1.msra.mxu0 0.0
        %603 = vmatprep.mubr.f32.mxu0 0.0
        %604 = vmatmul.mubr.f32.gmra.mrb[0].mxu0 %v537
        %v605 = vpop.f32.mrb[0].mxu0
        %v606 = vadd.f32 0.0, %v605
        %v607 = vpop.f32.mrb[0].mxu0
        %v608 = vadd.f32 0.0, %v607
        %609 = vdwg.mxu0
        %v611 = vsel %vm535, %v520, 0
        %613 = vmatprep.subr.mxu0 %v522
        %614 = vmatpush1.msra.mxu0 %v521
        %615 = vmatprep.subr.mxu0 0.0
        %616 = vmatpush1.msra.mxu0 0.0
        %617 = vmatprep.subr.mxu0 0.0
        %618 = vmatpush1.msra.mxu0 0.0
        %619 = vmatprep.subr.mxu0 0.0
        %620 = vmatpush1.msra.mxu0 0.0
        %621 = vmatprep.subr.mxu0 0.0
        %622 = vmatpush1.msra.mxu0 0.0
        %623 = vmatprep.subr.mxu0 0.0
        %624 = vmatpush1.msra.mxu0 0.0
        %625 = vmatprep.subr.mxu0 0.0
        %626 = vmatpush1.msra.mxu0 0.0
        %627 = vmatprep.subr.mxu0 0.0
        %628 = vmatpush1.msra.mxu0 0.0
        %629 = vmatprep.subr.mxu0 0.0
        %630 = vmatpush1.msra.mxu0 0.0
        %631 = vmatprep.subr.mxu0 0.0
        %632 = vmatpush1.msra.mxu0 0.0
        %633 = vmatprep.subr.mxu0 0.0
        %634 = vmatpush1.msra.mxu0 0.0
        %635 = vmatprep.subr.mxu0 0.0
        %636 = vmatpush1.msra.mxu0 0.0
        %637 = vmatprep.subr.mxu0 0.0
        %638 = vmatpush1.msra.mxu0 0.0
        %639 = vmatprep.subr.mxu0 0.0
        %640 = vmatpush1.msra.mxu0 0.0
        %641 = vmatprep.subr.mxu0 0.0
        %642 = vmatpush1.msra.mxu0 0.0
        %643 = vmatprep.subr.mxu0 0.0
        %644 = vmatpush1.msra.mxu0 0.0
        %645 = vmatprep.subr.mxu0 0.0
        %646 = vmatpush1.msra.mxu0 0.0
        %647 = vmatprep.subr.mxu0 0.0
        %648 = vmatpush1.msra.mxu0 0.0
        %649 = vmatprep.subr.mxu0 0.0
        %650 = vmatpush1.msra.mxu0 0.0
        %651 = vmatprep.subr.mxu0 0.0
        %652 = vmatpush1.msra.mxu0 0.0
        %653 = vmatprep.subr.mxu0 0.0
        %654 = vmatpush1.msra.mxu0 0.0
        %655 = vmatprep.subr.mxu0 0.0
        %656 = vmatpush1.msra.mxu0 0.0
        %657 = vmatprep.subr.mxu0 0.0
        %658 = vmatpush1.msra.mxu0 0.0
        %659 = vmatprep.subr.mxu0 0.0
        %660 = vmatpush1.msra.mxu0 0.0
        %661 = vmatprep.subr.mxu0 0.0
        %662 = vmatpush1.msra.mxu0 0.0
        %663 = vmatprep.subr.mxu0 0.0
        %664 = vmatpush1.msra.mxu0 0.0
        %665 = vmatprep.subr.mxu0 0.0
        %666 = vmatpush1.msra.mxu0 0.0
        %667 = vmatprep.subr.mxu0 0.0
        %668 = vmatpush1.msra.mxu0 0.0
        %669 = vmatprep.subr.mxu0 0.0
        %670 = vmatpush1.msra.mxu0 0.0
        %671 = vmatprep.subr.mxu0 0.0
        %672 = vmatpush1.msra.mxu0 0.0
        %673 = vmatprep.subr.mxu0 0.0
        %674 = vmatpush1.msra.mxu0 0.0
        %675 = vmatprep.subr.mxu0 0.0
        %676 = vmatpush1.msra.mxu0 0.0
        %677 = vmatprep.mubr.f32.mxu0 0.0
        %678 = vmatmul.mubr.f32.gmra.mrb[0].mxu0 %v611
        %v679 = vpop.f32.mrb[0].mxu0
        %v680 = vadd.f32 %v606, %v679
        %v681 = vpop.f32.mrb[0].mxu0
        %v682 = vadd.f32 %v608, %v681
        %683 = vdwg.mxu0
        %s684 = scalar_lea.vmem [#allocation11], 16
        %v685 = vld [vmem:[%s684] sm:$0xff]
        %686 = vrot.lane.b32.xlu0 %v521, 126
        %v687 = vpop.permute.xlu0 %686
        %688 = vrot.lane.b32.xlu0 %v522, 126
        %v689 = vpop.permute.xlu0 %688
        %vm690 = vcmask 1031168
        %v691 = vsel %vm690, %v687, %v689
        %v695 = vsel %vm535, %v685, 0
        %697 = vmatprep.subr.mxu0 %v689
        %698 = vmatpush1.msra.mxu0 %v691
        %699 = vmatprep.subr.mxu0 0.0
        %700 = vmatpush1.msra.mxu0 0.0
        %701 = vmatprep.subr.mxu0 0.0
        %702 = vmatpush1.msra.mxu0 0.0
        %703 = vmatprep.subr.mxu0 0.0
        %704 = vmatpush1.msra.mxu0 0.0
        %705 = vmatprep.subr.mxu0 0.0
        %706 = vmatpush1.msra.mxu0 0.0
        %707 = vmatprep.subr.mxu0 0.0
        %708 = vmatpush1.msra.mxu0 0.0
        %709 = vmatprep.subr.mxu0 0.0
        %710 = vmatpush1.msra.mxu0 0.0
        %711 = vmatprep.subr.mxu0 0.0
        %712 = vmatpush1.msra.mxu0 0.0
        %713 = vmatprep.subr.mxu0 0.0
        %714 = vmatpush1.msra.mxu0 0.0
        %715 = vmatprep.subr.mxu0 0.0
        %716 = vmatpush1.msra.mxu0 0.0
        %717 = vmatprep.subr.mxu0 0.0
        %718 = vmatpush1.msra.mxu0 0.0
        %719 = vmatprep.subr.mxu0 0.0
        %720 = vmatpush1.msra.mxu0 0.0
        %721 = vmatprep.subr.mxu0 0.0
        %722 = vmatpush1.msra.mxu0 0.0
        %723 = vmatprep.subr.mxu0 0.0
        %724 = vmatpush1.msra.mxu0 0.0
        %725 = vmatprep.subr.mxu0 0.0
        %726 = vmatpush1.msra.mxu0 0.0
        %727 = vmatprep.subr.mxu0 0.0
        %728 = vmatpush1.msra.mxu0 0.0
        %729 = vmatprep.subr.mxu0 0.0
        %730 = vmatpush1.msra.mxu0 0.0
        %731 = vmatprep.subr.mxu0 0.0
        %732 = vmatpush1.msra.mxu0 0.0
        %733 = vmatprep.subr.mxu0 0.0
        %734 = vmatpush1.msra.mxu0 0.0
        %735 = vmatprep.subr.mxu0 0.0
        %736 = vmatpush1.msra.mxu0 0.0
        %737 = vmatprep.subr.mxu0 0.0
        %738 = vmatpush1.msra.mxu0 0.0
        %739 = vmatprep.subr.mxu0 0.0
        %740 = vmatpush1.msra.mxu0 0.0
        %741 = vmatprep.subr.mxu0 0.0
        %742 = vmatpush1.msra.mxu0 0.0
        %743 = vmatprep.subr.mxu0 0.0
        %744 = vmatpush1.msra.mxu0 0.0
        %745 = vmatprep.subr.mxu0 0.0
        %746 = vmatpush1.msra.mxu0 0.0
        %747 = vmatprep.subr.mxu0 0.0
        %748 = vmatpush1.msra.mxu0 0.0
        %749 = vmatprep.subr.mxu0 0.0
        %750 = vmatpush1.msra.mxu0 0.0
        %751 = vmatprep.subr.mxu0 0.0
        %752 = vmatpush1.msra.mxu0 0.0
        %753 = vmatprep.subr.mxu0 0.0
        %754 = vmatpush1.msra.mxu0 0.0
        %755 = vmatprep.subr.mxu0 0.0
        %756 = vmatpush1.msra.mxu0 0.0
        %757 = vmatprep.subr.mxu0 0.0
        %758 = vmatpush1.msra.mxu0 0.0
        %759 = vmatprep.subr.mxu0 0.0
        %760 = vmatpush1.msra.mxu0 0.0
        %761 = vmatprep.mubr.f32.mxu0 0.0
        %762 = vmatmul.mubr.f32.gmra.mrb[0].mxu0 %v695
        %v763 = vpop.f32.mrb[0].mxu0
        %v764 = vadd.f32 0.0, %v763
        %v765 = vpop.f32.mrb[0].mxu0
        %v766 = vadd.f32 0.0, %v765
        %767 = vdwg.mxu0
        %v768 = vadd.f32 %v680, %v764
        %v769 = vadd.f32 %v682, %v766
        %v770 = vld [vmem:[#allocation13] sm:$0xff]
        %772 = vset.pattern.permute.xlu0 0
        %773 = vperm.xlu0 %772, %v770
        %v774 = vpop.permute.xlu0 %773
        %v776 = vadd.f32 %v768, %v774
        %v777 = vadd.f32 %v769, %v774
        %vm778 = vcmp.gt.f32.partialorder %v776, 0.0
        %vm779 = vcmp.gt.f32.partialorder %v777, 0.0
        %v780 = vmul.f32 %v776, 0.1
        %v781 = vmul.f32 %v777, 0.1
        %v782 = vsel %vm778, %v776, %v780
        %v783 = vsel %vm779, %v777, %v781
        %786 = vrot.lane.b32.xlu0 %v782, 1
        %v787 = vpop.permute.xlu0 %786
        %788 = vrot.lane.b32.xlu0 %v783, 1
        %v789 = vpop.permute.xlu0 %788
        %vm790 = vcmask 7168
        %v791 = vsel %vm790, %v787, %v789
        %vm794 = vcmask 1047560
        %795 = vst.msk [vmem:[#allocation4] sm:$0xff] %vm794, %v787
        %vm796 = vcmask 89088
        %797 = vst.msk [vmem:[#allocation4 + $0x8] sm:$0xff] %vm796, %v791
        // Predicated region
        $region97: #{_lambda_.2} parent=47 // pred_check
          %p798 = pneg %p468
        $region98: #{_lambda_.2} parent=47 // pred_check_branch
          %800 = sbr.rel (%p798) target = $region100
        $region99: #{_lambda_.2} parent=47 // pred_region
          %vm801 = vcmask 48136
          %802 = vst.msk [vmem:[#allocation4] sm:$0xff] %vm801, 0.0
        $region100: #{_lambda_.2} parent=47 // pred_fallthru
          _
        // Predicated region
        $region101: #{_lambda_.2} parent=47 // pred_check
          %p803 = pneg %p473
        $region102: #{_lambda_.2} parent=47 // pred_check_branch
          %805 = sbr.rel (%p803) target = $region104
        $region103: #{_lambda_.2} parent=47 // pred_region
          %vm806 = vcmask 89136
          %807 = vst.msk [vmem:[#allocation4 + $0x8] sm:$0xff] %vm806, 0.0
        $region104: #{_lambda_.2} parent=47 // pred_fallthru
          _
        %v808 = vld [vmem:[#allocation14] sm:$0xff]
        %v809 = vld [vmem:[#allocation4] sm:$0xff]
        %v810 = vld [vmem:[#allocation4 + $0x8] sm:$0xff]
        %s811 = scalar_lea.vmem [#allocation14], 8
        %v812 = vld [vmem:[%s811] sm:$0xff]
        %815 = vrot.lane.b32.xlu0 %v809, 126
        %v816 = vpop.permute.xlu0 %815
        %817 = vrot.lane.b32.xlu0 %v810, 126
        %v818 = vpop.permute.xlu0 %817
        %v819 = vsel %vm690, %v816, %v818
        %v823 = vsel %vm535, %v812, 0
        %825 = vmatprep.subr.mxu0 %v818
        %826 = vmatpush1.msra.mxu0 %v819
        %827 = vmatprep.subr.mxu0 0.0
        %828 = vmatpush1.msra.mxu0 0.0
        %829 = vmatprep.subr.mxu0 0.0
        %830 = vmatpush1.msra.mxu0 0.0
        %831 = vmatprep.subr.mxu0 0.0
        %832 = vmatpush1.msra.mxu0 0.0
        %833 = vmatprep.subr.mxu0 0.0
        %834 = vmatpush1.msra.mxu0 0.0
        %835 = vmatprep.subr.mxu0 0.0
        %836 = vmatpush1.msra.mxu0 0.0
        %837 = vmatprep.subr.mxu0 0.0
        %838 = vmatpush1.msra.mxu0 0.0
        %839 = vmatprep.subr.mxu0 0.0
        %840 = vmatpush1.msra.mxu0 0.0
        %841 = vmatprep.subr.mxu0 0.0
        %842 = vmatpush1.msra.mxu0 0.0
        %843 = vmatprep.subr.mxu0 0.0
        %844 = vmatpush1.msra.mxu0 0.0
        %845 = vmatprep.subr.mxu0 0.0
        %846 = vmatpush1.msra.mxu0 0.0
        %847 = vmatprep.subr.mxu0 0.0
        %848 = vmatpush1.msra.mxu0 0.0
        %849 = vmatprep.subr.mxu0 0.0
        %850 = vmatpush1.msra.mxu0 0.0
        %851 = vmatprep.subr.mxu0 0.0
        %852 = vmatpush1.msra.mxu0 0.0
        %853 = vmatprep.subr.mxu0 0.0
        %854 = vmatpush1.msra.mxu0 0.0
        %855 = vmatprep.subr.mxu0 0.0
        %856 = vmatpush1.msra.mxu0 0.0
        %857 = vmatprep.subr.mxu0 0.0
        %858 = vmatpush1.msra.mxu0 0.0
        %859 = vmatprep.subr.mxu0 0.0
        %860 = vmatpush1.msra.mxu0 0.0
        %861 = vmatprep.subr.mxu0 0.0
        %862 = vmatpush1.msra.mxu0 0.0
        %863 = vmatprep.subr.mxu0 0.0
        %864 = vmatpush1.msra.mxu0 0.0
        %865 = vmatprep.subr.mxu0 0.0
        %866 = vmatpush1.msra.mxu0 0.0
        %867 = vmatprep.subr.mxu0 0.0
        %868 = vmatpush1.msra.mxu0 0.0
        %869 = vmatprep.subr.mxu0 0.0
        %870 = vmatpush1.msra.mxu0 0.0
        %871 = vmatprep.subr.mxu0 0.0
        %872 = vmatpush1.msra.mxu0 0.0
        %873 = vmatprep.subr.mxu0 0.0
        %874 = vmatpush1.msra.mxu0 0.0
        %875 = vmatprep.subr.mxu0 0.0
        %876 = vmatpush1.msra.mxu0 0.0
        %877 = vmatprep.subr.mxu0 0.0
        %878 = vmatpush1.msra.mxu0 0.0
        %879 = vmatprep.subr.mxu0 0.0
        %880 = vmatpush1.msra.mxu0 0.0
        %881 = vmatprep.subr.mxu0 0.0
        %882 = vmatpush1.msra.mxu0 0.0
        %883 = vmatprep.subr.mxu0 0.0
        %884 = vmatpush1.msra.mxu0 0.0
        %885 = vmatprep.subr.mxu0 0.0
        %886 = vmatpush1.msra.mxu0 0.0
        %887 = vmatprep.subr.mxu0 0.0
        %888 = vmatpush1.msra.mxu0 0.0
        %889 = vmatprep.mubr.f32.mxu0 0.0
        %890 = vmatmul.mubr.f32.gmra.mrb[0].mxu0 %v823
        %v891 = vpop.f32.mrb[0].mxu0
        %v892 = vadd.f32 0.0, %v891
        %v893 = vpop.f32.mrb[0].mxu0
        %v894 = vadd.f32 0.0, %v893
        %895 = vdwg.mxu0
        %896 = vrot.lane.b32.xlu0 %v809, 127
        %v897 = vpop.permute.xlu0 %896
        %898 = vrot.lane.b32.xlu0 %v810, 127
        %v899 = vpop.permute.xlu0 %898
        %v900 = vsel %vm531, %v897, %v899
        %v904 = vsel %vm535, %v808, 0
        %906 = vmatprep.subr.mxu0 %v899
        %907 = vmatpush1.msra.mxu0 %v900
        %908 = vmatprep.subr.mxu0 0.0
        %909 = vmatpush1.msra.mxu0 0.0
        %910 = vmatprep.subr.mxu0 0.0
        %911 = vmatpush1.msra.mxu0 0.0
        %912 = vmatprep.subr.mxu0 0.0
        %913 = vmatpush1.msra.mxu0 0.0
        %914 = vmatprep.subr.mxu0 0.0
        %915 = vmatpush1.msra.mxu0 0.0
        %916 = vmatprep.subr.mxu0 0.0
        %917 = vmatpush1.msra.mxu0 0.0
        %918 = vmatprep.subr.mxu0 0.0
        %919 = vmatpush1.msra.mxu0 0.0
        %920 = vmatprep.subr.mxu0 0.0
        %921 = vmatpush1.msra.mxu0 0.0
        %922 = vmatprep.subr.mxu0 0.0
        %923 = vmatpush1.msra.mxu0 0.0
        %924 = vmatprep.subr.mxu0 0.0
        %925 = vmatpush1.msra.mxu0 0.0
        %926 = vmatprep.subr.mxu0 0.0
        %927 = vmatpush1.msra.mxu0 0.0
        %928 = vmatprep.subr.mxu0 0.0
        %929 = vmatpush1.msra.mxu0 0.0
        %930 = vmatprep.subr.mxu0 0.0
        %931 = vmatpush1.msra.mxu0 0.0
        %932 = vmatprep.subr.mxu0 0.0
        %933 = vmatpush1.msra.mxu0 0.0
        %934 = vmatprep.subr.mxu0 0.0
        %935 = vmatpush1.msra.mxu0 0.0
        %936 = vmatprep.subr.mxu0 0.0
        %937 = vmatpush1.msra.mxu0 0.0
        %938 = vmatprep.subr.mxu0 0.0
        %939 = vmatpush1.msra.mxu0 0.0
        %940 = vmatprep.subr.mxu0 0.0
        %941 = vmatpush1.msra.mxu0 0.0
        %942 = vmatprep.subr.mxu0 0.0
        %943 = vmatpush1.msra.mxu0 0.0
        %944 = vmatprep.subr.mxu0 0.0
        %945 = vmatpush1.msra.mxu0 0.0
        %946 = vmatprep.subr.mxu0 0.0
        %947 = vmatpush1.msra.mxu0 0.0
        %948 = vmatprep.subr.mxu0 0.0
        %949 = vmatpush1.msra.mxu0 0.0
        %950 = vmatprep.subr.mxu0 0.0
        %951 = vmatpush1.msra.mxu0 0.0
        %952 = vmatprep.subr.mxu0 0.0
        %953 = vmatpush1.msra.mxu0 0.0
        %954 = vmatprep.subr.mxu0 0.0
        %955 = vmatpush1.msra.mxu0 0.0
        %956 = vmatprep.subr.mxu0 0.0
        %957 = vmatpush1.msra.mxu0 0.0
        %958 = vmatprep.subr.mxu0 0.0
        %959 = vmatpush1.msra.mxu0 0.0
        %960 = vmatprep.subr.mxu0 0.0
        %961 = vmatpush1.msra.mxu0 0.0
        %962 = vmatprep.subr.mxu0 0.0
        %963 = vmatpush1.msra.mxu0 0.0
        %964 = vmatprep.subr.mxu0 0.0
        %965 = vmatpush1.msra.mxu0 0.0
        %966 = vmatprep.subr.mxu0 0.0
        %967 = vmatpush1.msra.mxu0 0.0
        %968 = vmatprep.subr.mxu0 0.0
        %969 = vmatpush1.msra.mxu0 0.0
        %970 = vmatprep.mubr.f32.mxu0 0.0
        %971 = vmatmul.mubr.f32.gmra.mrb[0].mxu0 %v904
        %v972 = vpop.f32.mrb[0].mxu0
        %v973 = vadd.f32 %v892, %v972
        %v974 = vpop.f32.mrb[0].mxu0
        %v975 = vadd.f32 %v894, %v974
        %976 = vdwg.mxu0
        %s977 = scalar_lea.vmem [#allocation14], 16
        %v978 = vld [vmem:[%s977] sm:$0xff]
        %979 = vrot.lane.b32.xlu0 %v809, 125
        %v980 = vpop.permute.xlu0 %979
        %981 = vrot.lane.b32.xlu0 %v810, 125
        %v982 = vpop.permute.xlu0 %981
        %vm983 = vcmask 1022976
        %v984 = vsel %vm983, %v980, %v982
        %v988 = vsel %vm535, %v978, 0
        %990 = vmatprep.subr.mxu0 %v982
        %991 = vmatpush1.msra.mxu0 %v984
        %992 = vmatprep.subr.mxu0 0.0
        %993 = vmatpush1.msra.mxu0 0.0
        %994 = vmatprep.subr.mxu0 0.0
        %995 = vmatpush1.msra.mxu0 0.0
        %996 = vmatprep.subr.mxu0 0.0
        %997 = vmatpush1.msra.mxu0 0.0
        %998 = vmatprep.subr.mxu0 0.0
        %999 = vmatpush1.msra.mxu0 0.0
        %1000 = vmatprep.subr.mxu0 0.0
        %1001 = vmatpush1.msra.mxu0 0.0
        %1002 = vmatprep.subr.mxu0 0.0
        %1003 = vmatpush1.msra.mxu0 0.0
        %1004 = vmatprep.subr.mxu0 0.0
        %1005 = vmatpush1.msra.mxu0 0.0
        %1006 = vmatprep.subr.mxu0 0.0
        %1007 = vmatpush1.msra.mxu0 0.0
        %1008 = vmatprep.subr.mxu0 0.0
        %1009 = vmatpush1.msra.mxu0 0.0
        %1010 = vmatprep.subr.mxu0 0.0
        %1011 = vmatpush1.msra.mxu0 0.0
        %1012 = vmatprep.subr.mxu0 0.0
        %1013 = vmatpush1.msra.mxu0 0.0
        %1014 = vmatprep.subr.mxu0 0.0
        %1015 = vmatpush1.msra.mxu0 0.0
        %1016 = vmatprep.subr.mxu0 0.0
        %1017 = vmatpush1.msra.mxu0 0.0
        %1018 = vmatprep.subr.mxu0 0.0
        %1019 = vmatpush1.msra.mxu0 0.0
        %1020 = vmatprep.subr.mxu0 0.0
        %1021 = vmatpush1.msra.mxu0 0.0
        %1022 = vmatprep.subr.mxu0 0.0
        %1023 = vmatpush1.msra.mxu0 0.0
        %1024 = vmatprep.subr.mxu0 0.0
        %1025 = vmatpush1.msra.mxu0 0.0
        %1026 = vmatprep.subr.mxu0 0.0
        %1027 = vmatpush1.msra.mxu0 0.0
        %1028 = vmatprep.subr.mxu0 0.0
        %1029 = vmatpush1.msra.mxu0 0.0
        %1030 = vmatprep.subr.mxu0 0.0
        %1031 = vmatpush1.msra.mxu0 0.0
        %1032 = vmatprep.subr.mxu0 0.0
        %1033 = vmatpush1.msra.mxu0 0.0
        %1034 = vmatprep.subr.mxu0 0.0
        %1035 = vmatpush1.msra.mxu0 0.0
        %1036 = vmatprep.subr.mxu0 0.0
        %1037 = vmatpush1.msra.mxu0 0.0
        %1038 = vmatprep.subr.mxu0 0.0
        %1039 = vmatpush1.msra.mxu0 0.0
        %1040 = vmatprep.subr.mxu0 0.0
        %1041 = vmatpush1.msra.mxu0 0.0
        %1042 = vmatprep.subr.mxu0 0.0
        %1043 = vmatpush1.msra.mxu0 0.0
        %1044 = vmatprep.subr.mxu0 0.0
        %1045 = vmatpush1.msra.mxu0 0.0
        %1046 = vmatprep.subr.mxu0 0.0
        %1047 = vmatpush1.msra.mxu0 0.0
        %1048 = vmatprep.subr.mxu0 0.0
        %1049 = vmatpush1.msra.mxu0 0.0
        %1050 = vmatprep.subr.mxu0 0.0
        %1051 = vmatpush1.msra.mxu0 0.0
        %1052 = vmatprep.subr.mxu0 0.0
        %1053 = vmatpush1.msra.mxu0 0.0
        %1054 = vmatprep.mubr.f32.mxu0 0.0
        %1055 = vmatmul.mubr.f32.gmra.mrb[0].mxu0 %v988
        %v1056 = vpop.f32.mrb[0].mxu0
        %v1057 = vadd.f32 0.0, %v1056
        %v1058 = vpop.f32.mrb[0].mxu0
        %v1059 = vadd.f32 0.0, %v1058
        %1060 = vdwg.mxu0
        %v1061 = vadd.f32 %v973, %v1057
        %v1062 = vadd.f32 %v975, %v1059
        %v1063 = vld [vmem:[%s6] sm:$0xff]
        %1065 = vset.pattern.permute.xlu0 0
        %1066 = vperm.xlu0 %1065, %v1063
        %v1067 = vpop.permute.xlu0 %1066
        %v1069 = vadd.f32 %v1061, %v1067
        %v1070 = vadd.f32 %v1062, %v1067
        %v1071 = vld [vmem:[#allocation2] sm:$0xff]
        %v1072 = vld [vmem:[#allocation2 + $0x8] sm:$0xff]
        %1075 = vrot.lane.b32.xlu0 %v1071, 126
        %v1076 = vpop.permute.xlu0 %1075
        %1077 = vrot.lane.b32.xlu0 %v1072, 126
        %v1078 = vpop.permute.xlu0 %1077
        %v1079 = vsel %vm690, %v1076, %v1078
        %v1082 = vadd.f32 %v1069, %v1079
        %v1083 = vadd.f32 %v1070, %v1078
        %1086 = vrot.lane.b32.xlu0 %v1082, 2
        %v1087 = vpop.permute.xlu0 %1086
        %1088 = vrot.lane.b32.xlu0 %v1083, 2
        %v1089 = vpop.permute.xlu0 %1088
        %vm1090 = vcmask 15360
        %v1091 = vsel %vm1090, %v1087, %v1089
        %vm1094 = vcmask 1047568
        %1095 = vst.msk [vmem:[#allocation2] sm:$0xff] %vm1094, %v1087
        %vm1096 = vcmask 80896
        %1097 = vst.msk [vmem:[#allocation2 + $0x8] sm:$0xff] %vm1096, %v1091
        %v1098 = vld [vmem:[#allocation2] sm:$0xff]
        %v1099 = vld [vmem:[#allocation2 + $0x8] sm:$0xff]
        %vm1100 = vcmp.gt.f32.partialorder %v1098, 0.0
        %vm1101 = vcmp.gt.f32.partialorder %v1099, 0.0
        %v1102 = vmul.f32 %v1098, 0.1
        %v1103 = vmul.f32 %v1099, 0.1
        %v1104 = vsel %vm1100, %v1098, %v1102
        %v1105 = vsel %vm1101, %v1099, %v1103
        %1106 = vst.msk [vmem:[#allocation3] sm:$0xff] %vm1094, %v1104
        %1107 = vst.msk [vmem:[#allocation3 + $0x8] sm:$0xff] %vm1096, %v1105
        // Predicated region
        $region105: #{_lambda_.2} parent=47 // pred_check
          %p1108 = pneg %p468
        $region106: #{_lambda_.2} parent=47 // pred_check_branch
          %1110 = sbr.rel (%p1108) target = $region108
        $region107: #{_lambda_.2} parent=47 // pred_region
          %vm1111 = vcmask 48144
          %1112 = vst.msk [vmem:[#allocation3] sm:$0xff] %vm1111, 0.0
        $region108: #{_lambda_.2} parent=47 // pred_fallthru
          _
        // Predicated region
        $region109: #{_lambda_.2} parent=47 // pred_check
          %p1113 = pneg %p473
        $region110: #{_lambda_.2} parent=47 // pred_check_branch
          %1115 = sbr.rel (%p1113) target = $region112
        $region111: #{_lambda_.2} parent=47 // pred_region
          %vm1116 = vcmask 80944
          %1117 = vst.msk [vmem:[#allocation3 + $0x8] sm:$0xff] %vm1116, 0.0
        $region112: #{_lambda_.2} parent=47 // pred_fallthru
          _
        %s1118 = scalar_lea.vmem [#allocation11], 24
        %v1119 = vld [vmem:[%s1118] sm:$0xff]
        %v1120 = vld [vmem:[#allocation3] sm:$0xff]
        %v1121 = vld [vmem:[#allocation3 + $0x8] sm:$0xff]
        %s1122 = scalar_lea.vmem [#allocation11], 32
        %v1123 = vld [vmem:[%s1122] sm:$0xff]
        %1126 = vrot.lane.b32.xlu0 %v1120, 123
        %v1127 = vpop.permute.xlu0 %1126
        %1128 = vrot.lane.b32.xlu0 %v1121, 123
        %v1129 = vpop.permute.xlu0 %1128
        %vm1130 = vcmask 1006592
        %v1131 = vsel %vm1130, %v1127, %v1129
        %v1135 = vsel %vm535, %v1123, 0
        %1137 = vmatprep.subr.mxu0 %v1129
        %1138 = vmatpush1.msra.mxu0 %v1131
        %1139 = vmatprep.subr.mxu0 0.0
        %1140 = vmatpush1.msra.mxu0 0.0
        %1141 = vmatprep.subr.mxu0 0.0
        %1142 = vmatpush1.msra.mxu0 0.0
        %1143 = vmatprep.subr.mxu0 0.0
        %1144 = vmatpush1.msra.mxu0 0.0
        %1145 = vmatprep.subr.mxu0 0.0
        %1146 = vmatpush1.msra.mxu0 0.0
        %1147 = vmatprep.subr.mxu0 0.0
        %1148 = vmatpush1.msra.mxu0 0.0
        %1149 = vmatprep.subr.mxu0 0.0
        %1150 = vmatpush1.msra.mxu0 0.0
        %1151 = vmatprep.subr.mxu0 0.0
        %1152 = vmatpush1.msra.mxu0 0.0
        %1153 = vmatprep.subr.mxu0 0.0
        %1154 = vmatpush1.msra.mxu0 0.0
        %1155 = vmatprep.subr.mxu0 0.0
        %1156 = vmatpush1.msra.mxu0 0.0
        %1157 = vmatprep.subr.mxu0 0.0
        %1158 = vmatpush1.msra.mxu0 0.0
        %1159 = vmatprep.subr.mxu0 0.0
        %1160 = vmatpush1.msra.mxu0 0.0
        %1161 = vmatprep.subr.mxu0 0.0
        %1162 = vmatpush1.msra.mxu0 0.0
        %1163 = vmatprep.subr.mxu0 0.0
        %1164 = vmatpush1.msra.mxu0 0.0
        %1165 = vmatprep.subr.mxu0 0.0
        %1166 = vmatpush1.msra.mxu0 0.0
        %1167 = vmatprep.subr.mxu0 0.0
        %1168 = vmatpush1.msra.mxu0 0.0
        %1169 = vmatprep.subr.mxu0 0.0
        %1170 = vmatpush1.msra.mxu0 0.0
        %1171 = vmatprep.subr.mxu0 0.0
        %1172 = vmatpush1.msra.mxu0 0.0
        %1173 = vmatprep.subr.mxu0 0.0
        %1174 = vmatpush1.msra.mxu0 0.0
        %1175 = vmatprep.subr.mxu0 0.0
        %1176 = vmatpush1.msra.mxu0 0.0
        %1177 = vmatprep.subr.mxu0 0.0
        %1178 = vmatpush1.msra.mxu0 0.0
        %1179 = vmatprep.subr.mxu0 0.0
        %1180 = vmatpush1.msra.mxu0 0.0
        %1181 = vmatprep.subr.mxu0 0.0
        %1182 = vmatpush1.msra.mxu0 0.0
        %1183 = vmatprep.subr.mxu0 0.0
        %1184 = vmatpush1.msra.mxu0 0.0
        %1185 = vmatprep.subr.mxu0 0.0
        %1186 = vmatpush1.msra.mxu0 0.0
        %1187 = vmatprep.subr.mxu0 0.0
        %1188 = vmatpush1.msra.mxu0 0.0
        %1189 = vmatprep.subr.mxu0 0.0
        %1190 = vmatpush1.msra.mxu0 0.0
        %1191 = vmatprep.subr.mxu0 0.0
        %1192 = vmatpush1.msra.mxu0 0.0
        %1193 = vmatprep.subr.mxu0 0.0
        %1194 = vmatpush1.msra.mxu0 0.0
        %1195 = vmatprep.subr.mxu0 0.0
        %1196 = vmatpush1.msra.mxu0 0.0
        %1197 = vmatprep.subr.mxu0 0.0
        %1198 = vmatpush1.msra.mxu0 0.0
        %1199 = vmatprep.subr.mxu0 0.0
        %1200 = vmatpush1.msra.mxu0 0.0
        %1201 = vmatprep.mubr.f32.mxu0 0.0
        %1202 = vmatmul.mubr.f32.gmra.mrb[0].mxu0 %v1135
        %v1203 = vpop.f32.mrb[0].mxu0
        %v1204 = vadd.f32 0.0, %v1203
        %v1205 = vpop.f32.mrb[0].mxu0
        %v1206 = vadd.f32 0.0, %v1205
        %1207 = vdwg.mxu0
        %1208 = vrot.lane.b32.xlu0 %v1120, 126
        %v1209 = vpop.permute.xlu0 %1208
        %1210 = vrot.lane.b32.xlu0 %v1121, 126
        %v1211 = vpop.permute.xlu0 %1210
        %v1212 = vsel %vm690, %v1209, %v1211
        %v1216 = vsel %vm535, %v1119, 0
        %1218 = vmatprep.subr.mxu0 %v1211
        %1219 = vmatpush1.msra.mxu0 %v1212
        %1220 = vmatprep.subr.mxu0 0.0
        %1221 = vmatpush1.msra.mxu0 0.0
        %1222 = vmatprep.subr.mxu0 0.0
        %1223 = vmatpush1.msra.mxu0 0.0
        %1224 = vmatprep.subr.mxu0 0.0
        %1225 = vmatpush1.msra.mxu0 0.0
        %1226 = vmatprep.subr.mxu0 0.0
        %1227 = vmatpush1.msra.mxu0 0.0
        %1228 = vmatprep.subr.mxu0 0.0
        %1229 = vmatpush1.msra.mxu0 0.0
        %1230 = vmatprep.subr.mxu0 0.0
        %1231 = vmatpush1.msra.mxu0 0.0
        %1232 = vmatprep.subr.mxu0 0.0
        %1233 = vmatpush1.msra.mxu0 0.0
        %1234 = vmatprep.subr.mxu0 0.0
        %1235 = vmatpush1.msra.mxu0 0.0
        %1236 = vmatprep.subr.mxu0 0.0
        %1237 = vmatpush1.msra.mxu0 0.0
        %1238 = vmatprep.subr.mxu0 0.0
        %1239 = vmatpush1.msra.mxu0 0.0
        %1240 = vmatprep.subr.mxu0 0.0
        %1241 = vmatpush1.msra.mxu0 0.0
        %1242 = vmatprep.subr.mxu0 0.0
        %1243 = vmatpush1.msra.mxu0 0.0
        %1244 = vmatprep.subr.mxu0 0.0
        %1245 = vmatpush1.msra.mxu0 0.0
        %1246 = vmatprep.subr.mxu0 0.0
        %1247 = vmatpush1.msra.mxu0 0.0
        %1248 = vmatprep.subr.mxu0 0.0
        %1249 = vmatpush1.msra.mxu0 0.0
        %1250 = vmatprep.subr.mxu0 0.0
        %1251 = vmatpush1.msra.mxu0 0.0
        %1252 = vmatprep.subr.mxu0 0.0
        %1253 = vmatpush1.msra.mxu0 0.0
        %1254 = vmatprep.subr.mxu0 0.0
        %1255 = vmatpush1.msra.mxu0 0.0
        %1256 = vmatprep.subr.mxu0 0.0
        %1257 = vmatpush1.msra.mxu0 0.0
        %1258 = vmatprep.subr.mxu0 0.0
        %1259 = vmatpush1.msra.mxu0 0.0
        %1260 = vmatprep.subr.mxu0 0.0
        %1261 = vmatpush1.msra.mxu0 0.0
        %1262 = vmatprep.subr.mxu0 0.0
        %1263 = vmatpush1.msra.mxu0 0.0
        %1264 = vmatprep.subr.mxu0 0.0
        %1265 = vmatpush1.msra.mxu0 0.0
        %1266 = vmatprep.subr.mxu0 0.0
        %1267 = vmatpush1.msra.mxu0 0.0
        %1268 = vmatprep.subr.mxu0 0.0
        %1269 = vmatpush1.msra.mxu0 0.0
        %1270 = vmatprep.subr.mxu0 0.0
        %1271 = vmatpush1.msra.mxu0 0.0
        %1272 = vmatprep.subr.mxu0 0.0
        %1273 = vmatpush1.msra.mxu0 0.0
        %1274 = vmatprep.subr.mxu0 0.0
        %1275 = vmatpush1.msra.mxu0 0.0
        %1276 = vmatprep.subr.mxu0 0.0
        %1277 = vmatpush1.msra.mxu0 0.0
        %1278 = vmatprep.subr.mxu0 0.0
        %1279 = vmatpush1.msra.mxu0 0.0
        %1280 = vmatprep.subr.mxu0 0.0
        %1281 = vmatpush1.msra.mxu0 0.0
        %1282 = vmatprep.mubr.f32.mxu0 0.0
        %1283 = vmatmul.mubr.f32.gmra.mrb[0].mxu0 %v1216
        %v1284 = vpop.f32.mrb[0].mxu0
        %v1285 = vadd.f32 %v1204, %v1284
        %v1286 = vpop.f32.mrb[0].mxu0
        %v1287 = vadd.f32 %v1206, %v1286
        %1288 = vdwg.mxu0
        %s1289 = scalar_lea.vmem [#allocation11], 40
        %v1290 = vld [vmem:[%s1289] sm:$0xff]
        %1291 = vrot.lane.b32.xlu0 %v1120, 120
        %v1292 = vpop.permute.xlu0 %1291
        %1293 = vrot.lane.b32.xlu0 %v1121, 120
        %v1294 = vpop.permute.xlu0 %1293
        %vm1295 = vcmask 982016
        %v1296 = vsel %vm1295, %v1292, %v1294
        %v1300 = vsel %vm535, %v1290, 0
        %1302 = vmatprep.subr.mxu0 %v1294
        %1303 = vmatpush1.msra.mxu0 %v1296
        %1304 = vmatprep.subr.mxu0 0.0
        %1305 = vmatpush1.msra.mxu0 0.0
        %1306 = vmatprep.subr.mxu0 0.0
        %1307 = vmatpush1.msra.mxu0 0.0
        %1308 = vmatprep.subr.mxu0 0.0
        %1309 = vmatpush1.msra.mxu0 0.0
        %1310 = vmatprep.subr.mxu0 0.0
        %1311 = vmatpush1.msra.mxu0 0.0
        %1312 = vmatprep.subr.mxu0 0.0
        %1313 = vmatpush1.msra.mxu0 0.0
        %1314 = vmatprep.subr.mxu0 0.0
        %1315 = vmatpush1.msra.mxu0 0.0
        %1316 = vmatprep.subr.mxu0 0.0
        %1317 = vmatpush1.msra.mxu0 0.0
        %1318 = vmatprep.subr.mxu0 0.0
        %1319 = vmatpush1.msra.mxu0 0.0
        %1320 = vmatprep.subr.mxu0 0.0
        %1321 = vmatpush1.msra.mxu0 0.0
        %1322 = vmatprep.subr.mxu0 0.0
        %1323 = vmatpush1.msra.mxu0 0.0
        %1324 = vmatprep.subr.mxu0 0.0
        %1325 = vmatpush1.msra.mxu0 0.0
        %1326 = vmatprep.subr.mxu0 0.0
        %1327 = vmatpush1.msra.mxu0 0.0
        %1328 = vmatprep.subr.mxu0 0.0
        %1329 = vmatpush1.msra.mxu0 0.0
        %1330 = vmatprep.subr.mxu0 0.0
        %1331 = vmatpush1.msra.mxu0 0.0
        %1332 = vmatprep.subr.mxu0 0.0
        %1333 = vmatpush1.msra.mxu0 0.0
        %1334 = vmatprep.subr.mxu0 0.0
        %1335 = vmatpush1.msra.mxu0 0.0
        %1336 = vmatprep.subr.mxu0 0.0
        %1337 = vmatpush1.msra.mxu0 0.0
        %1338 = vmatprep.subr.mxu0 0.0
        %1339 = vmatpush1.msra.mxu0 0.0
        %1340 = vmatprep.subr.mxu0 0.0
        %1341 = vmatpush1.msra.mxu0 0.0
        %1342 = vmatprep.subr.mxu0 0.0
        %1343 = vmatpush1.msra.mxu0 0.0
        %1344 = vmatprep.subr.mxu0 0.0
        %1345 = vmatpush1.msra.mxu0 0.0
        %1346 = vmatprep.subr.mxu0 0.0
        %1347 = vmatpush1.msra.mxu0 0.0
        %1348 = vmatprep.subr.mxu0 0.0
        %1349 = vmatpush1.msra.mxu0 0.0
        %1350 = vmatprep.subr.mxu0 0.0
        %1351 = vmatpush1.msra.mxu0 0.0
        %1352 = vmatprep.subr.mxu0 0.0
        %1353 = vmatpush1.msra.mxu0 0.0
        %1354 = vmatprep.subr.mxu0 0.0
        %1355 = vmatpush1.msra.mxu0 0.0
        %1356 = vmatprep.subr.mxu0 0.0
        %1357 = vmatpush1.msra.mxu0 0.0
        %1358 = vmatprep.subr.mxu0 0.0
        %1359 = vmatpush1.msra.mxu0 0.0
        %1360 = vmatprep.subr.mxu0 0.0
        %1361 = vmatpush1.msra.mxu0 0.0
        %1362 = vmatprep.subr.mxu0 0.0
        %1363 = vmatpush1.msra.mxu0 0.0
        %1364 = vmatprep.subr.mxu0 0.0
        %1365 = vmatpush1.msra.mxu0 0.0
        %1366 = vmatprep.mubr.f32.mxu0 0.0
        %1367 = vmatmul.mubr.f32.gmra.mrb[0].mxu0 %v1300
        %v1368 = vpop.f32.mrb[0].mxu0
        %v1369 = vadd.f32 0.0, %v1368
        %v1370 = vpop.f32.mrb[0].mxu0
        %v1371 = vadd.f32 0.0, %v1370
        %1372 = vdwg.mxu0
        %v1373 = vadd.f32 %v1285, %v1369
        %v1374 = vadd.f32 %v1287, %v1371
        %s1375 = scalar_lea.vmem [#allocation13], 8
        %v1376 = vld [vmem:[%s1375] sm:$0xff]
        %1378 = vset.pattern.permute.xlu0 0
        %1379 = vperm.xlu0 %1378, %v1376
        %v1380 = vpop.permute.xlu0 %1379
        %v1382 = vadd.f32 %v1373, %v1380
        %v1383 = vadd.f32 %v1374, %v1380
        %vm1384 = vcmp.gt.f32.partialorder %v1382, 0.0
        %vm1385 = vcmp.gt.f32.partialorder %v1383, 0.0
        %v1386 = vmul.f32 %v1382, 0.1
        %v1387 = vmul.f32 %v1383, 0.1
        %v1388 = vsel %vm1384, %v1382, %v1386
        %v1389 = vsel %vm1385, %v1383, %v1387
        %1392 = vrot.lane.b32.xlu0 %v1388, 5
        %v1393 = vpop.permute.xlu0 %1392
        %1394 = vrot.lane.b32.xlu0 %v1389, 5
        %v1395 = vpop.permute.xlu0 %1394
        %vm1396 = vcmask 39936
        %v1397 = vsel %vm1396, %v1393, %v1395
        %vm1400 = vcmask 1047592
        %1401 = vst.msk [vmem:[#allocation4] sm:$0xff] %vm1400, %v1393
        %vm1402 = vcmask 56320
        %1403 = vst.msk [vmem:[#allocation4 + $0x8] sm:$0xff] %vm1402, %v1397
        // Predicated region
        $region113: #{_lambda_.2} parent=47 // pred_check
          %p1404 = pneg %p468
        $region114: #{_lambda_.2} parent=47 // pred_check_branch
          %1406 = sbr.rel (%p1404) target = $region116
        $region115: #{_lambda_.2} parent=47 // pred_region
          %vm1407 = vcmask 48168
          %1408 = vst.msk [vmem:[#allocation4] sm:$0xff] %vm1407, 0.0
        $region116: #{_lambda_.2} parent=47 // pred_fallthru
          _
        // Predicated region
        $region117: #{_lambda_.2} parent=47 // pred_check
          %p1409 = pneg %p473
        $region118: #{_lambda_.2} parent=47 // pred_check_branch
          %1411 = sbr.rel (%p1409) target = $region120
        $region119: #{_lambda_.2} parent=47 // pred_region
          %vm1412 = vcmask 56368
          %1413 = vst.msk [vmem:[#allocation4 + $0x8] sm:$0xff] %vm1412, 0.0
        $region120: #{_lambda_.2} parent=47 // pred_fallthru
          _
        %s1414 = scalar_lea.vmem [#allocation14], 24
        %v1415 = vld [vmem:[%s1414] sm:$0xff]
        %v1416 = vld [vmem:[#allocation4] sm:$0xff]
        %v1417 = vld [vmem:[#allocation4 + $0x8] sm:$0xff]
        %s1418 = scalar_lea.vmem [#allocation14], 32
        %v1419 = vld [vmem:[%s1418] sm:$0xff]
        %1422 = vrot.lane.b32.xlu0 %v1416, 122
        %v1423 = vpop.permute.xlu0 %1422
        %1424 = vrot.lane.b32.xlu0 %v1417, 122
        %v1425 = vpop.permute.xlu0 %1424
        %vm1426 = vcmask 998400
        %v1427 = vsel %vm1426, %v1423, %v1425
        %v1430 = vsel %vm535, %v1419, 0
        %1432 = vmatprep.subr.mxu0 0.0
        %1433 = vmatpush1.msra.mxu0 %v1427
        %1434 = vmatprep.subr.mxu0 0.0
        %1435 = vmatpush1.msra.mxu0 0.0
        %1436 = vmatprep.subr.mxu0 0.0
        %1437 = vmatpush1.msra.mxu0 0.0
        %1438 = vmatprep.subr.mxu0 0.0
        %1439 = vmatpush1.msra.mxu0 0.0
        %1440 = vmatprep.subr.mxu0 0.0
        %1441 = vmatpush1.msra.mxu0 0.0
        %1442 = vmatprep.subr.mxu0 0.0
        %1443 = vmatpush1.msra.mxu0 0.0
        %1444 = vmatprep.subr.mxu0 0.0
        %1445 = vmatpush1.msra.mxu0 0.0
        %1446 = vmatprep.subr.mxu0 0.0
        %1447 = vmatpush1.msra.mxu0 0.0
        %1448 = vmatprep.subr.mxu0 0.0
        %1449 = vmatpush1.msra.mxu0 0.0
        %1450 = vmatprep.subr.mxu0 0.0
        %1451 = vmatpush1.msra.mxu0 0.0
        %1452 = vmatprep.subr.mxu0 0.0
        %1453 = vmatpush1.msra.mxu0 0.0
        %1454 = vmatprep.subr.mxu0 0.0
        %1455 = vmatpush1.msra.mxu0 0.0
        %1456 = vmatprep.subr.mxu0 0.0
        %1457 = vmatpush1.msra.mxu0 0.0
        %1458 = vmatprep.subr.mxu0 0.0
        %1459 = vmatpush1.msra.mxu0 0.0
        %1460 = vmatprep.subr.mxu0 0.0
        %1461 = vmatpush1.msra.mxu0 0.0
        %1462 = vmatprep.subr.mxu0 0.0
        %1463 = vmatpush1.msra.mxu0 0.0
        %1464 = vmatprep.subr.mxu0 0.0
        %1465 = vmatpush1.msra.mxu0 0.0
        %1466 = vmatprep.subr.mxu0 0.0
        %1467 = vmatpush1.msra.mxu0 0.0
        %1468 = vmatprep.subr.mxu0 0.0
        %1469 = vmatpush1.msra.mxu0 0.0
        %1470 = vmatprep.subr.mxu0 0.0
        %1471 = vmatpush1.msra.mxu0 0.0
        %1472 = vmatprep.subr.mxu0 0.0
        %1473 = vmatpush1.msra.mxu0 0.0
        %1474 = vmatprep.subr.mxu0 0.0
        %1475 = vmatpush1.msra.mxu0 0.0
        %1476 = vmatprep.subr.mxu0 0.0
        %1477 = vmatpush1.msra.mxu0 0.0
        %1478 = vmatprep.subr.mxu0 0.0
        %1479 = vmatpush1.msra.mxu0 0.0
        %1480 = vmatprep.subr.mxu0 0.0
        %1481 = vmatpush1.msra.mxu0 0.0
        %1482 = vmatprep.subr.mxu0 0.0
        %1483 = vmatpush1.msra.mxu0 0.0
        %1484 = vmatprep.subr.mxu0 0.0
        %1485 = vmatpush1.msra.mxu0 0.0
        %1486 = vmatprep.subr.mxu0 0.0
        %1487 = vmatpush1.msra.mxu0 0.0
        %1488 = vmatprep.subr.mxu0 0.0
        %1489 = vmatpush1.msra.mxu0 0.0
        %1490 = vmatprep.subr.mxu0 0.0
        %1491 = vmatpush1.msra.mxu0 0.0
        %1492 = vmatprep.subr.mxu0 0.0
        %1493 = vmatpush1.msra.mxu0 0.0
        %1494 = vmatprep.subr.mxu0 0.0
        %1495 = vmatpush1.msra.mxu0 0.0
        %1496 = vmatprep.mubr.f32.mxu0 0.0
        %1497 = vmatmul.mubr.f32.gmra.mrb[0].mxu0 %v1430
        %v1498 = vpop.f32.mrb[0].mxu0
        %v1499 = vadd.f32 0.0, %v1498
        %v1500 = vpop.f32.mrb[0].mxu0
        %1501 = vdwg.mxu0
        %1502 = vrot.lane.b32.xlu0 %v1416, 123
        %v1503 = vpop.permute.xlu0 %1502
        %1504 = vrot.lane.b32.xlu0 %v1417, 123
        %v1505 = vpop.permute.xlu0 %1504
        %v1506 = vsel %vm1130, %v1503, %v1505
        %v1509 = vsel %vm535, %v1415, 0
        %1511 = vmatprep.subr.mxu0 0.0
        %1512 = vmatpush1.msra.mxu0 %v1506
        %1513 = vmatprep.subr.mxu0 0.0
        %1514 = vmatpush1.msra.mxu0 0.0
        %1515 = vmatprep.subr.mxu0 0.0
        %1516 = vmatpush1.msra.mxu0 0.0
        %1517 = vmatprep.subr.mxu0 0.0
        %1518 = vmatpush1.msra.mxu0 0.0
        %1519 = vmatprep.subr.mxu0 0.0
        %1520 = vmatpush1.msra.mxu0 0.0
        %1521 = vmatprep.subr.mxu0 0.0
        %1522 = vmatpush1.msra.mxu0 0.0
        %1523 = vmatprep.subr.mxu0 0.0
        %1524 = vmatpush1.msra.mxu0 0.0
        %1525 = vmatprep.subr.mxu0 0.0
        %1526 = vmatpush1.msra.mxu0 0.0
        %1527 = vmatprep.subr.mxu0 0.0
        %1528 = vmatpush1.msra.mxu0 0.0
        %1529 = vmatprep.subr.mxu0 0.0
        %1530 = vmatpush1.msra.mxu0 0.0
        %1531 = vmatprep.subr.mxu0 0.0
        %1532 = vmatpush1.msra.mxu0 0.0
        %1533 = vmatprep.subr.mxu0 0.0
        %1534 = vmatpush1.msra.mxu0 0.0
        %1535 = vmatprep.subr.mxu0 0.0
        %1536 = vmatpush1.msra.mxu0 0.0
        %1537 = vmatprep.subr.mxu0 0.0
        %1538 = vmatpush1.msra.mxu0 0.0
        %1539 = vmatprep.subr.mxu0 0.0
        %1540 = vmatpush1.msra.mxu0 0.0
        %1541 = vmatprep.subr.mxu0 0.0
        %1542 = vmatpush1.msra.mxu0 0.0
        %1543 = vmatprep.subr.mxu0 0.0
        %1544 = vmatpush1.msra.mxu0 0.0
        %1545 = vmatprep.subr.mxu0 0.0
        %1546 = vmatpush1.msra.mxu0 0.0
        %1547 = vmatprep.subr.mxu0 0.0
        %1548 = vmatpush1.msra.mxu0 0.0
        %1549 = vmatprep.subr.mxu0 0.0
        %1550 = vmatpush1.msra.mxu0 0.0
        %1551 = vmatprep.subr.mxu0 0.0
        %1552 = vmatpush1.msra.mxu0 0.0
        %1553 = vmatprep.subr.mxu0 0.0
        %1554 = vmatpush1.msra.mxu0 0.0
        %1555 = vmatprep.subr.mxu0 0.0
        %1556 = vmatpush1.msra.mxu0 0.0
        %1557 = vmatprep.subr.mxu0 0.0
        %1558 = vmatpush1.msra.mxu0 0.0
        %1559 = vmatprep.subr.mxu0 0.0
        %1560 = vmatpush1.msra.mxu0 0.0
        %1561 = vmatprep.subr.mxu0 0.0
        %1562 = vmatpush1.msra.mxu0 0.0
        %1563 = vmatprep.subr.mxu0 0.0
        %1564 = vmatpush1.msra.mxu0 0.0
        %1565 = vmatprep.subr.mxu0 0.0
        %1566 = vmatpush1.msra.mxu0 0.0
        %1567 = vmatprep.subr.mxu0 0.0
        %1568 = vmatpush1.msra.mxu0 0.0
        %1569 = vmatprep.subr.mxu0 0.0
        %1570 = vmatpush1.msra.mxu0 0.0
        %1571 = vmatprep.subr.mxu0 0.0
        %1572 = vmatpush1.msra.mxu0 0.0
        %1573 = vmatprep.subr.mxu0 0.0
        %1574 = vmatpush1.msra.mxu0 0.0
        %1575 = vmatprep.mubr.f32.mxu0 0.0
        %1576 = vmatmul.mubr.f32.gmra.mrb[0].mxu0 %v1509
        %v1577 = vpop.f32.mrb[0].mxu0
        %v1578 = vadd.f32 %v1499, %v1577
        %v1579 = vpop.f32.mrb[0].mxu0
        %1580 = vdwg.mxu0
        %s1581 = scalar_lea.vmem [#allocation14], 40
        %v1582 = vld [vmem:[%s1581] sm:$0xff]
        %1583 = vrot.lane.b32.xlu0 %v1416, 121
        %v1584 = vpop.permute.xlu0 %1583
        %1585 = vrot.lane.b32.xlu0 %v1417, 121
        %v1586 = vpop.permute.xlu0 %1585
        %vm1587 = vcmask 990208
        %v1588 = vsel %vm1587, %v1584, %v1586
        %v1591 = vsel %vm535, %v1582, 0
        %1593 = vmatprep.subr.mxu0 0.0
        %1594 = vmatpush1.msra.mxu0 %v1588
        %1595 = vmatprep.subr.mxu0 0.0
        %1596 = vmatpush1.msra.mxu0 0.0
        %1597 = vmatprep.subr.mxu0 0.0
        %1598 = vmatpush1.msra.mxu0 0.0
        %1599 = vmatprep.subr.mxu0 0.0
        %1600 = vmatpush1.msra.mxu0 0.0
        %1601 = vmatprep.subr.mxu0 0.0
        %1602 = vmatpush1.msra.mxu0 0.0
        %1603 = vmatprep.subr.mxu0 0.0
        %1604 = vmatpush1.msra.mxu0 0.0
        %1605 = vmatprep.subr.mxu0 0.0
        %1606 = vmatpush1.msra.mxu0 0.0
        %1607 = vmatprep.subr.mxu0 0.0
        %1608 = vmatpush1.msra.mxu0 0.0
        %1609 = vmatprep.subr.mxu0 0.0
        %1610 = vmatpush1.msra.mxu0 0.0
        %1611 = vmatprep.subr.mxu0 0.0
        %1612 = vmatpush1.msra.mxu0 0.0
        %1613 = vmatprep.subr.mxu0 0.0
        %1614 = vmatpush1.msra.mxu0 0.0
        %1615 = vmatprep.subr.mxu0 0.0
        %1616 = vmatpush1.msra.mxu0 0.0
        %1617 = vmatprep.subr.mxu0 0.0
        %1618 = vmatpush1.msra.mxu0 0.0
        %1619 = vmatprep.subr.mxu0 0.0
        %1620 = vmatpush1.msra.mxu0 0.0
        %1621 = vmatprep.subr.mxu0 0.0
        %1622 = vmatpush1.msra.mxu0 0.0
        %1623 = vmatprep.subr.mxu0 0.0
        %1624 = vmatpush1.msra.mxu0 0.0
        %1625 = vmatprep.subr.mxu0 0.0
        %1626 = vmatpush1.msra.mxu0 0.0
        %1627 = vmatprep.subr.mxu0 0.0
        %1628 = vmatpush1.msra.mxu0 0.0
        %1629 = vmatprep.subr.mxu0 0.0
        %1630 = vmatpush1.msra.mxu0 0.0
        %1631 = vmatprep.subr.mxu0 0.0
        %1632 = vmatpush1.msra.mxu0 0.0
        %1633 = vmatprep.subr.mxu0 0.0
        %1634 = vmatpush1.msra.mxu0 0.0
        %1635 = vmatprep.subr.mxu0 0.0
        %1636 = vmatpush1.msra.mxu0 0.0
        %1637 = vmatprep.subr.mxu0 0.0
        %1638 = vmatpush1.msra.mxu0 0.0
        %1639 = vmatprep.subr.mxu0 0.0
        %1640 = vmatpush1.msra.mxu0 0.0
        %1641 = vmatprep.subr.mxu0 0.0
        %1642 = vmatpush1.msra.mxu0 0.0
        %1643 = vmatprep.subr.mxu0 0.0
        %1644 = vmatpush1.msra.mxu0 0.0
        %1645 = vmatprep.subr.mxu0 0.0
        %1646 = vmatpush1.msra.mxu0 0.0
        %1647 = vmatprep.subr.mxu0 0.0
        %1648 = vmatpush1.msra.mxu0 0.0
        %1649 = vmatprep.subr.mxu0 0.0
        %1650 = vmatpush1.msra.mxu0 0.0
        %1651 = vmatprep.subr.mxu0 0.0
        %1652 = vmatpush1.msra.mxu0 0.0
        %1653 = vmatprep.subr.mxu0 0.0
        %1654 = vmatpush1.msra.mxu0 0.0
        %1655 = vmatprep.subr.mxu0 0.0
        %1656 = vmatpush1.msra.mxu0 0.0
        %1657 = vmatprep.mubr.f32.mxu0 0.0
        %1658 = vmatmul.mubr.f32.gmra.mrb[0].mxu0 %v1591
        %v1659 = vpop.f32.mrb[0].mxu0
        %v1660 = vadd.f32 0.0, %v1659
        %v1661 = vpop.f32.mrb[0].mxu0
        %1662 = vdwg.mxu0
        %v1663 = vadd.f32 %v1578, %v1660
        %s1664 = scalar_lea.vmem %s6, 8
        %v1665 = vld [vmem:[%s1664] sm:$0xff]
        %1667 = vset.pattern.permute.xlu0 0
        %1668 = vperm.xlu0 %1667, %v1665
        %v1669 = vpop.permute.xlu0 %1668
        %v1671 = vadd.f32 %v1663, %v1669
        %v1672 = vld [vmem:[#allocation2] sm:$0xff]
        %v1673 = vld [vmem:[#allocation2 + $0x8] sm:$0xff]
        %1676 = vrot.lane.b32.xlu0 %v1672, 122
        %v1677 = vpop.permute.xlu0 %1676
        %1678 = vrot.lane.b32.xlu0 %v1673, 122
        %v1679 = vpop.permute.xlu0 %1678
        %v1680 = vsel %vm1426, %v1677, %v1679
        %v1682 = vadd.f32 %v1671, %v1680
        %1684 = vrot.lane.b32.xlu0 %v1682, 6
        %v1685 = vpop.permute.xlu0 %1684
        %1687 = vst.msk [vmem:[#allocation2] sm:$0xff] %vm464, %v1685
        %1688 = vst.msk [vmem:[#allocation2 + $0x8] sm:$0xff] %vm466, %v1685
        %v1689 = vld [vmem:[#allocation2] sm:$0xff]
        %v1690 = vld [vmem:[#allocation2 + $0x8] sm:$0xff]
        %1693 = vrot.lane.b32.xlu0 %v1689, 122
        %v1694 = vpop.permute.xlu0 %1693
        %1695 = vrot.lane.b32.xlu0 %v1690, 122
        %v1696 = vpop.permute.xlu0 %1695
        %v1697 = vsel %vm1426, %v1694, %v1696
        %1699 = vst [vmem:[%s452] sm:$0xff] %v1697
        %s1700 = sand.u32 %s231, 1
        %s1701 = scalar_lea.sflag [#allocation7], %s1700
        %s1702 = sand.u32 %s231, 1
        %s1703 = smul.addr %s1702, 8
        %s1704 = scalar_lea.vmem [#allocation16], %s1703
        // Predicated region
        $region121: #{_lambda_.2} parent=47 // pred_check
          %p1705 = pneg %p241
        $region122: #{_lambda_.2} parent=47 // pred_check_branch
          %1707 = sbr.rel (%p1705) target = $region124
        $region123: #{_lambda_.2} parent=47 // pred_region
          %s1709 = ssub.s32 128, 128
          %1710 = vsyncadd %s1701, %s1709
          %s1711 = smul.addr %s33, 2
          %s1712 = sadd.s32 %s34, %s1711
          %s1713 = smul.addr %s1712, 128
          %s1714 = scalar_lea.hbm %s7, %s1713
          %s1716 = sshll.u32 %s1704, 4
          %s1717 = int_to_ptr.vmem [resolvable:$true] %s1716
          %1719 = dma.vmem_to_hbm [thread:$0]  %s1717, 128, %s1714, %s1701
        $region124: #{_lambda_.2} parent=47 // pred_fallthru
          _
      $region48: #{_lambda_.2} parent=5 // pred_fallthru
        _
      %p1720 = scmp.le.s32.totalorder 2, %s24
      // Predicated region
      $region125: #{_lambda_.2} parent=5 // pred_check
        %p1721 = pneg %p1720
      $region126: #{_lambda_.2} parent=5 // pred_check_branch
        %1723 = sbr.rel (%p1721) target = $region128
      $region127: #{_lambda_.2} parent=5 // pred_region
        %s1724 = ssub.s32 %s24, 2
        // Predicated region
        $region129: #{_lambda_.2} parent=127 // pred_check
          %p1725 = pneg %p247
        $region130: #{_lambda_.2} parent=127 // pred_check_branch
          %1727 = sbr.rel (%p1725) target = $region132
        $region131: #{_lambda_.2} parent=127 // pred_region
          %s1728 = sand.u32 %s232, 1
          %s1729 = scalar_lea.sflag [#allocation7], %s1728
          %s1730 = sand.u32 %s232, 1
          %s1731 = smul.addr %s1730, 8
          %s1732 = scalar_lea.vmem [#allocation16], %s1731
          %1733 = dma.done %s1729, 128
        $region132: #{_lambda_.2} parent=127 // pred_fallthru
          _
      $region128: #{_lambda_.2} parent=5 // pred_fallthru
        _
    $region6: #{_lambda_.2} parent=1 // loop_footer
      %s28 = sadd.s32 1, %s24
    $region7: #{_lambda_.2} parent=1 // loop_footer_branch
      %23 = sbr.rel target = $region3
    $region8: #{_lambda_.2} parent=1 // loop_exit
      _
    %1734 = vsyncpa [#allocation6], 1
    %s1735 = scalar_lea.sflag [#allocation6], 1
    %1736 = vsyncpa %s1735, 1
    %1737 = vsyncpa [#allocation9], 1
    %s1738 = scalar_lea.sflag [#allocation9], 1
    %1739 = vsyncpa %s1738, 1
    %1740 = vsyncpa [#allocation12], 1
    %1741 = vsyncpa [#allocation15], 1
    %1742 = vsyncpa [#allocation7], 1
    %s1743 = scalar_lea.sflag [#allocation7], 1
    %1744 = vsyncpa %s1743, 1

// kernel: _lambda_.3
$region0: #{_lambda_.3}
  #allocation0 [shape = 'u32[]', space=smem, size = 0x4, offset = 0x4, fixed_abs, tag = 'smem constant byte address 0x4 - core index']
  #allocation1 [shape = 'u32[144,128]{1,0:T(1,128)}', space=vmem, size = 0x12000, scoped, tag = 'internal scratch']
  #allocation2 [shape = 'f32[8,152]{1,0:T(8,128)}', space=vmem, size = 0x2000, scoped, tag = 'scratch operand']
  #allocation3 [shape = 'f32[8,152]{1,0:T(8,128)}', space=vmem, size = 0x2000, scoped, tag = 'scratch operand']
  #allocation4 [shape = 'f32[8,152]{1,0:T(8,128)}', space=vmem, size = 0x2000, scoped, tag = 'scratch operand']
  %s0 = inlined_call_operand.vmem [shape: f32[2,8,256], index: 0, kind: input, shape index: {}, may-alias: {0,1,2}]
  %s1 = inlined_call_operand.vmem [shape: f32[2,8,256], index: 1, kind: input, shape index: {}, may-alias: {0,1,2}]
  %s2 = inlined_call_operand.vmem [shape: f32[2,8,256], index: 2, kind: input, shape index: {}, may-alias: {0,1,2}]
  %s3 = inlined_call_operand.vmem [shape: f32[2,5,8,8], index: 3, kind: input, shape index: {}]
  %s4 = inlined_call_operand.vmem [shape: f32[2,8,1], index: 4, kind: input, shape index: {}]
  %s5 = inlined_call_operand.vmem [shape: f32[2,5,8,8], index: 5, kind: input, shape index: {}]
  %s6 = inlined_call_operand.vmem [shape: f32[2,8,1], index: 6, kind: input, shape index: {}]
  %s7 = inlined_call_operand.hbm [shape: f32[2,8,256], index: 7, kind: input, shape index: {}, may-alias: {7,8}]
  %s8 = inlined_call_operand.hbm [shape: f32[2,8,256], index: 8, kind: output, shape index: {}, may-alias: {7,8}]
  %s9 = sld [smem:[#allocation0]]
  $region117: #{_lambda_.3} parent=0
    _
  %s11 = ssub.s32 1, %s9
  %s12 = scalar_select 0, %s11, %s9
  $region1: #{_lambda_.3} parent=0
    #allocation5 [shape = 'u8[8192]{0}', space=vmem, size = 0x2000, scoped, tag = 'input window, operand 7']
    #allocation6 [shape = 's32[2]{0}', space=sflag, size = 0x8, scoped, tag = 'scoped memory for _lambda_.3']
    #allocation7 [shape = 's32[2]{0}', space=sflag, size = 0x8, scoped, tag = 'scoped memory for _lambda_.3']
    #allocation8 [shape = 'u8[8192]{0}', space=vmem, size = 0x2000, scoped, tag = 'output window, operand 0']
    %13 = vsyncpa [#allocation6], 0
    %s14 = scalar_lea.sflag [#allocation6], 1
    %15 = vsyncpa %s14, 0
    %16 = vsyncpa [#allocation7], 0
    %s17 = scalar_lea.sflag [#allocation7], 1
    %18 = vsyncpa %s17, 0
    loop: start=0, step=1, limit=6
    $region2: #{_lambda_.3} parent=1 // loop_pre_header
      _
    $region3: #{_lambda_.3} parent=1 // loop_header
      %s20 = sphi 0, %s24
      %p21 = scmp.ge.s32.totalorder %s20, 6
      %s27 = sphi 0, %s39
      %s28 = sphi 0, %s35
      %s29 = sphi 0, %s27
      %s30 = sphi 0, %s28
      %s31 = sphi 0, %s29
      %s32 = sphi 0, %s30
      %s50 = sphi 0, %s52
      %s53 = sphi 0, %s50
      %s54 = sphi 0, %s53
      %s70 = sphi 0, %s54
      %s78 = sphi 0, %s80
      %s81 = sphi 0, %s78
      %s82 = sphi 0, %s81
      %s98 = sphi 0, %s82
      %s112 = sphi 0, %s114
      %s115 = sphi 0, %s112
      %s116 = sphi 0, %s115
      %s132 = sphi 0, %s116
      %s136 = sphi 0, %s136
      %s138 = sphi 0, %s136
      %s139 = sphi 0, %s138
      %s153 = sphi 0, %s139
      %s157 = sphi 0, %s157
      %s159 = sphi 0, %s157
      %s160 = sphi 0, %s159
      %s174 = sphi 0, %s160
      %s178 = sphi 0, %s178
      %s180 = sphi 0, %s178
      %s181 = sphi 0, %s180
      %s195 = sphi 0, %s181
      %s199 = sphi 0, %s199
      %s201 = sphi 0, %s199
      %s202 = sphi 0, %s201
      %s216 = sphi 0, %s202
      %s224 = sphi 0, %s226
      %s227 = sphi 0, %s224
      %s228 = sphi 0, %s227
      %s244 = sphi 0, %s228
      %s252 = sphi 0, %s254
      %s255 = sphi 0, %s252
      %s256 = sphi 0, %s255
      %s272 = sphi 0, %s256
    $region4: #{_lambda_.3} parent=1 // loop_header_branch
      %23 = sbr.rel (%p21) target = $region8
    $region5: #{_lambda_.3} parent=1 // loop_body
      %s25 = ssub.s32 %s20, 1
      %s26 = ssub.s32 %s20, 2
      %s33 = sadd.s32 1, %s28
      %p34 = scmp.ge.s32.totalorder %s33, 2
      %s35 = scalar_select %p34, 0, %s33
      %s36 = sadd.s32 1, %s27
      %s37 = scalar_select %p34, %s36, %s27
      %p38 = scmp.ge.s32.totalorder %s37, 2
      %s39 = scalar_select %p38, 0, %s37
      %s40 = ssub.s32 %s28, 1
      %p41 = scmp.gt.s32.totalorder %s40, 0
      %s42 = scalar_select %p41, %s40, 0
      %s43 = ssub.s32 %s35, 1
      %p44 = scmp.gt.s32.totalorder %s43, 0
      %s45 = scalar_select %p44, %s43, 0
      %s46 = ssub.s32 %s27, %s39
      %s47 = ssub.s32 %s42, %s45
      %s48 = sor.u32 %s46, %s47
      %p49 = scmp.eq.s32.totalorder %s48, 0
      %s51 = sadd.s32 %s50, 1
      %s52 = scalar_select %p49, %s50, %s51
      %p55 = pneg %p49
      %p56 = scmp.eq.s32.totalorder %s20, 3
      %p57 = por %p55, %p56
      %p58 = scmp.ne.s32.totalorder %s50, %s53
      %p59 = scmp.eq.s32.totalorder %s20, 0
      %p60 = por %p58, %p59
      %p61 = scmp.ne.s32.totalorder %s50, %s53
      %p62 = scmp.eq.s32.totalorder %s25, 3
      %p63 = por %p61, %p62
      %p64 = scmp.ne.s32.totalorder %s53, %s54
      %p65 = scmp.eq.s32.totalorder %s25, 0
      %p66 = por %p64, %p65
      %p67 = scmp.ne.s32.totalorder %s53, %s54
      %p68 = scmp.eq.s32.totalorder %s26, 3
      %p69 = por %p67, %p68
      %p71 = scmp.ne.s32.totalorder %s54, %s70
      %p72 = scmp.eq.s32.totalorder %s26, 0
      %p73 = por %p71, %p72
      %s74 = ssub.s32 %s27, %s39
      %s75 = ssub.s32 %s28, %s35
      %s76 = sor.u32 %s74, %s75
      %p77 = scmp.eq.s32.totalorder %s76, 0
      %s79 = sadd.s32 %s78, 1
      %s80 = scalar_select %p77, %s78, %s79
      %p83 = pneg %p77
      %p84 = scmp.eq.s32.totalorder %s20, 3
      %p85 = por %p83, %p84
      %p86 = scmp.ne.s32.totalorder %s78, %s81
      %p87 = scmp.eq.s32.totalorder %s20, 0
      %p88 = por %p86, %p87
      %p89 = scmp.ne.s32.totalorder %s78, %s81
      %p90 = scmp.eq.s32.totalorder %s25, 3
      %p91 = por %p89, %p90
      %p92 = scmp.ne.s32.totalorder %s81, %s82
      %p93 = scmp.eq.s32.totalorder %s25, 0
      %p94 = por %p92, %p93
      %p95 = scmp.ne.s32.totalorder %s81, %s82
      %p96 = scmp.eq.s32.totalorder %s26, 3
      %p97 = por %p95, %p96
      %p99 = scmp.ne.s32.totalorder %s82, %s98
      %p100 = scmp.eq.s32.totalorder %s26, 0
      %p101 = por %p99, %p100
      %s102 = sadd.s32 %s28, 1
      %p103 = scmp.lt.s32.totalorder %s102, 1
      %s104 = scalar_select %p103, %s102, 1
      %s105 = sadd.s32 %s35, 1
      %p106 = scmp.lt.s32.totalorder %s105, 1
      %s107 = scalar_select %p106, %s105, 1
      %s108 = ssub.s32 %s27, %s39
      %s109 = ssub.s32 %s104, %s107
      %s110 = sor.u32 %s108, %s109
      %p111 = scmp.eq.s32.totalorder %s110, 0
      %s113 = sadd.s32 %s112, 1
      %s114 = scalar_select %p111, %s112, %s113
      %p117 = pneg %p111
      %p118 = scmp.eq.s32.totalorder %s20, 3
      %p119 = por %p117, %p118
      %p120 = scmp.ne.s32.totalorder %s112, %s115
      %p121 = scmp.eq.s32.totalorder %s20, 0
      %p122 = por %p120, %p121
      %p123 = scmp.ne.s32.totalorder %s112, %s115
      %p124 = scmp.eq.s32.totalorder %s25, 3
      %p125 = por %p123, %p124
      %p126 = scmp.ne.s32.totalorder %s115, %s116
      %p127 = scmp.eq.s32.totalorder %s25, 0
      %p128 = por %p126, %p127
      %p129 = scmp.ne.s32.totalorder %s115, %s116
      %p130 = scmp.eq.s32.totalorder %s26, 3
      %p131 = por %p129, %p130
      %p133 = scmp.ne.s32.totalorder %s116, %s132
      %p134 = scmp.eq.s32.totalorder %s26, 0
      %p135 = por %p133, %p134
      %s137 = sadd.s32 %s136, 1
      %p140 = scmp.eq.s32.totalorder %s20, 3
      %p141 = scmp.ne.s32.totalorder %s136, %s138
      %p142 = scmp.eq.s32.totalorder %s20, 0
      %p143 = por %p141, %p142
      %p144 = scmp.ne.s32.totalorder %s136, %s138
      %p145 = scmp.eq.s32.totalorder %s25, 3
      %p146 = por %p144, %p145
      %p147 = scmp.ne.s32.totalorder %s138, %s139
      %p148 = scmp.eq.s32.totalorder %s25, 0
      %p149 = por %p147, %p148
      %p150 = scmp.ne.s32.totalorder %s138, %s139
      %p151 = scmp.eq.s32.totalorder %s26, 3
      %p152 = por %p150, %p151
      %p154 = scmp.ne.s32.totalorder %s139, %s153
      %p155 = scmp.eq.s32.totalorder %s26, 0
      %p156 = por %p154, %p155
      %s158 = sadd.s32 %s157, 1
      %p161 = scmp.eq.s32.totalorder %s20, 3
      %p162 = scmp.ne.s32.totalorder %s157, %s159
      %p163 = scmp.eq.s32.totalorder %s20, 0
      %p164 = por %p162, %p163
      %p165 = scmp.ne.s32.totalorder %s157, %s159
      %p166 = scmp.eq.s32.totalorder %s25, 3
      %p167 = por %p165, %p166
      %p168 = scmp.ne.s32.totalorder %s159, %s160
      %p169 = scmp.eq.s32.totalorder %s25, 0
      %p170 = por %p168, %p169
      %p171 = scmp.ne.s32.totalorder %s159, %s160
      %p172 = scmp.eq.s32.totalorder %s26, 3
      %p173 = por %p171, %p172
      %p175 = scmp.ne.s32.totalorder %s160, %s174
      %p176 = scmp.eq.s32.totalorder %s26, 0
      %p177 = por %p175, %p176
      %s179 = sadd.s32 %s178, 1
      %p182 = scmp.eq.s32.totalorder %s20, 3
      %p183 = scmp.ne.s32.totalorder %s178, %s180
      %p184 = scmp.eq.s32.totalorder %s20, 0
      %p185 = por %p183, %p184
      %p186 = scmp.ne.s32.totalorder %s178, %s180
      %p187 = scmp.eq.s32.totalorder %s25, 3
      %p188 = por %p186, %p187
      %p189 = scmp.ne.s32.totalorder %s180, %s181
      %p190 = scmp.eq.s32.totalorder %s25, 0
      %p191 = por %p189, %p190
      %p192 = scmp.ne.s32.totalorder %s180, %s181
      %p193 = scmp.eq.s32.totalorder %s26, 3
      %p194 = por %p192, %p193
      %p196 = scmp.ne.s32.totalorder %s181, %s195
      %p197 = scmp.eq.s32.totalorder %s26, 0
      %p198 = por %p196, %p197
      %s200 = sadd.s32 %s199, 1
      %p203 = scmp.eq.s32.totalorder %s20, 3
      %p204 = scmp.ne.s32.totalorder %s199, %s201
      %p205 = scmp.eq.s32.totalorder %s20, 0
      %p206 = por %p204, %p205
      %p207 = scmp.ne.s32.totalorder %s199, %s201
      %p208 = scmp.eq.s32.totalorder %s25, 3
      %p209 = por %p207, %p208
      %p210 = scmp.ne.s32.totalorder %s201, %s202
      %p211 = scmp.eq.s32.totalorder %s25, 0
      %p212 = por %p210, %p211
      %p213 = scmp.ne.s32.totalorder %s201, %s202
      %p214 = scmp.eq.s32.totalorder %s26, 3
      %p215 = por %p213, %p214
      %p217 = scmp.ne.s32.totalorder %s202, %s216
      %p218 = scmp.eq.s32.totalorder %s26, 0
      %p219 = por %p217, %p218
      %s220 = ssub.s32 %s27, %s39
      %s221 = ssub.s32 %s28, %s35
      %s222 = sor.u32 %s220, %s221
      %p223 = scmp.eq.s32.totalorder %s222, 0
      %s225 = sadd.s32 %s224, 1
      %s226 = scalar_select %p223, %s224, %s225
      %p229 = pneg %p223
      %p230 = scmp.eq.s32.totalorder %s20, 3
      %p231 = por %p229, %p230
      %p232 = scmp.ne.s32.totalorder %s224, %s227
      %p233 = scmp.eq.s32.totalorder %s20, 0
      %p234 = por %p232, %p233
      %p235 = scmp.ne.s32.totalorder %s224, %s227
      %p236 = scmp.eq.s32.totalorder %s25, 3
      %p237 = por %p235, %p236
      %p238 = scmp.ne.s32.totalorder %s227, %s228
      %p239 = scmp.eq.s32.totalorder %s25, 0
      %p240 = por %p238, %p239
      %p241 = scmp.ne.s32.totalorder %s227, %s228
      %p242 = scmp.eq.s32.totalorder %s26, 3
      %p243 = por %p241, %p242
      %p245 = scmp.ne.s32.totalorder %s228, %s244
      %p246 = scmp.eq.s32.totalorder %s26, 0
      %p247 = por %p245, %p246
      %s248 = ssub.s32 %s27, %s39
      %s249 = ssub.s32 %s28, %s35
      %s250 = sor.u32 %s248, %s249
      %p251 = scmp.eq.s32.totalorder %s250, 0
      %s253 = sadd.s32 %s252, 1
      %s254 = scalar_select %p251, %s252, %s253
      %p257 = pneg %p251
      %p258 = scmp.eq.s32.totalorder %s20, 3
      %p259 = por %p257, %p258
      %p260 = scmp.ne.s32.totalorder %s252, %s255
      %p261 = scmp.eq.s32.totalorder %s20, 0
      %p262 = por %p260, %p261
      %p263 = scmp.ne.s32.totalorder %s252, %s255
      %p264 = scmp.eq.s32.totalorder %s25, 3
      %p265 = por %p263, %p264
      %p266 = scmp.ne.s32.totalorder %s255, %s256
      %p267 = scmp.eq.s32.totalorder %s25, 0
      %p268 = por %p266, %p267
      %p269 = scmp.ne.s32.totalorder %s255, %s256
      %p270 = scmp.eq.s32.totalorder %s26, 3
      %p271 = por %p269, %p270
      %p273 = scmp.ne.s32.totalorder %s256, %s272
      %p274 = scmp.eq.s32.totalorder %s26, 0
      %p275 = por %p273, %p274
      %p276 = scmp.le.s32.totalorder 1, %s20
      %p277 = scmp.lt.s32.totalorder %s20, 5
      %p278 = pnand %p276, %p277
      %p279 = pneg %p278
      // Predicated region
      $region9: #{_lambda_.3} parent=5 // pred_check
        _
      $region10: #{_lambda_.3} parent=5 // pred_check_branch
        %281 = sbr.rel (%p278) target = $region12
      $region11: #{_lambda_.3} parent=5 // pred_region
        %s282 = ssub.s32 %s20, 1
        // Predicated region
        $region13: #{_lambda_.3} parent=11 // pred_check
          %p283 = pneg %p149
        $region14: #{_lambda_.3} parent=11 // pred_check_branch
          %285 = sbr.rel (%p283) target = $region16
        $region15: #{_lambda_.3} parent=11 // pred_region
          _
        $region16: #{_lambda_.3} parent=11 // pred_fallthru
          _
        // Predicated region
        $region17: #{_lambda_.3} parent=11 // pred_check
          %p286 = pneg %p170
        $region18: #{_lambda_.3} parent=11 // pred_check_branch
          %288 = sbr.rel (%p286) target = $region20
        $region19: #{_lambda_.3} parent=11 // pred_region
          _
        $region20: #{_lambda_.3} parent=11 // pred_fallthru
          _
        // Predicated region
        $region21: #{_lambda_.3} parent=11 // pred_check
          %p289 = pneg %p191
        $region22: #{_lambda_.3} parent=11 // pred_check_branch
          %291 = sbr.rel (%p289) target = $region24
        $region23: #{_lambda_.3} parent=11 // pred_region
          _
        $region24: #{_lambda_.3} parent=11 // pred_fallthru
          _
        // Predicated region
        $region25: #{_lambda_.3} parent=11 // pred_check
          %p292 = pneg %p212
        $region26: #{_lambda_.3} parent=11 // pred_check_branch
          %294 = sbr.rel (%p292) target = $region28
        $region27: #{_lambda_.3} parent=11 // pred_region
          _
        $region28: #{_lambda_.3} parent=11 // pred_fallthru
          _
      $region12: #{_lambda_.3} parent=5 // pred_fallthru
        _
      %p295 = scmp.lt.s32.totalorder %s20, 4
      // Predicated region
      $region29: #{_lambda_.3} parent=5 // pred_check
        %p296 = pneg %p295
      $region30: #{_lambda_.3} parent=5 // pred_check_branch
        %298 = sbr.rel (%p296) target = $region32
      $region31: #{_lambda_.3} parent=5 // pred_region
        // Predicated region
        $region33: #{_lambda_.3} parent=31 // pred_check
          %p299 = pneg %p60
        $region34: #{_lambda_.3} parent=31 // pred_check_branch
          %301 = sbr.rel (%p299) target = $region36
        $region35: #{_lambda_.3} parent=31 // pred_region
          %s302 = ssub.s32 %s28, 1
          %p303 = scmp.gt.s32.totalorder %s302, 0
          %s304 = scalar_select %p303, %s302, 0
          %p305 = scmp.lt.s32.totalorder %s27, 1
          %s306 = scalar_select %p305, %s27, 1
          %p307 = scmp.lt.s32.totalorder %s304, 1
          %s308 = scalar_select %p307, %s304, 1
          %s309 = smul.addr %s306, 2
          %s310 = sadd.s32 %s308, %s309
          %s311 = smul.addr %s310, 8
          %s312 = scalar_lea.vmem %s0, %s311
          %s313 = ssub.s32 %s28, 1
          %p314 = scmp.gt.s32.totalorder %s313, 0
          %s315 = scalar_select %p314, %s313, 0
        $region36: #{_lambda_.3} parent=31 // pred_fallthru
          _
        // Predicated region
        $region37: #{_lambda_.3} parent=31 // pred_check
          %p316 = pneg %p88
        $region38: #{_lambda_.3} parent=31 // pred_check_branch
          %318 = sbr.rel (%p316) target = $region40
        $region39: #{_lambda_.3} parent=31 // pred_region
          %p319 = scmp.lt.s32.totalorder %s27, 1
          %s320 = scalar_select %p319, %s27, 1
          %p321 = scmp.lt.s32.totalorder %s28, 1
          %s322 = scalar_select %p321, %s28, 1
          %s323 = smul.addr %s320, 2
          %s324 = sadd.s32 %s322, %s323
          %s325 = smul.addr %s324, 8
          %s326 = scalar_lea.vmem %s1, %s325
        $region40: #{_lambda_.3} parent=31 // pred_fallthru
          _
        // Predicated region
        $region41: #{_lambda_.3} parent=31 // pred_check
          %p327 = pneg %p122
        $region42: #{_lambda_.3} parent=31 // pred_check_branch
          %329 = sbr.rel (%p327) target = $region44
        $region43: #{_lambda_.3} parent=31 // pred_region
          %s330 = sadd.s32 %s28, 1
          %p331 = scmp.lt.s32.totalorder %s330, 1
          %s332 = scalar_select %p331, %s330, 1
          %p333 = scmp.lt.s32.totalorder %s27, 1
          %s334 = scalar_select %p333, %s27, 1
          %p335 = scmp.lt.s32.totalorder %s332, 1
          %s336 = scalar_select %p335, %s332, 1
          %s337 = smul.addr %s334, 2
          %s338 = sadd.s32 %s336, %s337
          %s339 = smul.addr %s338, 8
          %s340 = scalar_lea.vmem %s2, %s339
          %s341 = sadd.s32 %s28, 1
          %p342 = scmp.lt.s32.totalorder %s341, 1
          %s343 = scalar_select %p342, %s341, 1
        $region44: #{_lambda_.3} parent=31 // pred_fallthru
          _
        // Predicated region
        $region45: #{_lambda_.3} parent=31 // pred_check
          %p344 = pneg %p234
        $region46: #{_lambda_.3} parent=31 // pred_check_branch
          %346 = sbr.rel (%p344) target = $region48
        $region47: #{_lambda_.3} parent=31 // pred_region
          %s347 = sand.u32 %s224, 1
          %s348 = scalar_lea.sflag [#allocation6], %s347
          %s349 = sand.u32 %s224, 1
          %s350 = smul.addr %s349, 8
          %s351 = scalar_lea.vmem [#allocation5], %s350
          %s353 = ssub.s32 128, 128
          %354 = vsyncadd %s348, %s353
          %s355 = smul.addr %s27, 2
          %s356 = sadd.s32 %s28, %s355
          %s357 = smul.addr %s356, 128
          %s358 = scalar_lea.hbm %s7, %s357
          %s360 = sshll.u32 %s351, 4
          %s361 = int_to_ptr.vmem [resolvable:$true] %s360
          %363 = dma.hbm_to_vmem [thread:$0]  %s358, 128, %s361, %s348
        $region48: #{_lambda_.3} parent=31 // pred_fallthru
          _
      $region32: #{_lambda_.3} parent=5 // pred_fallthru
        _
      %p364 = scmp.le.s32.totalorder 1, %s20
      %p365 = scmp.lt.s32.totalorder %s20, 5
      %p366 = pnand %p364, %p365
      %p367 = pneg %p366
      // Predicated region
      $region49: #{_lambda_.3} parent=5 // pred_check
        _
      $region50: #{_lambda_.3} parent=5 // pred_check_branch
        %369 = sbr.rel (%p366) target = $region52
      $region51: #{_lambda_.3} parent=5 // pred_region
        %s370 = ssub.s32 %s20, 1
        %s371 = sand.u32 %s227, 1
        %s372 = scalar_lea.sflag [#allocation6], %s371
        %s373 = sand.u32 %s227, 1
        %s374 = smul.addr %s373, 8
        %s375 = scalar_lea.vmem [#allocation5], %s374
        // Predicated region
        $region53: #{_lambda_.3} parent=51 // pred_check
          %p376 = pneg %p240
        $region54: #{_lambda_.3} parent=51 // pred_check_branch
          %378 = sbr.rel (%p376) target = $region56
        $region55: #{_lambda_.3} parent=51 // pred_region
          %379 = dma.done %s372, 128
        $region56: #{_lambda_.3} parent=51 // pred_fallthru
          _
        %s380 = ssub.s32 %s30, 1
        %p381 = scmp.gt.s32.totalorder %s380, 0
        %s382 = scalar_select %p381, %s380, 0
        %p383 = scmp.lt.s32.totalorder %s29, 1
        %s384 = scalar_select %p383, %s29, 1
        %p385 = scmp.lt.s32.totalorder %s382, 1
        %s386 = scalar_select %p385, %s382, 1
        %s387 = smul.addr %s384, 2
        %s388 = sadd.s32 %s386, %s387
        %s389 = smul.addr %s388, 8
        %s390 = scalar_lea.vmem %s0, %s389
        %p391 = pneg %p66
        %p392 = pneg %p63
        %p393 = scmp.lt.s32.totalorder %s29, 1
        %s394 = scalar_select %p393, %s29, 1
        %p395 = scmp.lt.s32.totalorder %s30, 1
        %s396 = scalar_select %p395, %s30, 1
        %s397 = smul.addr %s394, 2
        %s398 = sadd.s32 %s396, %s397
        %s399 = smul.addr %s398, 8
        %s400 = scalar_lea.vmem %s1, %s399
        %p401 = pneg %p94
        %p402 = pneg %p91
        %s403 = sadd.s32 %s30, 1
        %p404 = scmp.lt.s32.totalorder %s403, 1
        %s405 = scalar_select %p404, %s403, 1
        %p406 = scmp.lt.s32.totalorder %s29, 1
        %s407 = scalar_select %p406, %s29, 1
        %p408 = scmp.lt.s32.totalorder %s405, 1
        %s409 = scalar_select %p408, %s405, 1
        %s410 = smul.addr %s407, 2
        %s411 = sadd.s32 %s409, %s410
        %s412 = smul.addr %s411, 8
        %s413 = scalar_lea.vmem %s2, %s412
        %p414 = pneg %p128
        %p415 = pneg %p125
        %p416 = pneg %p149
        %p417 = pneg %p146
        %p418 = pneg %p170
        %p419 = pneg %p167
        %p420 = pneg %p191
        %p421 = pneg %p188
        %p422 = pneg %p212
        %p423 = pneg %p209
        %s424 = sand.u32 %s227, 1
        %s425 = scalar_lea.sflag [#allocation6], %s424
        %s426 = sand.u32 %s227, 1
        %s427 = smul.addr %s426, 8
        %s428 = scalar_lea.vmem [#allocation5], %s427
        %p429 = pneg %p240
        %p430 = pneg %p237
        %p431 = pneg %p268
        %p432 = pneg %p265
        %s433 = sand.u32 %s255, 1
        %s434 = scalar_lea.sflag [#allocation7], %s433
        %s435 = sand.u32 %s255, 1
        %s436 = smul.addr %s435, 8
        %s437 = scalar_lea.vmem [#allocation8], %s436
        %s438 = ssub.s32 %s30, 1
        %p439 = scmp.gt.s32.totalorder %s438, 0
        %s440 = scalar_select %p439, %s438, 0
        %p441 = scmp.lt.s32.totalorder %s29, 1
        %s442 = scalar_select %p441, %s29, 1
        %p443 = scmp.lt.s32.totalorder %s440, 1
        %s444 = scalar_select %p443, %s440, 1
        %s445 = smul.addr %s442, 2
        %s446 = sadd.s32 %s444, %s445
        %s447 = smul.addr %s446, 8
        %s448 = scalar_lea.vmem %s0, %s447
        %s449 = ssub.s32 %s30, 1
        %p450 = scmp.gt.s32.totalorder %s449, 0
        %s451 = scalar_select %p450, %s449, 0
        %p452 = scmp.lt.s32.totalorder %s29, 1
        %s453 = scalar_select %p452, %s29, 1
        %p454 = scmp.lt.s32.totalorder %s30, 1
        %s455 = scalar_select %p454, %s30, 1
        %s456 = smul.addr %s453, 2
        %s457 = sadd.s32 %s455, %s456
        %s458 = smul.addr %s457, 8
        %s459 = scalar_lea.vmem %s1, %s458
        %s460 = sadd.s32 %s30, 1
        %p461 = scmp.lt.s32.totalorder %s460, 1
        %s462 = scalar_select %p461, %s460, 1
        %p463 = scmp.lt.s32.totalorder %s29, 1
        %s464 = scalar_select %p463, %s29, 1
        %p465 = scmp.lt.s32.totalorder %s462, 1
        %s466 = scalar_select %p465, %s462, 1
        %s467 = smul.addr %s464, 2
        %s468 = sadd.s32 %s466, %s467
        %s469 = smul.addr %s468, 8
        %s470 = scalar_lea.vmem %s2, %s469
        %s471 = sadd.s32 %s30, 1
        %p472 = scmp.lt.s32.totalorder %s471, 1
        %s473 = scalar_select %p472, %s471, 1
        %v474 = vld [vmem:[%s459] sm:$0xff]
        %476 = vrot.lane.b32.xlu0 %v474, 12
        %v477 = vpop.permute.xlu0 %476
        %vm479 = vcmask 1047648
        %480 = vst.msk [vmem:[#allocation2] sm:$0xff] %vm479, %v477
        %vm481 = vcmask 97280
        %482 = vst.msk [vmem:[#allocation2 + $0x8] sm:$0xff] %vm481, %v477
        %p483 = scmp.eq.s32.totalorder %s30, 0
        // Predicated region
        $region57: #{_lambda_.3} parent=51 // pred_check
          %p484 = pneg %p483
        $region58: #{_lambda_.3} parent=51 // pred_check_branch
          %486 = sbr.rel (%p484) target = $region60
        $region59: #{_lambda_.3} parent=51 // pred_region
          %487 = vst.msk [vmem:[#allocation2] sm:$0xff] %vm481, 0.0
        $region60: #{_lambda_.3} parent=51 // pred_fallthru
          _
        %p488 = scmp.eq.s32.totalorder %s30, 1
        // Predicated region
        $region61: #{_lambda_.3} parent=51 // pred_check
          %p489 = pneg %p488
        $region62: #{_lambda_.3} parent=51 // pred_check_branch
          %491 = sbr.rel (%p489) target = $region64
        $region63: #{_lambda_.3} parent=51 // pred_region
          %vm492 = vcmask 195680
          %493 = vst.msk [vmem:[#allocation2 + $0x8] sm:$0xff] %vm492, 0.0
        $region64: #{_lambda_.3} parent=51 // pred_fallthru
          _
        %p494 = scmp.gt.s32.totalorder %s30, 0
        // Predicated region
        $region65: #{_lambda_.3} parent=51 // pred_check
          %p495 = pneg %p494
        $region66: #{_lambda_.3} parent=51 // pred_check_branch
          %497 = sbr.rel (%p495) target = $region68
        $region67: #{_lambda_.3} parent=51 // pred_region
          %v498 = vld [vmem:[%s448] sm:$0xff]
          %500 = vrot.lane.b32.xlu0 %v498, 12
          %v501 = vpop.permute.xlu0 %500
          %503 = vst.msk [vmem:[#allocation2] sm:$0xff] %vm481, %v501
        $region68: #{_lambda_.3} parent=51 // pred_fallthru
          _
        %p504 = scmp.lt.s32.totalorder %s30, 1
        // Predicated region
        $region69: #{_lambda_.3} parent=51 // pred_check
          %p505 = pneg %p504
        $region70: #{_lambda_.3} parent=51 // pred_check_branch
          %507 = sbr.rel (%p505) target = $region72
        $region71: #{_lambda_.3} parent=51 // pred_region
          %v508 = vld [vmem:[%s470] sm:$0xff]
          %510 = vrot.lane.b32.xlu0 %v508, 12
          %v511 = vpop.permute.xlu0 %510
          %vm513 = vcmask 195680
          %514 = vst.msk [vmem:[#allocation2 + $0x8] sm:$0xff] %vm513, %v511
        $region72: #{_lambda_.3} parent=51 // pred_fallthru
          _
        %v515 = vld [vmem:[#allocation2] sm:$0xff]
        %v516 = vld [vmem:[#allocation2 + $0x8] sm:$0xff]
        %vm517 = vcmp.gt.f32.partialorder %v515, 0.0
        %vm518 = vcmp.gt.f32.partialorder %v516, 0.0
        %v519 = vmul.f32 %v515, 0.1
        %v520 = vmul.f32 %v516, 0.1
        %v521 = vsel %vm517, %v515, %v519
        %v522 = vsel %vm518, %v516, %v520
        %523 = vst [vmem:[#allocation3] sm:$0xff] %v521
        %vm524 = vcmask 195584
        %525 = vst.msk [vmem:[#allocation3 + $0x8] sm:$0xff] %vm524, %v522
        // Predicated region
        $region73: #{_lambda_.3} parent=51 // pred_check
          %p526 = pneg %p483
        $region74: #{_lambda_.3} parent=51 // pred_check_branch
          %528 = sbr.rel (%p526) target = $region76
        $region75: #{_lambda_.3} parent=51 // pred_region
          %529 = vst.msk [vmem:[#allocation3] sm:$0xff] %vm481, 0.0
        $region76: #{_lambda_.3} parent=51 // pred_fallthru
          _
        // Predicated region
        $region77: #{_lambda_.3} parent=51 // pred_check
          %p530 = pneg %p488
        $region78: #{_lambda_.3} parent=51 // pred_check_branch
          %532 = sbr.rel (%p530) target = $region80
        $region79: #{_lambda_.3} parent=51 // pred_region
          %vm533 = vcmask 195680
          %534 = vst.msk [vmem:[#allocation3 + $0x8] sm:$0xff] %vm533, 0.0
        $region80: #{_lambda_.3} parent=51 // pred_fallthru
          _
        %v535 = vld [vmem:[%s3] sm:$0xff]
        %v536 = vld [vmem:[#allocation3] sm:$0xff]
        %v537 = vld [vmem:[#allocation3 + $0x8] sm:$0xff]
        %s538 = scalar_lea.vmem %s3, 8
        %v539 = vld [vmem:[%s538] sm:$0xff]
        %542 = vrot.lane.b32.xlu0 %v536, 127
        %v543 = vpop.permute.xlu0 %542
        %544 = vrot.lane.b32.xlu0 %v537, 127
        %v545 = vpop.permute.xlu0 %544
        %vm546 = vcmask 1039360
        %v547 = vsel %vm546, %v543, %v545
        %vm550 = vcmask 64512
        %v552 = vsel %vm550, %v539, 0
        %554 = vmatprep.subr.mxu0 %v545
        %555 = vmatpush1.msra.mxu0 %v547
        %556 = vmatprep.subr.mxu0 0.0
        %557 = vmatpush1.msra.mxu0 0.0
        %558 = vmatprep.subr.mxu0 0.0
        %559 = vmatpush1.msra.mxu0 0.0
        %560 = vmatprep.subr.mxu0 0.0
        %561 = vmatpush1.msra.mxu0 0.0
        %562 = vmatprep.subr.mxu0 0.0
        %563 = vmatpush1.msra.mxu0 0.0
        %564 = vmatprep.subr.mxu0 0.0
        %565 = vmatpush1.msra.mxu0 0.0
        %566 = vmatprep.subr.mxu0 0.0
        %567 = vmatpush1.msra.mxu0 0.0
        %568 = vmatprep.subr.mxu0 0.0
        %569 = vmatpush1.msra.mxu0 0.0
        %570 = vmatprep.subr.mxu0 0.0
        %571 = vmatpush1.msra.mxu0 0.0
        %572 = vmatprep.subr.mxu0 0.0
        %573 = vmatpush1.msra.mxu0 0.0
        %574 = vmatprep.subr.mxu0 0.0
        %575 = vmatpush1.msra.mxu0 0.0
        %576 = vmatprep.subr.mxu0 0.0
        %577 = vmatpush1.msra.mxu0 0.0
        %578 = vmatprep.subr.mxu0 0.0
        %579 = vmatpush1.msra.mxu0 0.0
        %580 = vmatprep.subr.mxu0 0.0
        %581 = vmatpush1.msra.mxu0 0.0
        %582 = vmatprep.subr.mxu0 0.0
        %583 = vmatpush1.msra.mxu0 0.0
        %584 = vmatprep.subr.mxu0 0.0
        %585 = vmatpush1.msra.mxu0 0.0
        %586 = vmatprep.subr.mxu0 0.0
        %587 = vmatpush1.msra.mxu0 0.0
        %588 = vmatprep.subr.mxu0 0.0
        %589 = vmatpush1.msra.mxu0 0.0
        %590 = vmatprep.subr.mxu0 0.0
        %591 = vmatpush1.msra.mxu0 0.0
        %592 = vmatprep.subr.mxu0 0.0
        %593 = vmatpush1.msra.mxu0 0.0
        %594 = vmatprep.subr.mxu0 0.0
        %595 = vmatpush1.msra.mxu0 0.0
        %596 = vmatprep.subr.mxu0 0.0
        %597 = vmatpush1.msra.mxu0 0.0
        %598 = vmatprep.subr.mxu0 0.0
        %599 = vmatpush1.msra.mxu0 0.0
        %600 = vmatprep.subr.mxu0 0.0
        %601 = vmatpush1.msra.mxu0 0.0
        %602 = vmatprep.subr.mxu0 0.0
        %603 = vmatpush1.msra.mxu0 0.0
        %604 = vmatprep.subr.mxu0 0.0
        %605 = vmatpush1.msra.mxu0 0.0
        %606 = vmatprep.subr.mxu0 0.0
        %607 = vmatpush1.msra.mxu0 0.0
        %608 = vmatprep.subr.mxu0 0.0
        %609 = vmatpush1.msra.mxu0 0.0
        %610 = vmatprep.subr.mxu0 0.0
        %611 = vmatpush1.msra.mxu0 0.0
        %612 = vmatprep.subr.mxu0 0.0
        %613 = vmatpush1.msra.mxu0 0.0
        %614 = vmatprep.subr.mxu0 0.0
        %615 = vmatpush1.msra.mxu0 0.0
        %616 = vmatprep.subr.mxu0 0.0
        %617 = vmatpush1.msra.mxu0 0.0
        %618 = vmatprep.mubr.f32.mxu0 0.0
        %619 = vmatmul.mubr.f32.gmra.mrb[0].mxu0 %v552
        %v620 = vpop.f32.mrb[0].mxu0
        %v621 = vadd.f32 0.0, %v620
        %v622 = vpop.f32.mrb[0].mxu0
        %v623 = vadd.f32 0.0, %v622
        %624 = vdwg.mxu0
        %v626 = vsel %vm550, %v535, 0
        %628 = vmatprep.subr.mxu0 %v537
        %629 = vmatpush1.msra.mxu0 %v536
        %630 = vmatprep.subr.mxu0 0.0
        %631 = vmatpush1.msra.mxu0 0.0
        %632 = vmatprep.subr.mxu0 0.0
        %633 = vmatpush1.msra.mxu0 0.0
        %634 = vmatprep.subr.mxu0 0.0
        %635 = vmatpush1.msra.mxu0 0.0
        %636 = vmatprep.subr.mxu0 0.0
        %637 = vmatpush1.msra.mxu0 0.0
        %638 = vmatprep.subr.mxu0 0.0
        %639 = vmatpush1.msra.mxu0 0.0
        %640 = vmatprep.subr.mxu0 0.0
        %641 = vmatpush1.msra.mxu0 0.0
        %642 = vmatprep.subr.mxu0 0.0
        %643 = vmatpush1.msra.mxu0 0.0
        %644 = vmatprep.subr.mxu0 0.0
        %645 = vmatpush1.msra.mxu0 0.0
        %646 = vmatprep.subr.mxu0 0.0
        %647 = vmatpush1.msra.mxu0 0.0
        %648 = vmatprep.subr.mxu0 0.0
        %649 = vmatpush1.msra.mxu0 0.0
        %650 = vmatprep.subr.mxu0 0.0
        %651 = vmatpush1.msra.mxu0 0.0
        %652 = vmatprep.subr.mxu0 0.0
        %653 = vmatpush1.msra.mxu0 0.0
        %654 = vmatprep.subr.mxu0 0.0
        %655 = vmatpush1.msra.mxu0 0.0
        %656 = vmatprep.subr.mxu0 0.0
        %657 = vmatpush1.msra.mxu0 0.0
        %658 = vmatprep.subr.mxu0 0.0
        %659 = vmatpush1.msra.mxu0 0.0
        %660 = vmatprep.subr.mxu0 0.0
        %661 = vmatpush1.msra.mxu0 0.0
        %662 = vmatprep.subr.mxu0 0.0
        %663 = vmatpush1.msra.mxu0 0.0
        %664 = vmatprep.subr.mxu0 0.0
        %665 = vmatpush1.msra.mxu0 0.0
        %666 = vmatprep.subr.mxu0 0.0
        %667 = vmatpush1.msra.mxu0 0.0
        %668 = vmatprep.subr.mxu0 0.0
        %669 = vmatpush1.msra.mxu0 0.0
        %670 = vmatprep.subr.mxu0 0.0
        %671 = vmatpush1.msra.mxu0 0.0
        %672 = vmatprep.subr.mxu0 0.0
        %673 = vmatpush1.msra.mxu0 0.0
        %674 = vmatprep.subr.mxu0 0.0
        %675 = vmatpush1.msra.mxu0 0.0
        %676 = vmatprep.subr.mxu0 0.0
        %677 = vmatpush1.msra.mxu0 0.0
        %678 = vmatprep.subr.mxu0 0.0
        %679 = vmatpush1.msra.mxu0 0.0
        %680 = vmatprep.subr.mxu0 0.0
        %681 = vmatpush1.msra.mxu0 0.0
        %682 = vmatprep.subr.mxu0 0.0
        %683 = vmatpush1.msra.mxu0 0.0
        %684 = vmatprep.subr.mxu0 0.0
        %685 = vmatpush1.msra.mxu0 0.0
        %686 = vmatprep.subr.mxu0 0.0
        %687 = vmatpush1.msra.mxu0 0.0
        %688 = vmatprep.subr.mxu0 0.0
        %689 = vmatpush1.msra.mxu0 0.0
        %690 = vmatprep.subr.mxu0 0.0
        %691 = vmatpush1.msra.mxu0 0.0
        %692 = vmatprep.mubr.f32.mxu0 0.0
        %693 = vmatmul.mubr.f32.gmra.mrb[0].mxu0 %v626
        %v694 = vpop.f32.mrb[0].mxu0
        %v695 = vadd.f32 %v621, %v694
        %v696 = vpop.f32.mrb[0].mxu0
        %v697 = vadd.f32 %v623, %v696
        %698 = vdwg.mxu0
        %s699 = scalar_lea.vmem %s3, 16
        %v700 = vld [vmem:[%s699] sm:$0xff]
        %701 = vrot.lane.b32.xlu0 %v536, 126
        %v702 = vpop.permute.xlu0 %701
        %703 = vrot.lane.b32.xlu0 %v537, 126
        %v704 = vpop.permute.xlu0 %703
        %vm705 = vcmask 1031168
        %v706 = vsel %vm705, %v702, %v704
        %v710 = vsel %vm550, %v700, 0
        %712 = vmatprep.subr.mxu0 %v704
        %713 = vmatpush1.msra.mxu0 %v706
        %714 = vmatprep.subr.mxu0 0.0
        %715 = vmatpush1.msra.mxu0 0.0
        %716 = vmatprep.subr.mxu0 0.0
        %717 = vmatpush1.msra.mxu0 0.0
        %718 = vmatprep.subr.mxu0 0.0
        %719 = vmatpush1.msra.mxu0 0.0
        %720 = vmatprep.subr.mxu0 0.0
        %721 = vmatpush1.msra.mxu0 0.0
        %722 = vmatprep.subr.mxu0 0.0
        %723 = vmatpush1.msra.mxu0 0.0
        %724 = vmatprep.subr.mxu0 0.0
        %725 = vmatpush1.msra.mxu0 0.0
        %726 = vmatprep.subr.mxu0 0.0
        %727 = vmatpush1.msra.mxu0 0.0
        %728 = vmatprep.subr.mxu0 0.0
        %729 = vmatpush1.msra.mxu0 0.0
        %730 = vmatprep.subr.mxu0 0.0
        %731 = vmatpush1.msra.mxu0 0.0
        %732 = vmatprep.subr.mxu0 0.0
        %733 = vmatpush1.msra.mxu0 0.0
        %734 = vmatprep.subr.mxu0 0.0
        %735 = vmatpush1.msra.mxu0 0.0
        %736 = vmatprep.subr.mxu0 0.0
        %737 = vmatpush1.msra.mxu0 0.0
        %738 = vmatprep.subr.mxu0 0.0
        %739 = vmatpush1.msra.mxu0 0.0
        %740 = vmatprep.subr.mxu0 0.0
        %741 = vmatpush1.msra.mxu0 0.0
        %742 = vmatprep.subr.mxu0 0.0
        %743 = vmatpush1.msra.mxu0 0.0
        %744 = vmatprep.subr.mxu0 0.0
        %745 = vmatpush1.msra.mxu0 0.0
        %746 = vmatprep.subr.mxu0 0.0
        %747 = vmatpush1.msra.mxu0 0.0
        %748 = vmatprep.subr.mxu0 0.0
        %749 = vmatpush1.msra.mxu0 0.0
        %750 = vmatprep.subr.mxu0 0.0
        %751 = vmatpush1.msra.mxu0 0.0
        %752 = vmatprep.subr.mxu0 0.0
        %753 = vmatpush1.msra.mxu0 0.0
        %754 = vmatprep.subr.mxu0 0.0
        %755 = vmatpush1.msra.mxu0 0.0
        %756 = vmatprep.subr.mxu0 0.0
        %757 = vmatpush1.msra.mxu0 0.0
        %758 = vmatprep.subr.mxu0 0.0
        %759 = vmatpush1.msra.mxu0 0.0
        %760 = vmatprep.subr.mxu0 0.0
        %761 = vmatpush1.msra.mxu0 0.0
        %762 = vmatprep.subr.mxu0 0.0
        %763 = vmatpush1.msra.mxu0 0.0
        %764 = vmatprep.subr.mxu0 0.0
        %765 = vmatpush1.msra.mxu0 0.0
        %766 = vmatprep.subr.mxu0 0.0
        %767 = vmatpush1.msra.mxu0 0.0
        %768 = vmatprep.subr.mxu0 0.0
        %769 = vmatpush1.msra.mxu0 0.0
        %770 = vmatprep.subr.mxu0 0.0
        %771 = vmatpush1.msra.mxu0 0.0
        %772 = vmatprep.subr.mxu0 0.0
        %773 = vmatpush1.msra.mxu0 0.0
        %774 = vmatprep.subr.mxu0 0.0
        %775 = vmatpush1.msra.mxu0 0.0
        %776 = vmatprep.mubr.f32.mxu0 0.0
        %777 = vmatmul.mubr.f32.gmra.mrb[0].mxu0 %v710
        %v778 = vpop.f32.mrb[0].mxu0
        %v779 = vadd.f32 0.0, %v778
        %v780 = vpop.f32.mrb[0].mxu0
        %v781 = vadd.f32 0.0, %v780
        %782 = vdwg.mxu0
        %v783 = vadd.f32 %v695, %v779
        %v784 = vadd.f32 %v697, %v781
        %s785 = scalar_lea.vmem %s3, 24
        %v786 = vld [vmem:[%s785] sm:$0xff]
        %787 = vrot.lane.b32.xlu0 %v536, 125
        %v788 = vpop.permute.xlu0 %787
        %789 = vrot.lane.b32.xlu0 %v537, 125
        %v790 = vpop.permute.xlu0 %789
        %vm791 = vcmask 1022976
        %v792 = vsel %vm791, %v788, %v790
        %v796 = vsel %vm550, %v786, 0
        %798 = vmatprep.subr.mxu0 %v790
        %799 = vmatpush1.msra.mxu0 %v792
        %800 = vmatprep.subr.mxu0 0.0
        %801 = vmatpush1.msra.mxu0 0.0
        %802 = vmatprep.subr.mxu0 0.0
        %803 = vmatpush1.msra.mxu0 0.0
        %804 = vmatprep.subr.mxu0 0.0
        %805 = vmatpush1.msra.mxu0 0.0
        %806 = vmatprep.subr.mxu0 0.0
        %807 = vmatpush1.msra.mxu0 0.0
        %808 = vmatprep.subr.mxu0 0.0
        %809 = vmatpush1.msra.mxu0 0.0
        %810 = vmatprep.subr.mxu0 0.0
        %811 = vmatpush1.msra.mxu0 0.0
        %812 = vmatprep.subr.mxu0 0.0
        %813 = vmatpush1.msra.mxu0 0.0
        %814 = vmatprep.subr.mxu0 0.0
        %815 = vmatpush1.msra.mxu0 0.0
        %816 = vmatprep.subr.mxu0 0.0
        %817 = vmatpush1.msra.mxu0 0.0
        %818 = vmatprep.subr.mxu0 0.0
        %819 = vmatpush1.msra.mxu0 0.0
        %820 = vmatprep.subr.mxu0 0.0
        %821 = vmatpush1.msra.mxu0 0.0
        %822 = vmatprep.subr.mxu0 0.0
        %823 = vmatpush1.msra.mxu0 0.0
        %824 = vmatprep.subr.mxu0 0.0
        %825 = vmatpush1.msra.mxu0 0.0
        %826 = vmatprep.subr.mxu0 0.0
        %827 = vmatpush1.msra.mxu0 0.0
        %828 = vmatprep.subr.mxu0 0.0
        %829 = vmatpush1.msra.mxu0 0.0
        %830 = vmatprep.subr.mxu0 0.0
        %831 = vmatpush1.msra.mxu0 0.0
        %832 = vmatprep.subr.mxu0 0.0
        %833 = vmatpush1.msra.mxu0 0.0
        %834 = vmatprep.subr.mxu0 0.0
        %835 = vmatpush1.msra.mxu0 0.0
        %836 = vmatprep.subr.mxu0 0.0
        %837 = vmatpush1.msra.mxu0 0.0
        %838 = vmatprep.subr.mxu0 0.0
        %839 = vmatpush1.msra.mxu0 0.0
        %840 = vmatprep.subr.mxu0 0.0
        %841 = vmatpush1.msra.mxu0 0.0
        %842 = vmatprep.subr.mxu0 0.0
        %843 = vmatpush1.msra.mxu0 0.0
        %844 = vmatprep.subr.mxu0 0.0
        %845 = vmatpush1.msra.mxu0 0.0
        %846 = vmatprep.subr.mxu0 0.0
        %847 = vmatpush1.msra.mxu0 0.0
        %848 = vmatprep.subr.mxu0 0.0
        %849 = vmatpush1.msra.mxu0 0.0
        %850 = vmatprep.subr.mxu0 0.0
        %851 = vmatpush1.msra.mxu0 0.0
        %852 = vmatprep.subr.mxu0 0.0
        %853 = vmatpush1.msra.mxu0 0.0
        %854 = vmatprep.subr.mxu0 0.0
        %855 = vmatpush1.msra.mxu0 0.0
        %856 = vmatprep.subr.mxu0 0.0
        %857 = vmatpush1.msra.mxu0 0.0
        %858 = vmatprep.subr.mxu0 0.0
        %859 = vmatpush1.msra.mxu0 0.0
        %860 = vmatprep.subr.mxu0 0.0
        %861 = vmatpush1.msra.mxu0 0.0
        %862 = vmatprep.mubr.f32.mxu0 0.0
        %863 = vmatmul.mubr.f32.gmra.mrb[0].mxu0 %v796
        %v864 = vpop.f32.mrb[0].mxu0
        %v865 = vadd.f32 0.0, %v864
        %v866 = vpop.f32.mrb[0].mxu0
        %v867 = vadd.f32 0.0, %v866
        %868 = vdwg.mxu0
        %v869 = vadd.f32 %v783, %v865
        %v870 = vadd.f32 %v784, %v867
        %s871 = scalar_lea.vmem %s3, 32
        %v872 = vld [vmem:[%s871] sm:$0xff]
        %873 = vrot.lane.b32.xlu0 %v536, 124
        %v874 = vpop.permute.xlu0 %873
        %875 = vrot.lane.b32.xlu0 %v537, 124
        %v876 = vpop.permute.xlu0 %875
        %vm877 = vcmask 1014784
        %v878 = vsel %vm877, %v874, %v876
        %v882 = vsel %vm550, %v872, 0
        %884 = vmatprep.subr.mxu0 %v876
        %885 = vmatpush1.msra.mxu0 %v878
        %886 = vmatprep.subr.mxu0 0.0
        %887 = vmatpush1.msra.mxu0 0.0
        %888 = vmatprep.subr.mxu0 0.0
        %889 = vmatpush1.msra.mxu0 0.0
        %890 = vmatprep.subr.mxu0 0.0
        %891 = vmatpush1.msra.mxu0 0.0
        %892 = vmatprep.subr.mxu0 0.0
        %893 = vmatpush1.msra.mxu0 0.0
        %894 = vmatprep.subr.mxu0 0.0
        %895 = vmatpush1.msra.mxu0 0.0
        %896 = vmatprep.subr.mxu0 0.0
        %897 = vmatpush1.msra.mxu0 0.0
        %898 = vmatprep.subr.mxu0 0.0
        %899 = vmatpush1.msra.mxu0 0.0
        %900 = vmatprep.subr.mxu0 0.0
        %901 = vmatpush1.msra.mxu0 0.0
        %902 = vmatprep.subr.mxu0 0.0
        %903 = vmatpush1.msra.mxu0 0.0
        %904 = vmatprep.subr.mxu0 0.0
        %905 = vmatpush1.msra.mxu0 0.0
        %906 = vmatprep.subr.mxu0 0.0
        %907 = vmatpush1.msra.mxu0 0.0
        %908 = vmatprep.subr.mxu0 0.0
        %909 = vmatpush1.msra.mxu0 0.0
        %910 = vmatprep.subr.mxu0 0.0
        %911 = vmatpush1.msra.mxu0 0.0
        %912 = vmatprep.subr.mxu0 0.0
        %913 = vmatpush1.msra.mxu0 0.0
        %914 = vmatprep.subr.mxu0 0.0
        %915 = vmatpush1.msra.mxu0 0.0
        %916 = vmatprep.subr.mxu0 0.0
        %917 = vmatpush1.msra.mxu0 0.0
        %918 = vmatprep.subr.mxu0 0.0
        %919 = vmatpush1.msra.mxu0 0.0
        %920 = vmatprep.subr.mxu0 0.0
        %921 = vmatpush1.msra.mxu0 0.0
        %922 = vmatprep.subr.mxu0 0.0
        %923 = vmatpush1.msra.mxu0 0.0
        %924 = vmatprep.subr.mxu0 0.0
        %925 = vmatpush1.msra.mxu0 0.0
        %926 = vmatprep.subr.mxu0 0.0
        %927 = vmatpush1.msra.mxu0 0.0
        %928 = vmatprep.subr.mxu0 0.0
        %929 = vmatpush1.msra.mxu0 0.0
        %930 = vmatprep.subr.mxu0 0.0
        %931 = vmatpush1.msra.mxu0 0.0
        %932 = vmatprep.subr.mxu0 0.0
        %933 = vmatpush1.msra.mxu0 0.0
        %934 = vmatprep.subr.mxu0 0.0
        %935 = vmatpush1.msra.mxu0 0.0
        %936 = vmatprep.subr.mxu0 0.0
        %937 = vmatpush1.msra.mxu0 0.0
        %938 = vmatprep.subr.mxu0 0.0
        %939 = vmatpush1.msra.mxu0 0.0
        %940 = vmatprep.subr.mxu0 0.0
        %941 = vmatpush1.msra.mxu0 0.0
        %942 = vmatprep.subr.mxu0 0.0
        %943 = vmatpush1.msra.mxu0 0.0
        %944 = vmatprep.subr.mxu0 0.0
        %945 = vmatpush1.msra.mxu0 0.0
        %946 = vmatprep.subr.mxu0 0.0
        %947 = vmatpush1.msra.mxu0 0.0
        %948 = vmatprep.mubr.f32.mxu0 0.0
        %949 = vmatmul.mubr.f32.gmra.mrb[0].mxu0 %v882
        %v950 = vpop.f32.mrb[0].mxu0
        %v951 = vadd.f32 0.0, %v950
        %v952 = vpop.f32.mrb[0].mxu0
        %v953 = vadd.f32 0.0, %v952
        %954 = vdwg.mxu0
        %v955 = vadd.f32 %v869, %v951
        %v956 = vadd.f32 %v870, %v953
        %v957 = vld [vmem:[%s4] sm:$0xff]
        %959 = vset.pattern.permute.xlu0 0
        %960 = vperm.xlu0 %959, %v957
        %v961 = vpop.permute.xlu0 %960
        %v963 = vadd.f32 %v955, %v961
        %v964 = vadd.f32 %v956, %v961
        %vm965 = vcmp.gt.f32.partialorder %v963, 0.0
        %vm966 = vcmp.gt.f32.partialorder %v964, 0.0
        %v967 = vmul.f32 %v963, 0.1
        %v968 = vmul.f32 %v964, 0.1
        %v969 = vsel %vm965, %v963, %v967
        %v970 = vsel %vm966, %v964, %v968
        %973 = vrot.lane.b32.xlu0 %v969, 2
        %v974 = vpop.permute.xlu0 %973
        %975 = vrot.lane.b32.xlu0 %v970, 2
        %v976 = vpop.permute.xlu0 %975
        %vm977 = vcmask 15360
        %v978 = vsel %vm977, %v974, %v976
        %vm981 = vcmask 1047568
        %982 = vst.msk [vmem:[#allocation4] sm:$0xff] %vm981, %v974
        %vm983 = vcmask 179200
        %984 = vst.msk [vmem:[#allocation4 + $0x8] sm:$0xff] %vm983, %v978
        // Predicated region
        $region81: #{_lambda_.3} parent=51 // pred_check
          %p985 = pneg %p483
        $region82: #{_lambda_.3} parent=51 // pred_check_branch
          %987 = sbr.rel (%p985) target = $region84
        $region83: #{_lambda_.3} parent=51 // pred_region
          %vm988 = vcmask 97296
          %989 = vst.msk [vmem:[#allocation4] sm:$0xff] %vm988, 0.0
        $region84: #{_lambda_.3} parent=51 // pred_fallthru
          _
        // Predicated region
        $region85: #{_lambda_.3} parent=51 // pred_check
          %p990 = pneg %p488
        $region86: #{_lambda_.3} parent=51 // pred_check_branch
          %992 = sbr.rel (%p990) target = $region88
        $region87: #{_lambda_.3} parent=51 // pred_region
          %vm993 = vcmask 179296
          %994 = vst.msk [vmem:[#allocation4 + $0x8] sm:$0xff] %vm993, 0.0
        $region88: #{_lambda_.3} parent=51 // pred_fallthru
          _
        %v995 = vld [vmem:[%s5] sm:$0xff]
        %v996 = vld [vmem:[#allocation4] sm:$0xff]
        %v997 = vld [vmem:[#allocation4 + $0x8] sm:$0xff]
        %s998 = scalar_lea.vmem %s5, 8
        %v999 = vld [vmem:[%s998] sm:$0xff]
        %1002 = vrot.lane.b32.xlu0 %v996, 125
        %v1003 = vpop.permute.xlu0 %1002
        %1004 = vrot.lane.b32.xlu0 %v997, 125
        %v1005 = vpop.permute.xlu0 %1004
        %v1006 = vsel %vm791, %v1003, %v1005
        %v1010 = vsel %vm550, %v999, 0
        %1012 = vmatprep.subr.mxu0 %v1005
        %1013 = vmatpush1.msra.mxu0 %v1006
        %1014 = vmatprep.subr.mxu0 0.0
        %1015 = vmatpush1.msra.mxu0 0.0
        %1016 = vmatprep.subr.mxu0 0.0
        %1017 = vmatpush1.msra.mxu0 0.0
        %1018 = vmatprep.subr.mxu0 0.0
        %1019 = vmatpush1.msra.mxu0 0.0
        %1020 = vmatprep.subr.mxu0 0.0
        %1021 = vmatpush1.msra.mxu0 0.0
        %1022 = vmatprep.subr.mxu0 0.0
        %1023 = vmatpush1.msra.mxu0 0.0
        %1024 = vmatprep.subr.mxu0 0.0
        %1025 = vmatpush1.msra.mxu0 0.0
        %1026 = vmatprep.subr.mxu0 0.0
        %1027 = vmatpush1.msra.mxu0 0.0
        %1028 = vmatprep.subr.mxu0 0.0
        %1029 = vmatpush1.msra.mxu0 0.0
        %1030 = vmatprep.subr.mxu0 0.0
        %1031 = vmatpush1.msra.mxu0 0.0
        %1032 = vmatprep.subr.mxu0 0.0
        %1033 = vmatpush1.msra.mxu0 0.0
        %1034 = vmatprep.subr.mxu0 0.0
        %1035 = vmatpush1.msra.mxu0 0.0
        %1036 = vmatprep.subr.mxu0 0.0
        %1037 = vmatpush1.msra.mxu0 0.0
        %1038 = vmatprep.subr.mxu0 0.0
        %1039 = vmatpush1.msra.mxu0 0.0
        %1040 = vmatprep.subr.mxu0 0.0
        %1041 = vmatpush1.msra.mxu0 0.0
        %1042 = vmatprep.subr.mxu0 0.0
        %1043 = vmatpush1.msra.mxu0 0.0
        %1044 = vmatprep.subr.mxu0 0.0
        %1045 = vmatpush1.msra.mxu0 0.0
        %1046 = vmatprep.subr.mxu0 0.0
        %1047 = vmatpush1.msra.mxu0 0.0
        %1048 = vmatprep.subr.mxu0 0.0
        %1049 = vmatpush1.msra.mxu0 0.0
        %1050 = vmatprep.subr.mxu0 0.0
        %1051 = vmatpush1.msra.mxu0 0.0
        %1052 = vmatprep.subr.mxu0 0.0
        %1053 = vmatpush1.msra.mxu0 0.0
        %1054 = vmatprep.subr.mxu0 0.0
        %1055 = vmatpush1.msra.mxu0 0.0
        %1056 = vmatprep.subr.mxu0 0.0
        %1057 = vmatpush1.msra.mxu0 0.0
        %1058 = vmatprep.subr.mxu0 0.0
        %1059 = vmatpush1.msra.mxu0 0.0
        %1060 = vmatprep.subr.mxu0 0.0
        %1061 = vmatpush1.msra.mxu0 0.0
        %1062 = vmatprep.subr.mxu0 0.0
        %1063 = vmatpush1.msra.mxu0 0.0
        %1064 = vmatprep.subr.mxu0 0.0
        %1065 = vmatpush1.msra.mxu0 0.0
        %1066 = vmatprep.subr.mxu0 0.0
        %1067 = vmatpush1.msra.mxu0 0.0
        %1068 = vmatprep.subr.mxu0 0.0
        %1069 = vmatpush1.msra.mxu0 0.0
        %1070 = vmatprep.subr.mxu0 0.0
        %1071 = vmatpush1.msra.mxu0 0.0
        %1072 = vmatprep.subr.mxu0 0.0
        %1073 = vmatpush1.msra.mxu0 0.0
        %1074 = vmatprep.subr.mxu0 0.0
        %1075 = vmatpush1.msra.mxu0 0.0
        %1076 = vmatprep.mubr.f32.mxu0 0.0
        %1077 = vmatmul.mubr.f32.gmra.mrb[0].mxu0 %v1010
        %v1078 = vpop.f32.mrb[0].mxu0
        %v1079 = vadd.f32 0.0, %v1078
        %v1080 = vpop.f32.mrb[0].mxu0
        %v1081 = vadd.f32 0.0, %v1080
        %1082 = vdwg.mxu0
        %1083 = vrot.lane.b32.xlu0 %v996, 126
        %v1084 = vpop.permute.xlu0 %1083
        %1085 = vrot.lane.b32.xlu0 %v997, 126
        %v1086 = vpop.permute.xlu0 %1085
        %v1087 = vsel %vm705, %v1084, %v1086
        %v1091 = vsel %vm550, %v995, 0
        %1093 = vmatprep.subr.mxu0 %v1086
        %1094 = vmatpush1.msra.mxu0 %v1087
        %1095 = vmatprep.subr.mxu0 0.0
        %1096 = vmatpush1.msra.mxu0 0.0
        %1097 = vmatprep.subr.mxu0 0.0
        %1098 = vmatpush1.msra.mxu0 0.0
        %1099 = vmatprep.subr.mxu0 0.0
        %1100 = vmatpush1.msra.mxu0 0.0
        %1101 = vmatprep.subr.mxu0 0.0
        %1102 = vmatpush1.msra.mxu0 0.0
        %1103 = vmatprep.subr.mxu0 0.0
        %1104 = vmatpush1.msra.mxu0 0.0
        %1105 = vmatprep.subr.mxu0 0.0
        %1106 = vmatpush1.msra.mxu0 0.0
        %1107 = vmatprep.subr.mxu0 0.0
        %1108 = vmatpush1.msra.mxu0 0.0
        %1109 = vmatprep.subr.mxu0 0.0
        %1110 = vmatpush1.msra.mxu0 0.0
        %1111 = vmatprep.subr.mxu0 0.0
        %1112 = vmatpush1.msra.mxu0 0.0
        %1113 = vmatprep.subr.mxu0 0.0
        %1114 = vmatpush1.msra.mxu0 0.0
        %1115 = vmatprep.subr.mxu0 0.0
        %1116 = vmatpush1.msra.mxu0 0.0
        %1117 = vmatprep.subr.mxu0 0.0
        %1118 = vmatpush1.msra.mxu0 0.0
        %1119 = vmatprep.subr.mxu0 0.0
        %1120 = vmatpush1.msra.mxu0 0.0
        %1121 = vmatprep.subr.mxu0 0.0
        %1122 = vmatpush1.msra.mxu0 0.0
        %1123 = vmatprep.subr.mxu0 0.0
        %1124 = vmatpush1.msra.mxu0 0.0
        %1125 = vmatprep.subr.mxu0 0.0
        %1126 = vmatpush1.msra.mxu0 0.0
        %1127 = vmatprep.subr.mxu0 0.0
        %1128 = vmatpush1.msra.mxu0 0.0
        %1129 = vmatprep.subr.mxu0 0.0
        %1130 = vmatpush1.msra.mxu0 0.0
        %1131 = vmatprep.subr.mxu0 0.0
        %1132 = vmatpush1.msra.mxu0 0.0
        %1133 = vmatprep.subr.mxu0 0.0
        %1134 = vmatpush1.msra.mxu0 0.0
        %1135 = vmatprep.subr.mxu0 0.0
        %1136 = vmatpush1.msra.mxu0 0.0
        %1137 = vmatprep.subr.mxu0 0.0
        %1138 = vmatpush1.msra.mxu0 0.0
        %1139 = vmatprep.subr.mxu0 0.0
        %1140 = vmatpush1.msra.mxu0 0.0
        %1141 = vmatprep.subr.mxu0 0.0
        %1142 = vmatpush1.msra.mxu0 0.0
        %1143 = vmatprep.subr.mxu0 0.0
        %1144 = vmatpush1.msra.mxu0 0.0
        %1145 = vmatprep.subr.mxu0 0.0
        %1146 = vmatpush1.msra.mxu0 0.0
        %1147 = vmatprep.subr.mxu0 0.0
        %1148 = vmatpush1.msra.mxu0 0.0
        %1149 = vmatprep.subr.mxu0 0.0
        %1150 = vmatpush1.msra.mxu0 0.0
        %1151 = vmatprep.subr.mxu0 0.0
        %1152 = vmatpush1.msra.mxu0 0.0
        %1153 = vmatprep.subr.mxu0 0.0
        %1154 = vmatpush1.msra.mxu0 0.0
        %1155 = vmatprep.subr.mxu0 0.0
        %1156 = vmatpush1.msra.mxu0 0.0
        %1157 = vmatprep.mubr.f32.mxu0 0.0
        %1158 = vmatmul.mubr.f32.gmra.mrb[0].mxu0 %v1091
        %v1159 = vpop.f32.mrb[0].mxu0
        %v1160 = vadd.f32 %v1079, %v1159
        %v1161 = vpop.f32.mrb[0].mxu0
        %v1162 = vadd.f32 %v1081, %v1161
        %1163 = vdwg.mxu0
        %s1164 = scalar_lea.vmem %s5, 16
        %v1165 = vld [vmem:[%s1164] sm:$0xff]
        %1166 = vrot.lane.b32.xlu0 %v996, 124
        %v1167 = vpop.permute.xlu0 %1166
        %1168 = vrot.lane.b32.xlu0 %v997, 124
        %v1169 = vpop.permute.xlu0 %1168
        %v1170 = vsel %vm877, %v1167, %v1169
        %v1174 = vsel %vm550, %v1165, 0
        %1176 = vmatprep.subr.mxu0 %v1169
        %1177 = vmatpush1.msra.mxu0 %v1170
        %1178 = vmatprep.subr.mxu0 0.0
        %1179 = vmatpush1.msra.mxu0 0.0
        %1180 = vmatprep.subr.mxu0 0.0
        %1181 = vmatpush1.msra.mxu0 0.0
        %1182 = vmatprep.subr.mxu0 0.0
        %1183 = vmatpush1.msra.mxu0 0.0
        %1184 = vmatprep.subr.mxu0 0.0
        %1185 = vmatpush1.msra.mxu0 0.0
        %1186 = vmatprep.subr.mxu0 0.0
        %1187 = vmatpush1.msra.mxu0 0.0
        %1188 = vmatprep.subr.mxu0 0.0
        %1189 = vmatpush1.msra.mxu0 0.0
        %1190 = vmatprep.subr.mxu0 0.0
        %1191 = vmatpush1.msra.mxu0 0.0
        %1192 = vmatprep.subr.mxu0 0.0
        %1193 = vmatpush1.msra.mxu0 0.0
        %1194 = vmatprep.subr.mxu0 0.0
        %1195 = vmatpush1.msra.mxu0 0.0
        %1196 = vmatprep.subr.mxu0 0.0
        %1197 = vmatpush1.msra.mxu0 0.0
        %1198 = vmatprep.subr.mxu0 0.0
        %1199 = vmatpush1.msra.mxu0 0.0
        %1200 = vmatprep.subr.mxu0 0.0
        %1201 = vmatpush1.msra.mxu0 0.0
        %1202 = vmatprep.subr.mxu0 0.0
        %1203 = vmatpush1.msra.mxu0 0.0
        %1204 = vmatprep.subr.mxu0 0.0
        %1205 = vmatpush1.msra.mxu0 0.0
        %1206 = vmatprep.subr.mxu0 0.0
        %1207 = vmatpush1.msra.mxu0 0.0
        %1208 = vmatprep.subr.mxu0 0.0
        %1209 = vmatpush1.msra.mxu0 0.0
        %1210 = vmatprep.subr.mxu0 0.0
        %1211 = vmatpush1.msra.mxu0 0.0
        %1212 = vmatprep.subr.mxu0 0.0
        %1213 = vmatpush1.msra.mxu0 0.0
        %1214 = vmatprep.subr.mxu0 0.0
        %1215 = vmatpush1.msra.mxu0 0.0
        %1216 = vmatprep.subr.mxu0 0.0
        %1217 = vmatpush1.msra.mxu0 0.0
        %1218 = vmatprep.subr.mxu0 0.0
        %1219 = vmatpush1.msra.mxu0 0.0
        %1220 = vmatprep.subr.mxu0 0.0
        %1221 = vmatpush1.msra.mxu0 0.0
        %1222 = vmatprep.subr.mxu0 0.0
        %1223 = vmatpush1.msra.mxu0 0.0
        %1224 = vmatprep.subr.mxu0 0.0
        %1225 = vmatpush1.msra.mxu0 0.0
        %1226 = vmatprep.subr.mxu0 0.0
        %1227 = vmatpush1.msra.mxu0 0.0
        %1228 = vmatprep.subr.mxu0 0.0
        %1229 = vmatpush1.msra.mxu0 0.0
        %1230 = vmatprep.subr.mxu0 0.0
        %1231 = vmatpush1.msra.mxu0 0.0
        %1232 = vmatprep.subr.mxu0 0.0
        %1233 = vmatpush1.msra.mxu0 0.0
        %1234 = vmatprep.subr.mxu0 0.0
        %1235 = vmatpush1.msra.mxu0 0.0
        %1236 = vmatprep.subr.mxu0 0.0
        %1237 = vmatpush1.msra.mxu0 0.0
        %1238 = vmatprep.subr.mxu0 0.0
        %1239 = vmatpush1.msra.mxu0 0.0
        %1240 = vmatprep.mubr.f32.mxu0 0.0
        %1241 = vmatmul.mubr.f32.gmra.mrb[0].mxu0 %v1174
        %v1242 = vpop.f32.mrb[0].mxu0
        %v1243 = vadd.f32 0.0, %v1242
        %v1244 = vpop.f32.mrb[0].mxu0
        %v1245 = vadd.f32 0.0, %v1244
        %1246 = vdwg.mxu0
        %v1247 = vadd.f32 %v1160, %v1243
        %v1248 = vadd.f32 %v1162, %v1245
        %s1249 = scalar_lea.vmem %s5, 24
        %v1250 = vld [vmem:[%s1249] sm:$0xff]
        %1251 = vrot.lane.b32.xlu0 %v996, 123
        %v1252 = vpop.permute.xlu0 %1251
        %1253 = vrot.lane.b32.xlu0 %v997, 123
        %v1254 = vpop.permute.xlu0 %1253
        %vm1255 = vcmask 1006592
        %v1256 = vsel %vm1255, %v1252, %v1254
        %v1260 = vsel %vm550, %v1250, 0
        %1262 = vmatprep.subr.mxu0 %v1254
        %1263 = vmatpush1.msra.mxu0 %v1256
        %1264 = vmatprep.subr.mxu0 0.0
        %1265 = vmatpush1.msra.mxu0 0.0
        %1266 = vmatprep.subr.mxu0 0.0
        %1267 = vmatpush1.msra.mxu0 0.0
        %1268 = vmatprep.subr.mxu0 0.0
        %1269 = vmatpush1.msra.mxu0 0.0
        %1270 = vmatprep.subr.mxu0 0.0
        %1271 = vmatpush1.msra.mxu0 0.0
        %1272 = vmatprep.subr.mxu0 0.0
        %1273 = vmatpush1.msra.mxu0 0.0
        %1274 = vmatprep.subr.mxu0 0.0
        %1275 = vmatpush1.msra.mxu0 0.0
        %1276 = vmatprep.subr.mxu0 0.0
        %1277 = vmatpush1.msra.mxu0 0.0
        %1278 = vmatprep.subr.mxu0 0.0
        %1279 = vmatpush1.msra.mxu0 0.0
        %1280 = vmatprep.subr.mxu0 0.0
        %1281 = vmatpush1.msra.mxu0 0.0
        %1282 = vmatprep.subr.mxu0 0.0
        %1283 = vmatpush1.msra.mxu0 0.0
        %1284 = vmatprep.subr.mxu0 0.0
        %1285 = vmatpush1.msra.mxu0 0.0
        %1286 = vmatprep.subr.mxu0 0.0
        %1287 = vmatpush1.msra.mxu0 0.0
        %1288 = vmatprep.subr.mxu0 0.0
        %1289 = vmatpush1.msra.mxu0 0.0
        %1290 = vmatprep.subr.mxu0 0.0
        %1291 = vmatpush1.msra.mxu0 0.0
        %1292 = vmatprep.subr.mxu0 0.0
        %1293 = vmatpush1.msra.mxu0 0.0
        %1294 = vmatprep.subr.mxu0 0.0
        %1295 = vmatpush1.msra.mxu0 0.0
        %1296 = vmatprep.subr.mxu0 0.0
        %1297 = vmatpush1.msra.mxu0 0.0
        %1298 = vmatprep.subr.mxu0 0.0
        %1299 = vmatpush1.msra.mxu0 0.0
        %1300 = vmatprep.subr.mxu0 0.0
        %1301 = vmatpush1.msra.mxu0 0.0
        %1302 = vmatprep.subr.mxu0 0.0
        %1303 = vmatpush1.msra.mxu0 0.0
        %1304 = vmatprep.subr.mxu0 0.0
        %1305 = vmatpush1.msra.mxu0 0.0
        %1306 = vmatprep.subr.mxu0 0.0
        %1307 = vmatpush1.msra.mxu0 0.0
        %1308 = vmatprep.subr.mxu0 0.0
        %1309 = vmatpush1.msra.mxu0 0.0
        %1310 = vmatprep.subr.mxu0 0.0
        %1311 = vmatpush1.msra.mxu0 0.0
        %1312 = vmatprep.subr.mxu0 0.0
        %1313 = vmatpush1.msra.mxu0 0.0
        %1314 = vmatprep.subr.mxu0 0.0
        %1315 = vmatpush1.msra.mxu0 0.0
        %1316 = vmatprep.subr.mxu0 0.0
        %1317 = vmatpush1.msra.mxu0 0.0
        %1318 = vmatprep.subr.mxu0 0.0
        %1319 = vmatpush1.msra.mxu0 0.0
        %1320 = vmatprep.subr.mxu0 0.0
        %1321 = vmatpush1.msra.mxu0 0.0
        %1322 = vmatprep.subr.mxu0 0.0
        %1323 = vmatpush1.msra.mxu0 0.0
        %1324 = vmatprep.subr.mxu0 0.0
        %1325 = vmatpush1.msra.mxu0 0.0
        %1326 = vmatprep.mubr.f32.mxu0 0.0
        %1327 = vmatmul.mubr.f32.gmra.mrb[0].mxu0 %v1260
        %v1328 = vpop.f32.mrb[0].mxu0
        %v1329 = vadd.f32 0.0, %v1328
        %v1330 = vpop.f32.mrb[0].mxu0
        %v1331 = vadd.f32 0.0, %v1330
        %1332 = vdwg.mxu0
        %v1333 = vadd.f32 %v1247, %v1329
        %v1334 = vadd.f32 %v1248, %v1331
        %s1335 = scalar_lea.vmem %s5, 32
        %v1336 = vld [vmem:[%s1335] sm:$0xff]
        %1337 = vrot.lane.b32.xlu0 %v996, 122
        %v1338 = vpop.permute.xlu0 %1337
        %1339 = vrot.lane.b32.xlu0 %v997, 122
        %v1340 = vpop.permute.xlu0 %1339
        %vm1341 = vcmask 998400
        %v1342 = vsel %vm1341, %v1338, %v1340
        %v1346 = vsel %vm550, %v1336, 0
        %1348 = vmatprep.subr.mxu0 %v1340
        %1349 = vmatpush1.msra.mxu0 %v1342
        %1350 = vmatprep.subr.mxu0 0.0
        %1351 = vmatpush1.msra.mxu0 0.0
        %1352 = vmatprep.subr.mxu0 0.0
        %1353 = vmatpush1.msra.mxu0 0.0
        %1354 = vmatprep.subr.mxu0 0.0
        %1355 = vmatpush1.msra.mxu0 0.0
        %1356 = vmatprep.subr.mxu0 0.0
        %1357 = vmatpush1.msra.mxu0 0.0
        %1358 = vmatprep.subr.mxu0 0.0
        %1359 = vmatpush1.msra.mxu0 0.0
        %1360 = vmatprep.subr.mxu0 0.0
        %1361 = vmatpush1.msra.mxu0 0.0
        %1362 = vmatprep.subr.mxu0 0.0
        %1363 = vmatpush1.msra.mxu0 0.0
        %1364 = vmatprep.subr.mxu0 0.0
        %1365 = vmatpush1.msra.mxu0 0.0
        %1366 = vmatprep.subr.mxu0 0.0
        %1367 = vmatpush1.msra.mxu0 0.0
        %1368 = vmatprep.subr.mxu0 0.0
        %1369 = vmatpush1.msra.mxu0 0.0
        %1370 = vmatprep.subr.mxu0 0.0
        %1371 = vmatpush1.msra.mxu0 0.0
        %1372 = vmatprep.subr.mxu0 0.0
        %1373 = vmatpush1.msra.mxu0 0.0
        %1374 = vmatprep.subr.mxu0 0.0
        %1375 = vmatpush1.msra.mxu0 0.0
        %1376 = vmatprep.subr.mxu0 0.0
        %1377 = vmatpush1.msra.mxu0 0.0
        %1378 = vmatprep.subr.mxu0 0.0
        %1379 = vmatpush1.msra.mxu0 0.0
        %1380 = vmatprep.subr.mxu0 0.0
        %1381 = vmatpush1.msra.mxu0 0.0
        %1382 = vmatprep.subr.mxu0 0.0
        %1383 = vmatpush1.msra.mxu0 0.0
        %1384 = vmatprep.subr.mxu0 0.0
        %1385 = vmatpush1.msra.mxu0 0.0
        %1386 = vmatprep.subr.mxu0 0.0
        %1387 = vmatpush1.msra.mxu0 0.0
        %1388 = vmatprep.subr.mxu0 0.0
        %1389 = vmatpush1.msra.mxu0 0.0
        %1390 = vmatprep.subr.mxu0 0.0
        %1391 = vmatpush1.msra.mxu0 0.0
        %1392 = vmatprep.subr.mxu0 0.0
        %1393 = vmatpush1.msra.mxu0 0.0
        %1394 = vmatprep.subr.mxu0 0.0
        %1395 = vmatpush1.msra.mxu0 0.0
        %1396 = vmatprep.subr.mxu0 0.0
        %1397 = vmatpush1.msra.mxu0 0.0
        %1398 = vmatprep.subr.mxu0 0.0
        %1399 = vmatpush1.msra.mxu0 0.0
        %1400 = vmatprep.subr.mxu0 0.0
        %1401 = vmatpush1.msra.mxu0 0.0
        %1402 = vmatprep.subr.mxu0 0.0
        %1403 = vmatpush1.msra.mxu0 0.0
        %1404 = vmatprep.subr.mxu0 0.0
        %1405 = vmatpush1.msra.mxu0 0.0
        %1406 = vmatprep.subr.mxu0 0.0
        %1407 = vmatpush1.msra.mxu0 0.0
        %1408 = vmatprep.subr.mxu0 0.0
        %1409 = vmatpush1.msra.mxu0 0.0
        %1410 = vmatprep.subr.mxu0 0.0
        %1411 = vmatpush1.msra.mxu0 0.0
        %1412 = vmatprep.mubr.f32.mxu0 0.0
        %1413 = vmatmul.mubr.f32.gmra.mrb[0].mxu0 %v1346
        %v1414 = vpop.f32.mrb[0].mxu0
        %v1415 = vadd.f32 0.0, %v1414
        %v1416 = vpop.f32.mrb[0].mxu0
        %v1417 = vadd.f32 0.0, %v1416
        %1418 = vdwg.mxu0
        %v1419 = vadd.f32 %v1333, %v1415
        %v1420 = vadd.f32 %v1334, %v1417
        %v1421 = vld [vmem:[%s6] sm:$0xff]
        %1423 = vset.pattern.permute.xlu0 0
        %1424 = vperm.xlu0 %1423, %v1421
        %v1425 = vpop.permute.xlu0 %1424
        %v1427 = vadd.f32 %v1419, %v1425
        %v1428 = vadd.f32 %v1420, %v1425
        %v1429 = vld [vmem:[#allocation2] sm:$0xff]
        %v1430 = vld [vmem:[#allocation2 + $0x8] sm:$0xff]
        %1433 = vrot.lane.b32.xlu0 %v1429, 124
        %v1434 = vpop.permute.xlu0 %1433
        %1435 = vrot.lane.b32.xlu0 %v1430, 124
        %v1436 = vpop.permute.xlu0 %1435
        %v1437 = vsel %vm877, %v1434, %v1436
        %v1440 = vadd.f32 %v1427, %v1437
        %v1441 = vadd.f32 %v1428, %v1436
        %1444 = vrot.lane.b32.xlu0 %v1440, 4
        %v1445 = vpop.permute.xlu0 %1444
        %1446 = vrot.lane.b32.xlu0 %v1441, 4
        %v1447 = vpop.permute.xlu0 %1446
        %vm1448 = vcmask 31744
        %v1449 = vsel %vm1448, %v1445, %v1447
        %vm1452 = vcmask 1047584
        %1453 = vst.msk [vmem:[#allocation2] sm:$0xff] %vm1452, %v1445
        %vm1454 = vcmask 162816
        %1455 = vst.msk [vmem:[#allocation2 + $0x8] sm:$0xff] %vm1454, %v1449
        %v1456 = vld [vmem:[#allocation2] sm:$0xff]
        %v1457 = vld [vmem:[#allocation2 + $0x8] sm:$0xff]
        %vm1458 = vcmp.gt.f32.partialorder %v1456, 0.0
        %vm1459 = vcmp.gt.f32.partialorder %v1457, 0.0
        %v1460 = vmul.f32 %v1456, 0.1
        %v1461 = vmul.f32 %v1457, 0.1
        %v1462 = vsel %vm1458, %v1456, %v1460
        %v1463 = vsel %vm1459, %v1457, %v1461
        %1464 = vst.msk [vmem:[#allocation3] sm:$0xff] %vm1452, %v1462
        %1465 = vst.msk [vmem:[#allocation3 + $0x8] sm:$0xff] %vm1454, %v1463
        // Predicated region
        $region89: #{_lambda_.3} parent=51 // pred_check
          %p1466 = pneg %p483
        $region90: #{_lambda_.3} parent=51 // pred_check_branch
          %1468 = sbr.rel (%p1466) target = $region92
        $region91: #{_lambda_.3} parent=51 // pred_region
          %vm1469 = vcmask 97312
          %1470 = vst.msk [vmem:[#allocation3] sm:$0xff] %vm1469, 0.0
        $region92: #{_lambda_.3} parent=51 // pred_fallthru
          _
        // Predicated region
        $region93: #{_lambda_.3} parent=51 // pred_check
          %p1471 = pneg %p488
        $region94: #{_lambda_.3} parent=51 // pred_check_branch
          %1473 = sbr.rel (%p1471) target = $region96
        $region95: #{_lambda_.3} parent=51 // pred_region
          %vm1474 = vcmask 162912
          %1475 = vst.msk [vmem:[#allocation3 + $0x8] sm:$0xff] %vm1474, 0.0
        $region96: #{_lambda_.3} parent=51 // pred_fallthru
          _
        %s1476 = scalar_lea.vmem %s3, 40
        %v1477 = vld [vmem:[%s1476] sm:$0xff]
        %v1478 = vld [vmem:[#allocation3] sm:$0xff]
        %v1479 = vld [vmem:[#allocation3 + $0x8] sm:$0xff]
        %s1480 = scalar_lea.vmem %s3, 48
        %v1481 = vld [vmem:[%s1480] sm:$0xff]
        %1484 = vrot.lane.b32.xlu0 %v1478, 121
        %v1485 = vpop.permute.xlu0 %1484
        %1486 = vrot.lane.b32.xlu0 %v1479, 121
        %v1487 = vpop.permute.xlu0 %1486
        %vm1488 = vcmask 990208
        %v1489 = vsel %vm1488, %v1485, %v1487
        %v1493 = vsel %vm550, %v1481, 0
        %1495 = vmatprep.subr.mxu0 %v1487
        %1496 = vmatpush1.msra.mxu0 %v1489
        %1497 = vmatprep.subr.mxu0 0.0
        %1498 = vmatpush1.msra.mxu0 0.0
        %1499 = vmatprep.subr.mxu0 0.0
        %1500 = vmatpush1.msra.mxu0 0.0
        %1501 = vmatprep.subr.mxu0 0.0
        %1502 = vmatpush1.msra.mxu0 0.0
        %1503 = vmatprep.subr.mxu0 0.0
        %1504 = vmatpush1.msra.mxu0 0.0
        %1505 = vmatprep.subr.mxu0 0.0
        %1506 = vmatpush1.msra.mxu0 0.0
        %1507 = vmatprep.subr.mxu0 0.0
        %1508 = vmatpush1.msra.mxu0 0.0
        %1509 = vmatprep.subr.mxu0 0.0
        %1510 = vmatpush1.msra.mxu0 0.0
        %1511 = vmatprep.subr.mxu0 0.0
        %1512 = vmatpush1.msra.mxu0 0.0
        %1513 = vmatprep.subr.mxu0 0.0
        %1514 = vmatpush1.msra.mxu0 0.0
        %1515 = vmatprep.subr.mxu0 0.0
        %1516 = vmatpush1.msra.mxu0 0.0
        %1517 = vmatprep.subr.mxu0 0.0
        %1518 = vmatpush1.msra.mxu0 0.0
        %1519 = vmatprep.subr.mxu0 0.0
        %1520 = vmatpush1.msra.mxu0 0.0
        %1521 = vmatprep.subr.mxu0 0.0
        %1522 = vmatpush1.msra.mxu0 0.0
        %1523 = vmatprep.subr.mxu0 0.0
        %1524 = vmatpush1.msra.mxu0 0.0
        %1525 = vmatprep.subr.mxu0 0.0
        %1526 = vmatpush1.msra.mxu0 0.0
        %1527 = vmatprep.subr.mxu0 0.0
        %1528 = vmatpush1.msra.mxu0 0.0
        %1529 = vmatprep.subr.mxu0 0.0
        %1530 = vmatpush1.msra.mxu0 0.0
        %1531 = vmatprep.subr.mxu0 0.0
        %1532 = vmatpush1.msra.mxu0 0.0
        %1533 = vmatprep.subr.mxu0 0.0
        %1534 = vmatpush1.msra.mxu0 0.0
        %1535 = vmatprep.subr.mxu0 0.0
        %1536 = vmatpush1.msra.mxu0 0.0
        %1537 = vmatprep.subr.mxu0 0.0
        %1538 = vmatpush1.msra.mxu0 0.0
        %1539 = vmatprep.subr.mxu0 0.0
        %1540 = vmatpush1.msra.mxu0 0.0
        %1541 = vmatprep.subr.mxu0 0.0
        %1542 = vmatpush1.msra.mxu0 0.0
        %1543 = vmatprep.subr.mxu0 0.0
        %1544 = vmatpush1.msra.mxu0 0.0
        %1545 = vmatprep.subr.mxu0 0.0
        %1546 = vmatpush1.msra.mxu0 0.0
        %1547 = vmatprep.subr.mxu0 0.0
        %1548 = vmatpush1.msra.mxu0 0.0
        %1549 = vmatprep.subr.mxu0 0.0
        %1550 = vmatpush1.msra.mxu0 0.0
        %1551 = vmatprep.subr.mxu0 0.0
        %1552 = vmatpush1.msra.mxu0 0.0
        %1553 = vmatprep.subr.mxu0 0.0
        %1554 = vmatpush1.msra.mxu0 0.0
        %1555 = vmatprep.subr.mxu0 0.0
        %1556 = vmatpush1.msra.mxu0 0.0
        %1557 = vmatprep.subr.mxu0 0.0
        %1558 = vmatpush1.msra.mxu0 0.0
        %1559 = vmatprep.mubr.f32.mxu0 0.0
        %1560 = vmatmul.mubr.f32.gmra.mrb[0].mxu0 %v1493
        %v1561 = vpop.f32.mrb[0].mxu0
        %v1562 = vadd.f32 0.0, %v1561
        %v1563 = vpop.f32.mrb[0].mxu0
        %v1564 = vadd.f32 0.0, %v1563
        %1565 = vdwg.mxu0
        %1566 = vrot.lane.b32.xlu0 %v1478, 124
        %v1567 = vpop.permute.xlu0 %1566
        %1568 = vrot.lane.b32.xlu0 %v1479, 124
        %v1569 = vpop.permute.xlu0 %1568
        %v1570 = vsel %vm877, %v1567, %v1569
        %v1574 = vsel %vm550, %v1477, 0
        %1576 = vmatprep.subr.mxu0 %v1569
        %1577 = vmatpush1.msra.mxu0 %v1570
        %1578 = vmatprep.subr.mxu0 0.0
        %1579 = vmatpush1.msra.mxu0 0.0
        %1580 = vmatprep.subr.mxu0 0.0
        %1581 = vmatpush1.msra.mxu0 0.0
        %1582 = vmatprep.subr.mxu0 0.0
        %1583 = vmatpush1.msra.mxu0 0.0
        %1584 = vmatprep.subr.mxu0 0.0
        %1585 = vmatpush1.msra.mxu0 0.0
        %1586 = vmatprep.subr.mxu0 0.0
        %1587 = vmatpush1.msra.mxu0 0.0
        %1588 = vmatprep.subr.mxu0 0.0
        %1589 = vmatpush1.msra.mxu0 0.0
        %1590 = vmatprep.subr.mxu0 0.0
        %1591 = vmatpush1.msra.mxu0 0.0
        %1592 = vmatprep.subr.mxu0 0.0
        %1593 = vmatpush1.msra.mxu0 0.0
        %1594 = vmatprep.subr.mxu0 0.0
        %1595 = vmatpush1.msra.mxu0 0.0
        %1596 = vmatprep.subr.mxu0 0.0
        %1597 = vmatpush1.msra.mxu0 0.0
        %1598 = vmatprep.subr.mxu0 0.0
        %1599 = vmatpush1.msra.mxu0 0.0
        %1600 = vmatprep.subr.mxu0 0.0
        %1601 = vmatpush1.msra.mxu0 0.0
        %1602 = vmatprep.subr.mxu0 0.0
        %1603 = vmatpush1.msra.mxu0 0.0
        %1604 = vmatprep.subr.mxu0 0.0
        %1605 = vmatpush1.msra.mxu0 0.0
        %1606 = vmatprep.subr.mxu0 0.0
        %1607 = vmatpush1.msra.mxu0 0.0
        %1608 = vmatprep.subr.mxu0 0.0
        %1609 = vmatpush1.msra.mxu0 0.0
        %1610 = vmatprep.subr.mxu0 0.0
        %1611 = vmatpush1.msra.mxu0 0.0
        %1612 = vmatprep.subr.mxu0 0.0
        %1613 = vmatpush1.msra.mxu0 0.0
        %1614 = vmatprep.subr.mxu0 0.0
        %1615 = vmatpush1.msra.mxu0 0.0
        %1616 = vmatprep.subr.mxu0 0.0
        %1617 = vmatpush1.msra.mxu0 0.0
        %1618 = vmatprep.subr.mxu0 0.0
        %1619 = vmatpush1.msra.mxu0 0.0
        %1620 = vmatprep.subr.mxu0 0.0
        %1621 = vmatpush1.msra.mxu0 0.0
        %1622 = vmatprep.subr.mxu0 0.0
        %1623 = vmatpush1.msra.mxu0 0.0
        %1624 = vmatprep.subr.mxu0 0.0
        %1625 = vmatpush1.msra.mxu0 0.0
        %1626 = vmatprep.subr.mxu0 0.0
        %1627 = vmatpush1.msra.mxu0 0.0
        %1628 = vmatprep.subr.mxu0 0.0
        %1629 = vmatpush1.msra.mxu0 0.0
        %1630 = vmatprep.subr.mxu0 0.0
        %1631 = vmatpush1.msra.mxu0 0.0
        %1632 = vmatprep.subr.mxu0 0.0
        %1633 = vmatpush1.msra.mxu0 0.0
        %1634 = vmatprep.subr.mxu0 0.0
        %1635 = vmatpush1.msra.mxu0 0.0
        %1636 = vmatprep.subr.mxu0 0.0
        %1637 = vmatpush1.msra.mxu0 0.0
        %1638 = vmatprep.subr.mxu0 0.0
        %1639 = vmatpush1.msra.mxu0 0.0
        %1640 = vmatprep.mubr.f32.mxu0 0.0
        %1641 = vmatmul.mubr.f32.gmra.mrb[0].mxu0 %v1574
        %v1642 = vpop.f32.mrb[0].mxu0
        %v1643 = vadd.f32 %v1562, %v1642
        %v1644 = vpop.f32.mrb[0].mxu0
        %v1645 = vadd.f32 %v1564, %v1644
        %1646 = vdwg.mxu0
        %s1647 = scalar_lea.vmem %s3, 56
        %v1648 = vld [vmem:[%s1647] sm:$0xff]
        %1649 = vrot.lane.b32.xlu0 %v1478, 118
        %v1650 = vpop.permute.xlu0 %1649
        %1651 = vrot.lane.b32.xlu0 %v1479, 118
        %v1652 = vpop.permute.xlu0 %1651
        %vm1653 = vcmask 965632
        %v1654 = vsel %vm1653, %v1650, %v1652
        %v1658 = vsel %vm550, %v1648, 0
        %1660 = vmatprep.subr.mxu0 %v1652
        %1661 = vmatpush1.msra.mxu0 %v1654
        %1662 = vmatprep.subr.mxu0 0.0
        %1663 = vmatpush1.msra.mxu0 0.0
        %1664 = vmatprep.subr.mxu0 0.0
        %1665 = vmatpush1.msra.mxu0 0.0
        %1666 = vmatprep.subr.mxu0 0.0
        %1667 = vmatpush1.msra.mxu0 0.0
        %1668 = vmatprep.subr.mxu0 0.0
        %1669 = vmatpush1.msra.mxu0 0.0
        %1670 = vmatprep.subr.mxu0 0.0
        %1671 = vmatpush1.msra.mxu0 0.0
        %1672 = vmatprep.subr.mxu0 0.0
        %1673 = vmatpush1.msra.mxu0 0.0
        %1674 = vmatprep.subr.mxu0 0.0
        %1675 = vmatpush1.msra.mxu0 0.0
        %1676 = vmatprep.subr.mxu0 0.0
        %1677 = vmatpush1.msra.mxu0 0.0
        %1678 = vmatprep.subr.mxu0 0.0
        %1679 = vmatpush1.msra.mxu0 0.0
        %1680 = vmatprep.subr.mxu0 0.0
        %1681 = vmatpush1.msra.mxu0 0.0
        %1682 = vmatprep.subr.mxu0 0.0
        %1683 = vmatpush1.msra.mxu0 0.0
        %1684 = vmatprep.subr.mxu0 0.0
        %1685 = vmatpush1.msra.mxu0 0.0
        %1686 = vmatprep.subr.mxu0 0.0
        %1687 = vmatpush1.msra.mxu0 0.0
        %1688 = vmatprep.subr.mxu0 0.0
        %1689 = vmatpush1.msra.mxu0 0.0
        %1690 = vmatprep.subr.mxu0 0.0
        %1691 = vmatpush1.msra.mxu0 0.0
        %1692 = vmatprep.subr.mxu0 0.0
        %1693 = vmatpush1.msra.mxu0 0.0
        %1694 = vmatprep.subr.mxu0 0.0
        %1695 = vmatpush1.msra.mxu0 0.0
        %1696 = vmatprep.subr.mxu0 0.0
        %1697 = vmatpush1.msra.mxu0 0.0
        %1698 = vmatprep.subr.mxu0 0.0
        %1699 = vmatpush1.msra.mxu0 0.0
        %1700 = vmatprep.subr.mxu0 0.0
        %1701 = vmatpush1.msra.mxu0 0.0
        %1702 = vmatprep.subr.mxu0 0.0
        %1703 = vmatpush1.msra.mxu0 0.0
        %1704 = vmatprep.subr.mxu0 0.0
        %1705 = vmatpush1.msra.mxu0 0.0
        %1706 = vmatprep.subr.mxu0 0.0
        %1707 = vmatpush1.msra.mxu0 0.0
        %1708 = vmatprep.subr.mxu0 0.0
        %1709 = vmatpush1.msra.mxu0 0.0
        %1710 = vmatprep.subr.mxu0 0.0
        %1711 = vmatpush1.msra.mxu0 0.0
        %1712 = vmatprep.subr.mxu0 0.0
        %1713 = vmatpush1.msra.mxu0 0.0
        %1714 = vmatprep.subr.mxu0 0.0
        %1715 = vmatpush1.msra.mxu0 0.0
        %1716 = vmatprep.subr.mxu0 0.0
        %1717 = vmatpush1.msra.mxu0 0.0
        %1718 = vmatprep.subr.mxu0 0.0
        %1719 = vmatpush1.msra.mxu0 0.0
        %1720 = vmatprep.subr.mxu0 0.0
        %1721 = vmatpush1.msra.mxu0 0.0
        %1722 = vmatprep.subr.mxu0 0.0
        %1723 = vmatpush1.msra.mxu0 0.0
        %1724 = vmatprep.mubr.f32.mxu0 0.0
        %1725 = vmatmul.mubr.f32.gmra.mrb[0].mxu0 %v1658
        %v1726 = vpop.f32.mrb[0].mxu0
        %v1727 = vadd.f32 0.0, %v1726
        %v1728 = vpop.f32.mrb[0].mxu0
        %v1729 = vadd.f32 0.0, %v1728
        %1730 = vdwg.mxu0
        %v1731 = vadd.f32 %v1643, %v1727
        %v1732 = vadd.f32 %v1645, %v1729
        %s1733 = scalar_lea.vmem %s3, 64
        %v1734 = vld [vmem:[%s1733] sm:$0xff]
        %1735 = vrot.lane.b32.xlu0 %v1478, 115
        %v1736 = vpop.permute.xlu0 %1735
        %1737 = vrot.lane.b32.xlu0 %v1479, 115
        %v1738 = vpop.permute.xlu0 %1737
        %vm1739 = vcmask 941056
        %v1740 = vsel %vm1739, %v1736, %v1738
        %v1744 = vsel %vm550, %v1734, 0
        %1746 = vmatprep.subr.mxu0 %v1738
        %1747 = vmatpush1.msra.mxu0 %v1740
        %1748 = vmatprep.subr.mxu0 0.0
        %1749 = vmatpush1.msra.mxu0 0.0
        %1750 = vmatprep.subr.mxu0 0.0
        %1751 = vmatpush1.msra.mxu0 0.0
        %1752 = vmatprep.subr.mxu0 0.0
        %1753 = vmatpush1.msra.mxu0 0.0
        %1754 = vmatprep.subr.mxu0 0.0
        %1755 = vmatpush1.msra.mxu0 0.0
        %1756 = vmatprep.subr.mxu0 0.0
        %1757 = vmatpush1.msra.mxu0 0.0
        %1758 = vmatprep.subr.mxu0 0.0
        %1759 = vmatpush1.msra.mxu0 0.0
        %1760 = vmatprep.subr.mxu0 0.0
        %1761 = vmatpush1.msra.mxu0 0.0
        %1762 = vmatprep.subr.mxu0 0.0
        %1763 = vmatpush1.msra.mxu0 0.0
        %1764 = vmatprep.subr.mxu0 0.0
        %1765 = vmatpush1.msra.mxu0 0.0
        %1766 = vmatprep.subr.mxu0 0.0
        %1767 = vmatpush1.msra.mxu0 0.0
        %1768 = vmatprep.subr.mxu0 0.0
        %1769 = vmatpush1.msra.mxu0 0.0
        %1770 = vmatprep.subr.mxu0 0.0
        %1771 = vmatpush1.msra.mxu0 0.0
        %1772 = vmatprep.subr.mxu0 0.0
        %1773 = vmatpush1.msra.mxu0 0.0
        %1774 = vmatprep.subr.mxu0 0.0
        %1775 = vmatpush1.msra.mxu0 0.0
        %1776 = vmatprep.subr.mxu0 0.0
        %1777 = vmatpush1.msra.mxu0 0.0
        %1778 = vmatprep.subr.mxu0 0.0
        %1779 = vmatpush1.msra.mxu0 0.0
        %1780 = vmatprep.subr.mxu0 0.0
        %1781 = vmatpush1.msra.mxu0 0.0
        %1782 = vmatprep.subr.mxu0 0.0
        %1783 = vmatpush1.msra.mxu0 0.0
        %1784 = vmatprep.subr.mxu0 0.0
        %1785 = vmatpush1.msra.mxu0 0.0
        %1786 = vmatprep.subr.mxu0 0.0
        %1787 = vmatpush1.msra.mxu0 0.0
        %1788 = vmatprep.subr.mxu0 0.0
        %1789 = vmatpush1.msra.mxu0 0.0
        %1790 = vmatprep.subr.mxu0 0.0
        %1791 = vmatpush1.msra.mxu0 0.0
        %1792 = vmatprep.subr.mxu0 0.0
        %1793 = vmatpush1.msra.mxu0 0.0
        %1794 = vmatprep.subr.mxu0 0.0
        %1795 = vmatpush1.msra.mxu0 0.0
        %1796 = vmatprep.subr.mxu0 0.0
        %1797 = vmatpush1.msra.mxu0 0.0
        %1798 = vmatprep.subr.mxu0 0.0
        %1799 = vmatpush1.msra.mxu0 0.0
        %1800 = vmatprep.subr.mxu0 0.0
        %1801 = vmatpush1.msra.mxu0 0.0
        %1802 = vmatprep.subr.mxu0 0.0
        %1803 = vmatpush1.msra.mxu0 0.0
        %1804 = vmatprep.subr.mxu0 0.0
        %1805 = vmatpush1.msra.mxu0 0.0
        %1806 = vmatprep.subr.mxu0 0.0
        %1807 = vmatpush1.msra.mxu0 0.0
        %1808 = vmatprep.subr.mxu0 0.0
        %1809 = vmatpush1.msra.mxu0 0.0
        %1810 = vmatprep.mubr.f32.mxu0 0.0
        %1811 = vmatmul.mubr.f32.gmra.mrb[0].mxu0 %v1744
        %v1812 = vpop.f32.mrb[0].mxu0
        %v1813 = vadd.f32 0.0, %v1812
        %v1814 = vpop.f32.mrb[0].mxu0
        %v1815 = vadd.f32 0.0, %v1814
        %1816 = vdwg.mxu0
        %v1817 = vadd.f32 %v1731, %v1813
        %v1818 = vadd.f32 %v1732, %v1815
        %s1819 = scalar_lea.vmem %s3, 72
        %v1820 = vld [vmem:[%s1819] sm:$0xff]
        %1821 = vrot.lane.b32.xlu0 %v1478, 112
        %v1822 = vpop.permute.xlu0 %1821
        %1823 = vrot.lane.b32.xlu0 %v1479, 112
        %v1824 = vpop.permute.xlu0 %1823
        %vm1825 = vcmask 916480
        %v1826 = vsel %vm1825, %v1822, %v1824
        %v1830 = vsel %vm550, %v1820, 0
        %1832 = vmatprep.subr.mxu0 %v1824
        %1833 = vmatpush1.msra.mxu0 %v1826
        %1834 = vmatprep.subr.mxu0 0.0
        %1835 = vmatpush1.msra.mxu0 0.0
        %1836 = vmatprep.subr.mxu0 0.0
        %1837 = vmatpush1.msra.mxu0 0.0
        %1838 = vmatprep.subr.mxu0 0.0
        %1839 = vmatpush1.msra.mxu0 0.0
        %1840 = vmatprep.subr.mxu0 0.0
        %1841 = vmatpush1.msra.mxu0 0.0
        %1842 = vmatprep.subr.mxu0 0.0
        %1843 = vmatpush1.msra.mxu0 0.0
        %1844 = vmatprep.subr.mxu0 0.0
        %1845 = vmatpush1.msra.mxu0 0.0
        %1846 = vmatprep.subr.mxu0 0.0
        %1847 = vmatpush1.msra.mxu0 0.0
        %1848 = vmatprep.subr.mxu0 0.0
        %1849 = vmatpush1.msra.mxu0 0.0
        %1850 = vmatprep.subr.mxu0 0.0
        %1851 = vmatpush1.msra.mxu0 0.0
        %1852 = vmatprep.subr.mxu0 0.0
        %1853 = vmatpush1.msra.mxu0 0.0
        %1854 = vmatprep.subr.mxu0 0.0
        %1855 = vmatpush1.msra.mxu0 0.0
        %1856 = vmatprep.subr.mxu0 0.0
        %1857 = vmatpush1.msra.mxu0 0.0
        %1858 = vmatprep.subr.mxu0 0.0
        %1859 = vmatpush1.msra.mxu0 0.0
        %1860 = vmatprep.subr.mxu0 0.0
        %1861 = vmatpush1.msra.mxu0 0.0
        %1862 = vmatprep.subr.mxu0 0.0
        %1863 = vmatpush1.msra.mxu0 0.0
        %1864 = vmatprep.subr.mxu0 0.0
        %1865 = vmatpush1.msra.mxu0 0.0
        %1866 = vmatprep.subr.mxu0 0.0
        %1867 = vmatpush1.msra.mxu0 0.0
        %1868 = vmatprep.subr.mxu0 0.0
        %1869 = vmatpush1.msra.mxu0 0.0
        %1870 = vmatprep.subr.mxu0 0.0
        %1871 = vmatpush1.msra.mxu0 0.0
        %1872 = vmatprep.subr.mxu0 0.0
        %1873 = vmatpush1.msra.mxu0 0.0
        %1874 = vmatprep.subr.mxu0 0.0
        %1875 = vmatpush1.msra.mxu0 0.0
        %1876 = vmatprep.subr.mxu0 0.0
        %1877 = vmatpush1.msra.mxu0 0.0
        %1878 = vmatprep.subr.mxu0 0.0
        %1879 = vmatpush1.msra.mxu0 0.0
        %1880 = vmatprep.subr.mxu0 0.0
        %1881 = vmatpush1.msra.mxu0 0.0
        %1882 = vmatprep.subr.mxu0 0.0
        %1883 = vmatpush1.msra.mxu0 0.0
        %1884 = vmatprep.subr.mxu0 0.0
        %1885 = vmatpush1.msra.mxu0 0.0
        %1886 = vmatprep.subr.mxu0 0.0
        %1887 = vmatpush1.msra.mxu0 0.0
        %1888 = vmatprep.subr.mxu0 0.0
        %1889 = vmatpush1.msra.mxu0 0.0
        %1890 = vmatprep.subr.mxu0 0.0
        %1891 = vmatpush1.msra.mxu0 0.0
        %1892 = vmatprep.subr.mxu0 0.0
        %1893 = vmatpush1.msra.mxu0 0.0
        %1894 = vmatprep.subr.mxu0 0.0
        %1895 = vmatpush1.msra.mxu0 0.0
        %1896 = vmatprep.mubr.f32.mxu0 0.0
        %1897 = vmatmul.mubr.f32.gmra.mrb[0].mxu0 %v1830
        %v1898 = vpop.f32.mrb[0].mxu0
        %v1899 = vadd.f32 0.0, %v1898
        %v1900 = vpop.f32.mrb[0].mxu0
        %v1901 = vadd.f32 0.0, %v1900
        %1902 = vdwg.mxu0
        %v1903 = vadd.f32 %v1817, %v1899
        %v1904 = vadd.f32 %v1818, %v1901
        %s1905 = scalar_lea.vmem %s4, 8
        %v1906 = vld [vmem:[%s1905] sm:$0xff]
        %1908 = vset.pattern.permute.xlu0 0
        %1909 = vperm.xlu0 %1908, %v1906
        %v1910 = vpop.permute.xlu0 %1909
        %v1912 = vadd.f32 %v1903, %v1910
        %v1913 = vadd.f32 %v1904, %v1910
        %vm1914 = vcmp.gt.f32.partialorder %v1912, 0.0
        %vm1915 = vcmp.gt.f32.partialorder %v1913, 0.0
        %v1916 = vmul.f32 %v1912, 0.1
        %v1917 = vmul.f32 %v1913, 0.1
        %v1918 = vsel %vm1914, %v1912, %v1916
        %v1919 = vsel %vm1915, %v1913, %v1917
        %1922 = vrot.lane.b32.xlu0 %v1918, 10
        %v1923 = vpop.permute.xlu0 %1922
        %1924 = vrot.lane.b32.xlu0 %v1919, 10
        %v1925 = vpop.permute.xlu0 %1924
        %vm1926 = vcmask 80896
        %v1927 = vsel %vm1926, %v1923, %v1925
        %vm1930 = vcmask 1047632
        %1931 = vst.msk [vmem:[#allocation4] sm:$0xff] %vm1930, %v1923
        %vm1932 = vcmask 113664
        %1933 = vst.msk [vmem:[#allocation4 + $0x8] sm:$0xff] %vm1932, %v1927
        // Predicated region
        $region97: #{_lambda_.3} parent=51 // pred_check
          %p1934 = pneg %p483
        $region98: #{_lambda_.3} parent=51 // pred_check_branch
          %1936 = sbr.rel (%p1934) target = $region100
        $region99: #{_lambda_.3} parent=51 // pred_region
          %vm1937 = vcmask 97360
          %1938 = vst.msk [vmem:[#allocation4] sm:$0xff] %vm1937, 0.0
        $region100: #{_lambda_.3} parent=51 // pred_fallthru
          _
        // Predicated region
        $region101: #{_lambda_.3} parent=51 // pred_check
          %p1939 = pneg %p488
        $region102: #{_lambda_.3} parent=51 // pred_check_branch
          %1941 = sbr.rel (%p1939) target = $region104
        $region103: #{_lambda_.3} parent=51 // pred_region
          %vm1942 = vcmask 113760
          %1943 = vst.msk [vmem:[#allocation4 + $0x8] sm:$0xff] %vm1942, 0.0
        $region104: #{_lambda_.3} parent=51 // pred_fallthru
          _
        %s1944 = scalar_lea.vmem %s5, 40
        %v1945 = vld [vmem:[%s1944] sm:$0xff]
        %v1946 = vld [vmem:[#allocation4] sm:$0xff]
        %v1947 = vld [vmem:[#allocation4 + $0x8] sm:$0xff]
        %s1948 = scalar_lea.vmem %s5, 48
        %v1949 = vld [vmem:[%s1948] sm:$0xff]
        %1952 = vrot.lane.b32.xlu0 %v1946, 117
        %v1953 = vpop.permute.xlu0 %1952
        %1954 = vrot.lane.b32.xlu0 %v1947, 117
        %v1955 = vpop.permute.xlu0 %1954
        %vm1956 = vcmask 957440
        %v1957 = vsel %vm1956, %v1953, %v1955
        %v1960 = vsel %vm550, %v1949, 0
        %1962 = vmatprep.subr.mxu0 0.0
        %1963 = vmatpush1.msra.mxu0 %v1957
        %1964 = vmatprep.subr.mxu0 0.0
        %1965 = vmatpush1.msra.mxu0 0.0
        %1966 = vmatprep.subr.mxu0 0.0
        %1967 = vmatpush1.msra.mxu0 0.0
        %1968 = vmatprep.subr.mxu0 0.0
        %1969 = vmatpush1.msra.mxu0 0.0
        %1970 = vmatprep.subr.mxu0 0.0
        %1971 = vmatpush1.msra.mxu0 0.0
        %1972 = vmatprep.subr.mxu0 0.0
        %1973 = vmatpush1.msra.mxu0 0.0
        %1974 = vmatprep.subr.mxu0 0.0
        %1975 = vmatpush1.msra.mxu0 0.0
        %1976 = vmatprep.subr.mxu0 0.0
        %1977 = vmatpush1.msra.mxu0 0.0
        %1978 = vmatprep.subr.mxu0 0.0
        %1979 = vmatpush1.msra.mxu0 0.0
        %1980 = vmatprep.subr.mxu0 0.0
        %1981 = vmatpush1.msra.mxu0 0.0
        %1982 = vmatprep.subr.mxu0 0.0
        %1983 = vmatpush1.msra.mxu0 0.0
        %1984 = vmatprep.subr.mxu0 0.0
        %1985 = vmatpush1.msra.mxu0 0.0
        %1986 = vmatprep.subr.mxu0 0.0
        %1987 = vmatpush1.msra.mxu0 0.0
        %1988 = vmatprep.subr.mxu0 0.0
        %1989 = vmatpush1.msra.mxu0 0.0
        %1990 = vmatprep.subr.mxu0 0.0
        %1991 = vmatpush1.msra.mxu0 0.0
        %1992 = vmatprep.subr.mxu0 0.0
        %1993 = vmatpush1.msra.mxu0 0.0
        %1994 = vmatprep.subr.mxu0 0.0
        %1995 = vmatpush1.msra.mxu0 0.0
        %1996 = vmatprep.subr.mxu0 0.0
        %1997 = vmatpush1.msra.mxu0 0.0
        %1998 = vmatprep.subr.mxu0 0.0
        %1999 = vmatpush1.msra.mxu0 0.0
        %2000 = vmatprep.subr.mxu0 0.0
        %2001 = vmatpush1.msra.mxu0 0.0
        %2002 = vmatprep.subr.mxu0 0.0
        %2003 = vmatpush1.msra.mxu0 0.0
        %2004 = vmatprep.subr.mxu0 0.0
        %2005 = vmatpush1.msra.mxu0 0.0
        %2006 = vmatprep.subr.mxu0 0.0
        %2007 = vmatpush1.msra.mxu0 0.0
        %2008 = vmatprep.subr.mxu0 0.0
        %2009 = vmatpush1.msra.mxu0 0.0
        %2010 = vmatprep.subr.mxu0 0.0
        %2011 = vmatpush1.msra.mxu0 0.0
        %2012 = vmatprep.subr.mxu0 0.0
        %2013 = vmatpush1.msra.mxu0 0.0
        %2014 = vmatprep.subr.mxu0 0.0
        %2015 = vmatpush1.msra.mxu0 0.0
        %2016 = vmatprep.subr.mxu0 0.0
        %2017 = vmatpush1.msra.mxu0 0.0
        %2018 = vmatprep.subr.mxu0 0.0
        %2019 = vmatpush1.msra.mxu0 0.0
        %2020 = vmatprep.subr.mxu0 0.0
        %2021 = vmatpush1.msra.mxu0 0.0
        %2022 = vmatprep.subr.mxu0 0.0
        %2023 = vmatpush1.msra.mxu0 0.0
        %2024 = vmatprep.subr.mxu0 0.0
        %2025 = vmatpush1.msra.mxu0 0.0
        %2026 = vmatprep.mubr.f32.mxu0 0.0
        %2027 = vmatmul.mubr.f32.gmra.mrb[0].mxu0 %v1960
        %v2028 = vpop.f32.mrb[0].mxu0
        %v2029 = vadd.f32 0.0, %v2028
        %v2030 = vpop.f32.mrb[0].mxu0
        %2031 = vdwg.mxu0
        %2032 = vrot.lane.b32.xlu0 %v1946, 118
        %v2033 = vpop.permute.xlu0 %2032
        %2034 = vrot.lane.b32.xlu0 %v1947, 118
        %v2035 = vpop.permute.xlu0 %2034
        %v2036 = vsel %vm1653, %v2033, %v2035
        %v2039 = vsel %vm550, %v1945, 0
        %2041 = vmatprep.subr.mxu0 0.0
        %2042 = vmatpush1.msra.mxu0 %v2036
        %2043 = vmatprep.subr.mxu0 0.0
        %2044 = vmatpush1.msra.mxu0 0.0
        %2045 = vmatprep.subr.mxu0 0.0
        %2046 = vmatpush1.msra.mxu0 0.0
        %2047 = vmatprep.subr.mxu0 0.0
        %2048 = vmatpush1.msra.mxu0 0.0
        %2049 = vmatprep.subr.mxu0 0.0
        %2050 = vmatpush1.msra.mxu0 0.0
        %2051 = vmatprep.subr.mxu0 0.0
        %2052 = vmatpush1.msra.mxu0 0.0
        %2053 = vmatprep.subr.mxu0 0.0
        %2054 = vmatpush1.msra.mxu0 0.0
        %2055 = vmatprep.subr.mxu0 0.0
        %2056 = vmatpush1.msra.mxu0 0.0
        %2057 = vmatprep.subr.mxu0 0.0
        %2058 = vmatpush1.msra.mxu0 0.0
        %2059 = vmatprep.subr.mxu0 0.0
        %2060 = vmatpush1.msra.mxu0 0.0
        %2061 = vmatprep.subr.mxu0 0.0
        %2062 = vmatpush1.msra.mxu0 0.0
        %2063 = vmatprep.subr.mxu0 0.0
        %2064 = vmatpush1.msra.mxu0 0.0
        %2065 = vmatprep.subr.mxu0 0.0
        %2066 = vmatpush1.msra.mxu0 0.0
        %2067 = vmatprep.subr.mxu0 0.0
        %2068 = vmatpush1.msra.mxu0 0.0
        %2069 = vmatprep.subr.mxu0 0.0
        %2070 = vmatpush1.msra.mxu0 0.0
        %2071 = vmatprep.subr.mxu0 0.0
        %2072 = vmatpush1.msra.mxu0 0.0
        %2073 = vmatprep.subr.mxu0 0.0
        %2074 = vmatpush1.msra.mxu0 0.0
        %2075 = vmatprep.subr.mxu0 0.0
        %2076 = vmatpush1.msra.mxu0 0.0
        %2077 = vmatprep.subr.mxu0 0.0
        %2078 = vmatpush1.msra.mxu0 0.0
        %2079 = vmatprep.subr.mxu0 0.0
        %2080 = vmatpush1.msra.mxu0 0.0
        %2081 = vmatprep.subr.mxu0 0.0
        %2082 = vmatpush1.msra.mxu0 0.0
        %2083 = vmatprep.subr.mxu0 0.0
        %2084 = vmatpush1.msra.mxu0 0.0
        %2085 = vmatprep.subr.mxu0 0.0
        %2086 = vmatpush1.msra.mxu0 0.0
        %2087 = vmatprep.subr.mxu0 0.0
        %2088 = vmatpush1.msra.mxu0 0.0
        %2089 = vmatprep.subr.mxu0 0.0
        %2090 = vmatpush1.msra.mxu0 0.0
        %2091 = vmatprep.subr.mxu0 0.0
        %2092 = vmatpush1.msra.mxu0 0.0
        %2093 = vmatprep.subr.mxu0 0.0
        %2094 = vmatpush1.msra.mxu0 0.0
        %2095 = vmatprep.subr.mxu0 0.0
        %2096 = vmatpush1.msra.mxu0 0.0
        %2097 = vmatprep.subr.mxu0 0.0
        %2098 = vmatpush1.msra.mxu0 0.0
        %2099 = vmatprep.subr.mxu0 0.0
        %2100 = vmatpush1.msra.mxu0 0.0
        %2101 = vmatprep.subr.mxu0 0.0
        %2102 = vmatpush1.msra.mxu0 0.0
        %2103 = vmatprep.subr.mxu0 0.0
        %2104 = vmatpush1.msra.mxu0 0.0
        %2105 = vmatprep.mubr.f32.mxu0 0.0
        %2106 = vmatmul.mubr.f32.gmra.mrb[0].mxu0 %v2039
        %v2107 = vpop.f32.mrb[0].mxu0
        %v2108 = vadd.f32 %v2029, %v2107
        %v2109 = vpop.f32.mrb[0].mxu0
        %2110 = vdwg.mxu0
        %s2111 = scalar_lea.vmem %s5, 56
        %v2112 = vld [vmem:[%s2111] sm:$0xff]
        %2113 = vrot.lane.b32.xlu0 %v1946, 116
        %v2114 = vpop.permute.xlu0 %2113
        %2115 = vrot.lane.b32.xlu0 %v1947, 116
        %v2116 = vpop.permute.xlu0 %2115
        %vm2117 = vcmask 949248
        %v2118 = vsel %vm2117, %v2114, %v2116
        %v2121 = vsel %vm550, %v2112, 0
        %2123 = vmatprep.subr.mxu0 0.0
        %2124 = vmatpush1.msra.mxu0 %v2118
        %2125 = vmatprep.subr.mxu0 0.0
        %2126 = vmatpush1.msra.mxu0 0.0
        %2127 = vmatprep.subr.mxu0 0.0
        %2128 = vmatpush1.msra.mxu0 0.0
        %2129 = vmatprep.subr.mxu0 0.0
        %2130 = vmatpush1.msra.mxu0 0.0
        %2131 = vmatprep.subr.mxu0 0.0
        %2132 = vmatpush1.msra.mxu0 0.0
        %2133 = vmatprep.subr.mxu0 0.0
        %2134 = vmatpush1.msra.mxu0 0.0
        %2135 = vmatprep.subr.mxu0 0.0
        %2136 = vmatpush1.msra.mxu0 0.0
        %2137 = vmatprep.subr.mxu0 0.0
        %2138 = vmatpush1.msra.mxu0 0.0
        %2139 = vmatprep.subr.mxu0 0.0
        %2140 = vmatpush1.msra.mxu0 0.0
        %2141 = vmatprep.subr.mxu0 0.0
        %2142 = vmatpush1.msra.mxu0 0.0
        %2143 = vmatprep.subr.mxu0 0.0
        %2144 = vmatpush1.msra.mxu0 0.0
        %2145 = vmatprep.subr.mxu0 0.0
        %2146 = vmatpush1.msra.mxu0 0.0
        %2147 = vmatprep.subr.mxu0 0.0
        %2148 = vmatpush1.msra.mxu0 0.0
        %2149 = vmatprep.subr.mxu0 0.0
        %2150 = vmatpush1.msra.mxu0 0.0
        %2151 = vmatprep.subr.mxu0 0.0
        %2152 = vmatpush1.msra.mxu0 0.0
        %2153 = vmatprep.subr.mxu0 0.0
        %2154 = vmatpush1.msra.mxu0 0.0
        %2155 = vmatprep.subr.mxu0 0.0
        %2156 = vmatpush1.msra.mxu0 0.0
        %2157 = vmatprep.subr.mxu0 0.0
        %2158 = vmatpush1.msra.mxu0 0.0
        %2159 = vmatprep.subr.mxu0 0.0
        %2160 = vmatpush1.msra.mxu0 0.0
        %2161 = vmatprep.subr.mxu0 0.0
        %2162 = vmatpush1.msra.mxu0 0.0
        %2163 = vmatprep.subr.mxu0 0.0
        %2164 = vmatpush1.msra.mxu0 0.0
        %2165 = vmatprep.subr.mxu0 0.0
        %2166 = vmatpush1.msra.mxu0 0.0
        %2167 = vmatprep.subr.mxu0 0.0
        %2168 = vmatpush1.msra.mxu0 0.0
        %2169 = vmatprep.subr.mxu0 0.0
        %2170 = vmatpush1.msra.mxu0 0.0
        %2171 = vmatprep.subr.mxu0 0.0
        %2172 = vmatpush1.msra.mxu0 0.0
        %2173 = vmatprep.subr.mxu0 0.0
        %2174 = vmatpush1.msra.mxu0 0.0
        %2175 = vmatprep.subr.mxu0 0.0
        %2176 = vmatpush1.msra.mxu0 0.0
        %2177 = vmatprep.subr.mxu0 0.0
        %2178 = vmatpush1.msra.mxu0 0.0
        %2179 = vmatprep.subr.mxu0 0.0
        %2180 = vmatpush1.msra.mxu0 0.0
        %2181 = vmatprep.subr.mxu0 0.0
        %2182 = vmatpush1.msra.mxu0 0.0
        %2183 = vmatprep.subr.mxu0 0.0
        %2184 = vmatpush1.msra.mxu0 0.0
        %2185 = vmatprep.subr.mxu0 0.0
        %2186 = vmatpush1.msra.mxu0 0.0
        %2187 = vmatprep.mubr.f32.mxu0 0.0
        %2188 = vmatmul.mubr.f32.gmra.mrb[0].mxu0 %v2121
        %v2189 = vpop.f32.mrb[0].mxu0
        %v2190 = vadd.f32 0.0, %v2189
        %v2191 = vpop.f32.mrb[0].mxu0
        %2192 = vdwg.mxu0
        %v2193 = vadd.f32 %v2108, %v2190
        %s2194 = scalar_lea.vmem %s5, 64
        %v2195 = vld [vmem:[%s2194] sm:$0xff]
        %2196 = vrot.lane.b32.xlu0 %v1946, 115
        %v2197 = vpop.permute.xlu0 %2196
        %2198 = vrot.lane.b32.xlu0 %v1947, 115
        %v2199 = vpop.permute.xlu0 %2198
        %v2200 = vsel %vm1739, %v2197, %v2199
        %v2203 = vsel %vm550, %v2195, 0
        %2205 = vmatprep.subr.mxu0 0.0
        %2206 = vmatpush1.msra.mxu0 %v2200
        %2207 = vmatprep.subr.mxu0 0.0
        %2208 = vmatpush1.msra.mxu0 0.0
        %2209 = vmatprep.subr.mxu0 0.0
        %2210 = vmatpush1.msra.mxu0 0.0
        %2211 = vmatprep.subr.mxu0 0.0
        %2212 = vmatpush1.msra.mxu0 0.0
        %2213 = vmatprep.subr.mxu0 0.0
        %2214 = vmatpush1.msra.mxu0 0.0
        %2215 = vmatprep.subr.mxu0 0.0
        %2216 = vmatpush1.msra.mxu0 0.0
        %2217 = vmatprep.subr.mxu0 0.0
        %2218 = vmatpush1.msra.mxu0 0.0
        %2219 = vmatprep.subr.mxu0 0.0
        %2220 = vmatpush1.msra.mxu0 0.0
        %2221 = vmatprep.subr.mxu0 0.0
        %2222 = vmatpush1.msra.mxu0 0.0
        %2223 = vmatprep.subr.mxu0 0.0
        %2224 = vmatpush1.msra.mxu0 0.0
        %2225 = vmatprep.subr.mxu0 0.0
        %2226 = vmatpush1.msra.mxu0 0.0
        %2227 = vmatprep.subr.mxu0 0.0
        %2228 = vmatpush1.msra.mxu0 0.0
        %2229 = vmatprep.subr.mxu0 0.0
        %2230 = vmatpush1.msra.mxu0 0.0
        %2231 = vmatprep.subr.mxu0 0.0
        %2232 = vmatpush1.msra.mxu0 0.0
        %2233 = vmatprep.subr.mxu0 0.0
        %2234 = vmatpush1.msra.mxu0 0.0
        %2235 = vmatprep.subr.mxu0 0.0
        %2236 = vmatpush1.msra.mxu0 0.0
        %2237 = vmatprep.subr.mxu0 0.0
        %2238 = vmatpush1.msra.mxu0 0.0
        %2239 = vmatprep.subr.mxu0 0.0
        %2240 = vmatpush1.msra.mxu0 0.0
        %2241 = vmatprep.subr.mxu0 0.0
        %2242 = vmatpush1.msra.mxu0 0.0
        %2243 = vmatprep.subr.mxu0 0.0
        %2244 = vmatpush1.msra.mxu0 0.0
        %2245 = vmatprep.subr.mxu0 0.0
        %2246 = vmatpush1.msra.mxu0 0.0
        %2247 = vmatprep.subr.mxu0 0.0
        %2248 = vmatpush1.msra.mxu0 0.0
        %2249 = vmatprep.subr.mxu0 0.0
        %2250 = vmatpush1.msra.mxu0 0.0
        %2251 = vmatprep.subr.mxu0 0.0
        %2252 = vmatpush1.msra.mxu0 0.0
        %2253 = vmatprep.subr.mxu0 0.0
        %2254 = vmatpush1.msra.mxu0 0.0
        %2255 = vmatprep.subr.mxu0 0.0
        %2256 = vmatpush1.msra.mxu0 0.0
        %2257 = vmatprep.subr.mxu0 0.0
        %2258 = vmatpush1.msra.mxu0 0.0
        %2259 = vmatprep.subr.mxu0 0.0
        %2260 = vmatpush1.msra.mxu0 0.0
        %2261 = vmatprep.subr.mxu0 0.0
        %2262 = vmatpush1.msra.mxu0 0.0
        %2263 = vmatprep.subr.mxu0 0.0
        %2264 = vmatpush1.msra.mxu0 0.0
        %2265 = vmatprep.subr.mxu0 0.0
        %2266 = vmatpush1.msra.mxu0 0.0
        %2267 = vmatprep.subr.mxu0 0.0
        %2268 = vmatpush1.msra.mxu0 0.0
        %2269 = vmatprep.mubr.f32.mxu0 0.0
        %2270 = vmatmul.mubr.f32.gmra.mrb[0].mxu0 %v2203
        %v2271 = vpop.f32.mrb[0].mxu0
        %v2272 = vadd.f32 0.0, %v2271
        %v2273 = vpop.f32.mrb[0].mxu0
        %2274 = vdwg.mxu0
        %v2275 = vadd.f32 %v2193, %v2272
        %s2276 = scalar_lea.vmem %s5, 72
        %v2277 = vld [vmem:[%s2276] sm:$0xff]
        %2278 = vrot.lane.b32.xlu0 %v1946, 114
        %v2279 = vpop.permute.xlu0 %2278
        %2280 = vrot.lane.b32.xlu0 %v1947, 114
        %v2281 = vpop.permute.xlu0 %2280
        %vm2282 = vcmask 932864
        %v2283 = vsel %vm2282, %v2279, %v2281
        %v2286 = vsel %vm550, %v2277, 0
        %2288 = vmatprep.subr.mxu0 0.0
        %2289 = vmatpush1.msra.mxu0 %v2283
        %2290 = vmatprep.subr.mxu0 0.0
        %2291 = vmatpush1.msra.mxu0 0.0
        %2292 = vmatprep.subr.mxu0 0.0
        %2293 = vmatpush1.msra.mxu0 0.0
        %2294 = vmatprep.subr.mxu0 0.0
        %2295 = vmatpush1.msra.mxu0 0.0
        %2296 = vmatprep.subr.mxu0 0.0
        %2297 = vmatpush1.msra.mxu0 0.0
        %2298 = vmatprep.subr.mxu0 0.0
        %2299 = vmatpush1.msra.mxu0 0.0
        %2300 = vmatprep.subr.mxu0 0.0
        %2301 = vmatpush1.msra.mxu0 0.0
        %2302 = vmatprep.subr.mxu0 0.0
        %2303 = vmatpush1.msra.mxu0 0.0
        %2304 = vmatprep.subr.mxu0 0.0
        %2305 = vmatpush1.msra.mxu0 0.0
        %2306 = vmatprep.subr.mxu0 0.0
        %2307 = vmatpush1.msra.mxu0 0.0
        %2308 = vmatprep.subr.mxu0 0.0
        %2309 = vmatpush1.msra.mxu0 0.0
        %2310 = vmatprep.subr.mxu0 0.0
        %2311 = vmatpush1.msra.mxu0 0.0
        %2312 = vmatprep.subr.mxu0 0.0
        %2313 = vmatpush1.msra.mxu0 0.0
        %2314 = vmatprep.subr.mxu0 0.0
        %2315 = vmatpush1.msra.mxu0 0.0
        %2316 = vmatprep.subr.mxu0 0.0
        %2317 = vmatpush1.msra.mxu0 0.0
        %2318 = vmatprep.subr.mxu0 0.0
        %2319 = vmatpush1.msra.mxu0 0.0
        %2320 = vmatprep.subr.mxu0 0.0
        %2321 = vmatpush1.msra.mxu0 0.0
        %2322 = vmatprep.subr.mxu0 0.0
        %2323 = vmatpush1.msra.mxu0 0.0
        %2324 = vmatprep.subr.mxu0 0.0
        %2325 = vmatpush1.msra.mxu0 0.0
        %2326 = vmatprep.subr.mxu0 0.0
        %2327 = vmatpush1.msra.mxu0 0.0
        %2328 = vmatprep.subr.mxu0 0.0
        %2329 = vmatpush1.msra.mxu0 0.0
        %2330 = vmatprep.subr.mxu0 0.0
        %2331 = vmatpush1.msra.mxu0 0.0
        %2332 = vmatprep.subr.mxu0 0.0
        %2333 = vmatpush1.msra.mxu0 0.0
        %2334 = vmatprep.subr.mxu0 0.0
        %2335 = vmatpush1.msra.mxu0 0.0
        %2336 = vmatprep.subr.mxu0 0.0
        %2337 = vmatpush1.msra.mxu0 0.0
        %2338 = vmatprep.subr.mxu0 0.0
        %2339 = vmatpush1.msra.mxu0 0.0
        %2340 = vmatprep.subr.mxu0 0.0
        %2341 = vmatpush1.msra.mxu0 0.0
        %2342 = vmatprep.subr.mxu0 0.0
        %2343 = vmatpush1.msra.mxu0 0.0
        %2344 = vmatprep.subr.mxu0 0.0
        %2345 = vmatpush1.msra.mxu0 0.0
        %2346 = vmatprep.subr.mxu0 0.0
        %2347 = vmatpush1.msra.mxu0 0.0
        %2348 = vmatprep.subr.mxu0 0.0
        %2349 = vmatpush1.msra.mxu0 0.0
        %2350 = vmatprep.subr.mxu0 0.0
        %2351 = vmatpush1.msra.mxu0 0.0
        %2352 = vmatprep.mubr.f32.mxu0 0.0
        %2353 = vmatmul.mubr.f32.gmra.mrb[0].mxu0 %v2286
        %v2354 = vpop.f32.mrb[0].mxu0
        %v2355 = vadd.f32 0.0, %v2354
        %v2356 = vpop.f32.mrb[0].mxu0
        %2357 = vdwg.mxu0
        %v2358 = vadd.f32 %v2275, %v2355
        %s2359 = scalar_lea.vmem %s6, 8
        %v2360 = vld [vmem:[%s2359] sm:$0xff]
        %2362 = vset.pattern.permute.xlu0 0
        %2363 = vperm.xlu0 %2362, %v2360
        %v2364 = vpop.permute.xlu0 %2363
        %v2366 = vadd.f32 %v2358, %v2364
        %v2367 = vld [vmem:[#allocation2] sm:$0xff]
        %v2368 = vld [vmem:[#allocation2 + $0x8] sm:$0xff]
        %2371 = vrot.lane.b32.xlu0 %v2367, 116
        %v2372 = vpop.permute.xlu0 %2371
        %2373 = vrot.lane.b32.xlu0 %v2368, 116
        %v2374 = vpop.permute.xlu0 %2373
        %v2375 = vsel %vm2117, %v2372, %v2374
        %v2377 = vadd.f32 %v2366, %v2375
        %2379 = vrot.lane.b32.xlu0 %v2377, 12
        %v2380 = vpop.permute.xlu0 %2379
        %2382 = vst.msk [vmem:[#allocation2] sm:$0xff] %vm479, %v2380
        %2383 = vst.msk [vmem:[#allocation2 + $0x8] sm:$0xff] %vm481, %v2380
        %v2384 = vld [vmem:[#allocation2] sm:$0xff]
        %v2385 = vld [vmem:[#allocation2 + $0x8] sm:$0xff]
        %v2386 = vld [vmem:[%s375] sm:$0xff]
        %2388 = vrot.lane.b32.xlu0 %v2386, 12
        %v2389 = vpop.permute.xlu0 %2388
        %v2391 = vadd.f32 %v2384, %v2389
        %v2392 = vadd.f32 %v2385, %v2389
        %2395 = vrot.lane.b32.xlu0 %v2391, 116
        %v2396 = vpop.permute.xlu0 %2395
        %2397 = vrot.lane.b32.xlu0 %v2392, 116
        %v2398 = vpop.permute.xlu0 %2397
        %v2399 = vsel %vm2117, %v2396, %v2398
        %2401 = vst [vmem:[%s437] sm:$0xff] %v2399
        %s2402 = sand.u32 %s255, 1
        %s2403 = scalar_lea.sflag [#allocation7], %s2402
        %s2404 = sand.u32 %s255, 1
        %s2405 = smul.addr %s2404, 8
        %s2406 = scalar_lea.vmem [#allocation8], %s2405
        // Predicated region
        $region105: #{_lambda_.3} parent=51 // pred_check
          %p2407 = pneg %p265
        $region106: #{_lambda_.3} parent=51 // pred_check_branch
          %2409 = sbr.rel (%p2407) target = $region108
        $region107: #{_lambda_.3} parent=51 // pred_region
          %s2411 = ssub.s32 128, 128
          %2412 = vsyncadd %s2403, %s2411
          %s2413 = smul.addr %s29, 2
          %s2414 = sadd.s32 %s30, %s2413
          %s2415 = smul.addr %s2414, 128
          %s2416 = scalar_lea.hbm %s8, %s2415
          %s2418 = sshll.u32 %s2406, 4
          %s2419 = int_to_ptr.vmem [resolvable:$true] %s2418
          %2421 = dma.vmem_to_hbm [thread:$0]  %s2419, 128, %s2416, %s2403
        $region108: #{_lambda_.3} parent=51 // pred_fallthru
          _
      $region52: #{_lambda_.3} parent=5 // pred_fallthru
        _
      %p2422 = scmp.le.s32.totalorder 2, %s20
      // Predicated region
      $region109: #{_lambda_.3} parent=5 // pred_check
        %p2423 = pneg %p2422
      $region110: #{_lambda_.3} parent=5 // pred_check_branch
        %2425 = sbr.rel (%p2423) target = $region112
      $region111: #{_lambda_.3} parent=5 // pred_region
        %s2426 = ssub.s32 %s20, 2
        // Predicated region
        $region113: #{_lambda_.3} parent=111 // pred_check
          %p2427 = pneg %p271
        $region114: #{_lambda_.3} parent=111 // pred_check_branch
          %2429 = sbr.rel (%p2427) target = $region116
        $region115: #{_lambda_.3} parent=111 // pred_region
          %s2430 = sand.u32 %s256, 1
          %s2431 = scalar_lea.sflag [#allocation7], %s2430
          %s2432 = sand.u32 %s256, 1
          %s2433 = smul.addr %s2432, 8
          %s2434 = scalar_lea.vmem [#allocation8], %s2433
          %2435 = dma.done %s2431, 128
        $region116: #{_lambda_.3} parent=111 // pred_fallthru
          _
      $region112: #{_lambda_.3} parent=5 // pred_fallthru
        _
    $region6: #{_lambda_.3} parent=1 // loop_footer
      %s24 = sadd.s32 1, %s20
    $region7: #{_lambda_.3} parent=1 // loop_footer_branch
      %19 = sbr.rel target = $region3
    $region8: #{_lambda_.3} parent=1 // loop_exit
      _
    %2436 = vsyncpa [#allocation6], 1
    %s2437 = scalar_lea.sflag [#allocation6], 1
    %2438 = vsyncpa %s2437, 1
    %2439 = vsyncpa [#allocation7], 1
    %s2440 = scalar_lea.sflag [#allocation7], 1
    %2441 = vsyncpa %s2440, 1

</llo_original>
